<compile_context>
chip_gen: v7x
topology: tpu7x:2x2x1
jax: 0.10.0
libtpu: 0.0.40
codegen_flags: <defaults>
</compile_context>

<pallas_src>
import jax
import jax.numpy as jnp
from jax.experimental import pallas as pl
from jax.experimental.pallas import tpu as pltpu

# ----------------------------- configuration -----------------------------
B, T, C = 2, 8, 12                  # batch, max tokens, max chars per token
GLOVE_DIM = 32
CHAR_EMBED_DIM = 16
CHAR_K = 3
CHAR_F = 16                         # char_num_kernels
P = C - CHAR_K + 1                  # conv positions (valid conv)
RNN_H = 32                          # rnn_hidden_dim
DEC_H = 32                          # decoder_hidden_dim
LABELS = 5                          # label_vocab_size
LP2 = LABELS + 2                    # + start/stop tags
TOKEN_VOCAB = 50
CHAR_VOCAB = 30
EMB_DIM = GLOVE_DIM + CHAR_F        # total_embedding_dim = glove_dim + char_num_kernels
EMIT_PAD = 128                      # lane-dense padded emission width

VMEM = pltpu.MemorySpace.VMEM


# ----------------------------- fused kernel -----------------------------
def crf_fused_kernel(glove_ref,      # [B*T, GLOVE_DIM]
                     chars_ref,      # [B*T, C*E]   flattened char embeddings
                     convw_ref,      # [C*E, P*F]   block-Toeplitz conv weight
                     convb_ref,      # [1, P*F]     conv bias tiled over positions
                     wxg_ref,        # [GLOVE_DIM, 8H]  input proj (fwd||bwd), glove rows
                     wxc_ref,        # [CHAR_F, 8H]     input proj (fwd||bwd), char rows
                     bx_ref,         # [1, 8H]          b_f || b_b
                     whf_ref,        # [H, 4H]
                     whb_ref,        # [H, 4H]
                     w1f_ref,        # [H, DEC_H]   emission layer-1, forward half
                     w1b_ref,        # [H, DEC_H]   emission layer-1, backward half
                     b1_ref,         # [1, DEC_H]
                     w2p_ref,        # [DEC_H, 128] emission layer-2, lane-padded
                     b2p_ref,        # [1, 128]
                     o_ref,          # [B*T, 128]   lane-dense emission output
                     gx_sc,          # VMEM [B, T, 8H] projected gates per timestep
                     fwd_sc,         # VMEM [B*T, H]   forward hidden states (row = b*T + t)
                     bwd_sc):        # VMEM [B*T, H]   backward hidden states
    H = RNN_H
    F = CHAR_F

    # ---- CharCNN: Conv1d folded into one block-Toeplitz matmul, ReLU, max over time ----
    y = jnp.dot(chars_ref[...], convw_ref[...],
                preferred_element_type=jnp.float32) + convb_ref[...]        # [N, P*F]
    y = jnp.maximum(y, 0.0)
    char_feat = y[:, 0:F]
    for p in range(1, P):                                                    # VPU-only unrolled max
        char_feat = jnp.maximum(char_feat, y[:, p * F:(p + 1) * F])          # [N, F]

    # ---- Hoisted BiLSTM input projection: one big-M matmul for both directions ----
    gates_x = (jnp.dot(glove_ref[...], wxg_ref[...], preferred_element_type=jnp.float32)
               + jnp.dot(char_feat, wxc_ref[...], preferred_element_type=jnp.float32)
               + bx_ref[...])                                                # [N, 8H]
    for b in range(B):
        gx_sc[b] = gates_x[b * T:(b + 1) * T, :]                             # [T, 8H] per batch row

    whf = whf_ref[...]
    whb = whb_ref[...]

    def cell(gates, c_prev):   # gate order i, f, g, o (PyTorch LSTM); b = b_ih + b_hh
        i = jax.nn.sigmoid(gates[:, 0:H])
        f = jax.nn.sigmoid(gates[:, H:2 * H])
        g = jnp.tanh(gates[:, 2 * H:3 * H])
        o = jax.nn.sigmoid(gates[:, 3 * H:4 * H])
        c_new = f * c_prev + i * g
        h_new = o * jnp.tanh(c_new)
        return h_new, c_new

    # ---- forward direction (statically unrolled; only h @ Wh left in the recurrence) ----
    # TODO(synk): pack_padded_sequence length masking from the PyTorch BiRNN is not
    #             reproduced; the LSTM runs over the full padded sequence.
    h = jnp.zeros((B, H), jnp.float32)
    c = jnp.zeros((B, H), jnp.float32)
    for t in range(T):
        gates = gx_sc[:, t, 0:4 * H] + jnp.dot(h, whf, preferred_element_type=jnp.float32)
        h, c = cell(gates, c)
        for b in range(B):
            fwd_sc[pl.ds(b * T + t, 1), :] = h[b:b + 1, :]

    # ---- backward direction ----
    h = jnp.zeros((B, H), jnp.float32)
    c = jnp.zeros((B, H), jnp.float32)
    for t in range(T - 1, -1, -1):
        gates = gx_sc[:, t, 4 * H:8 * H] + jnp.dot(h, whb, preferred_element_type=jnp.float32)
        h, c = cell(gates, c)
        for b in range(B):
            bwd_sc[pl.ds(b * T + t, 1), :] = h[b:b + 1, :]

    # ---- UnaryFactor emission MLP over all B*T tokens at once (lane-dense output) ----
    hdec = (jnp.dot(fwd_sc[...], w1f_ref[...], preferred_element_type=jnp.float32)
            + jnp.dot(bwd_sc[...], w1b_ref[...], preferred_element_type=jnp.float32)
            + b1_ref[...])
    hdec = jnp.maximum(hdec, 0.0)
    o_ref[...] = (jnp.dot(hdec, w2p_ref[...], preferred_element_type=jnp.float32)
                  + b2p_ref[...])


# ----------------------------- parameter init -----------------------------
def init_params(key):
    ks = jax.random.split(key, 16)

    def rnd(k, shape, scale=0.1):
        return scale * jax.random.normal(k, shape, dtype=jnp.float32)

    p = {
        # TokenEmbedding
        'glove': rnd(ks[0], (TOKEN_VOCAB, GLOVE_DIM), 1.0),          # pretrained_embedding
        'char_emb': rnd(ks[1], (CHAR_VOCAB, CHAR_EMBED_DIM), 1.0),
        # CharCNN Conv1d weight flattened: W_flat[k*E + e, f] == W_torch[f, e, k]
        'conv_w': rnd(ks[2], (CHAR_K * CHAR_EMBED_DIM, CHAR_F)),
        'conv_b': rnd(ks[3], (1, CHAR_F)),
        # BiRNN (single-layer bidirectional LSTM); gate order i,f,g,o; b = b_ih + b_hh
        'wx_f': rnd(ks[4], (EMB_DIM, 4 * RNN_H)),
        'wh_f': rnd(ks[5], (RNN_H, 4 * RNN_H)),
        'b_f': rnd(ks[6], (1, 4 * RNN_H)),
        'wx_b': rnd(ks[7], (EMB_DIM, 4 * RNN_H)),
        'wh_b': rnd(ks[8], (RNN_H, 4 * RNN_H)),
        'b_b': rnd(ks[9], (1, 4 * RNN_H)),
        # UnaryFactor (emission)
        'w1': rnd(ks[10], (2 * RNN_H, DEC_H)),
        'b1': rnd(ks[11], (1, DEC_H)),
        'w2': rnd(ks[12], (DEC_H, LP2)),
        'b2': rnd(ks[13], (1, LP2)),
    }
    # transitions parameter: randn, then start-row / stop-column pinned to -10000
    trans = jax.random.normal(ks[14], (LP2, LP2), dtype=jnp.float32)
    trans = trans.at[LABELS, :].set(-10000.0)       # start_tag_index row
    trans = trans.at[:, LABELS + 1].set(-10000.0)   # stop_tag_index column
    p['transitions'] = trans
    return p


# ----------------------------- forward -----------------------------
def forward(params, tokens, token_chars, lengths):
    """tokens: [B, T] int32; token_chars: [B*T, C] int32; lengths: [B] int32 (unused, see TODO).
    Returns (emission_scores [B, T, L+2], transitions [L+2, L+2])."""
    N = B * T

    # --- embedding lookups (XLA gathers; rows ordered (b, t)) ---
    glove = jnp.take(params['glove'], tokens.reshape(-1), axis=0)                 # [N, GLOVE_DIM]
    chars_flat = jnp.take(params['char_emb'], token_chars,
                          axis=0).reshape(N, C * CHAR_EMBED_DIM)                   # [N, C*E]
    # TODO(synk): CharCNN max-over-time includes windows of padded char positions
    #             (no per-token char-length masking), matching the reference Conv1d.

    # --- fold the conv "unfold" into a block-Toeplitz weight (single lane-dense matmul) ---
    Wt = jnp.zeros((C * CHAR_EMBED_DIM, P * CHAR_F), jnp.float32)
    for p in range(P):
        Wt = Wt.at[p * CHAR_EMBED_DIM:p * CHAR_EMBED_DIM + CHAR_K * CHAR_EMBED_DIM,
                   p * CHAR_F:(p + 1) * CHAR_F].set(params['conv_w'])
    conv_b_tiled = jnp.tile(params['conv_b'], (1, P))                              # [1, P*F]

    # --- hoisted BiLSTM input projection weights: [Wx_f || Wx_b], split glove/char rows ---
    wx_cat = jnp.concatenate([params['wx_f'], params['wx_b']], axis=1)             # [D, 8H]
    wxg, wxc = wx_cat[:GLOVE_DIM], wx_cat[GLOVE_DIM:]
    bx = jnp.concatenate([params['b_f'], params['b_b']], axis=1)                   # [1, 8H]

    # --- emission weights: split layer-1 by fwd/bwd halves; lane-pad layer-2 output to 128 ---
    w1f, w1b = params['w1'][:RNN_H], params['w1'][RNN_H:]
    w2p = jnp.zeros((DEC_H, EMIT_PAD), jnp.float32).at[:, :LP2].set(params['w2'])
    b2p = jnp.zeros((1, EMIT_PAD), jnp.float32).at[:, :LP2].set(params['b2'])

    out = pl.pallas_call(
        crf_fused_kernel,
        out_shape=jax.ShapeDtypeStruct((N, EMIT_PAD), jnp.float32),
        in_specs=[pl.BlockSpec(memory_space=VMEM)] * 14,
        out_specs=pl.BlockSpec(memory_space=VMEM),
        scratch_shapes=[
            pltpu.VMEM((B, T, 8 * RNN_H), jnp.float32),   # projected gates per timestep
            pltpu.VMEM((N, RNN_H), jnp.float32),          # forward hidden states
            pltpu.VMEM((N, RNN_H), jnp.float32),          # backward hidden states
        ],
    )(glove, chars_flat, Wt, conv_b_tiled, wxg, wxc, bx,
      params['wh_f'], params['wh_b'], w1f, w1b, params['b1'], w2p, b2p)

    em = out[:, :LP2].reshape(B, T, LP2)
    return em, params['transitions']


# ----------------------------- main -----------------------------
if __name__ == "__main__":
    key = jax.random.PRNGKey(0)
    kp, kt, kc = jax.random.split(key, 3)

    params = init_params(kp)
    tokens = jax.random.randint(kt, (B, T), 0, TOKEN_VOCAB, dtype=jnp.int32)
    token_chars = jax.random.randint(kc, (B * T, C), 0, CHAR_VOCAB, dtype=jnp.int32)
    lengths = jnp.array([T, T - 2], dtype=jnp.int32)

    emission_scores, transitions = jax.jit(forward)(params, tokens, token_chars, lengths)
    jax.block_until_ready((emission_scores, transitions))

    assert emission_scores.shape == (B, T, LP2)
    assert transitions.shape == (LP2, LP2)
    assert bool(jnp.all(jnp.isfinite(emission_scores)))
    assert bool(jnp.all(transitions[LABELS, :] == -10000.0))
    assert bool(jnp.all(transitions[:, LABELS + 1] == -10000.0))
    print("KERNEL_OK")
</pallas_src>

<mosaic_0001>
module attributes {stable_mosaic.version = 11 : i64} {
  func.func @crf_fused_kernel(%arg0: memref<16x32xf32, #tpu.memory_space<vmem>>, %arg1: memref<16x192xf32, #tpu.memory_space<vmem>>, %arg2: memref<192x160xf32, #tpu.memory_space<vmem>>, %arg3: memref<1x160xf32, #tpu.memory_space<vmem>>, %arg4: memref<32x256xf32, #tpu.memory_space<vmem>>, %arg5: memref<16x256xf32, #tpu.memory_space<vmem>>, %arg6: memref<1x256xf32, #tpu.memory_space<vmem>>, %arg7: memref<32x128xf32, #tpu.memory_space<vmem>>, %arg8: memref<32x128xf32, #tpu.memory_space<vmem>>, %arg9: memref<32x32xf32, #tpu.memory_space<vmem>>, %arg10: memref<32x32xf32, #tpu.memory_space<vmem>>, %arg11: memref<1x32xf32, #tpu.memory_space<vmem>>, %arg12: memref<32x128xf32, #tpu.memory_space<vmem>>, %arg13: memref<1x128xf32, #tpu.memory_space<vmem>>, %arg14: memref<16x128xf32, #tpu.memory_space<vmem>>, %arg15: memref<2x8x256xf32, #tpu.memory_space<vmem>>, %arg16: memref<16x32xf32, #tpu.memory_space<vmem>>, %arg17: memref<16x32xf32, #tpu.memory_space<vmem>>) attributes {dimension_semantics = [], scalar_prefetch = 0 : i64, scratch_operands = 3 : i64, tpu.core_type = #tpu.core_type<tc>} {
    %c0 = arith.constant 0 : index
    %c0_0 = arith.constant 0 : index
    %0 = vector.load %arg1[%c0, %c0_0] : memref<16x192xf32, #tpu.memory_space<vmem>>, vector<16x192xf32>
    %c0_1 = arith.constant 0 : index
    %c0_2 = arith.constant 0 : index
    %1 = vector.load %arg2[%c0_1, %c0_2] : memref<192x160xf32, #tpu.memory_space<vmem>>, vector<192x160xf32>
    %cst = arith.constant dense<0.000000e+00> : vector<16x160xf32>
    %2 = tpu.matmul %0, %1, %cst {dimension_numbers = #tpu.dot_dimension_numbers<[1], [0], [0], [1], [0, 0, 1, 1], [], []>} : vector<16x192xf32>, vector<192x160xf32>, vector<16x160xf32> -> vector<16x160xf32>
    %c0_3 = arith.constant 0 : index
    %c0_4 = arith.constant 0 : index
    %3 = vector.load %arg3[%c0_3, %c0_4] : memref<1x160xf32, #tpu.memory_space<vmem>>, vector<1x160xf32>
    %4 = vector.broadcast %3 : vector<1x160xf32> to vector<16x160xf32>
    %5 = arith.addf %2, %4 : vector<16x160xf32>
    %cst_5 = arith.constant 0.000000e+00 : f32
    %6 = vector.broadcast %cst_5 : f32 to vector<16x160xf32>
    %7 = arith.maximumf %5, %6 : vector<16x160xf32>
    %8 = vector.extract_strided_slice %7 {offsets = [0, 0], sizes = [16, 16], strides = [1, 1]} : vector<16x160xf32> to vector<16x16xf32>
    %9 = vector.extract_strided_slice %7 {offsets = [0, 16], sizes = [16, 16], strides = [1, 1]} : vector<16x160xf32> to vector<16x16xf32>
    %10 = arith.maximumf %8, %9 : vector<16x16xf32>
    %11 = vector.extract_strided_slice %7 {offsets = [0, 32], sizes = [16, 16], strides = [1, 1]} : vector<16x160xf32> to vector<16x16xf32>
    %12 = arith.maximumf %10, %11 : vector<16x16xf32>
    %13 = vector.extract_strided_slice %7 {offsets = [0, 48], sizes = [16, 16], strides = [1, 1]} : vector<16x160xf32> to vector<16x16xf32>
    %14 = arith.maximumf %12, %13 : vector<16x16xf32>
    %15 = vector.extract_strided_slice %7 {offsets = [0, 64], sizes = [16, 16], strides = [1, 1]} : vector<16x160xf32> to vector<16x16xf32>
    %16 = arith.maximumf %14, %15 : vector<16x16xf32>
    %17 = vector.extract_strided_slice %7 {offsets = [0, 80], sizes = [16, 16], strides = [1, 1]} : vector<16x160xf32> to vector<16x16xf32>
    %18 = arith.maximumf %16, %17 : vector<16x16xf32>
    %19 = vector.extract_strided_slice %7 {offsets = [0, 96], sizes = [16, 16], strides = [1, 1]} : vector<16x160xf32> to vector<16x16xf32>
    %20 = arith.maximumf %18, %19 : vector<16x16xf32>
    %21 = vector.extract_strided_slice %7 {offsets = [0, 112], sizes = [16, 16], strides = [1, 1]} : vector<16x160xf32> to vector<16x16xf32>
    %22 = arith.maximumf %20, %21 : vector<16x16xf32>
    %23 = vector.extract_strided_slice %7 {offsets = [0, 128], sizes = [16, 16], strides = [1, 1]} : vector<16x160xf32> to vector<16x16xf32>
    %24 = arith.maximumf %22, %23 : vector<16x16xf32>
    %25 = vector.extract_strided_slice %7 {offsets = [0, 144], sizes = [16, 16], strides = [1, 1]} : vector<16x160xf32> to vector<16x16xf32>
    %26 = arith.maximumf %24, %25 : vector<16x16xf32>
    %c0_6 = arith.constant 0 : index
    %c0_7 = arith.constant 0 : index
    %27 = vector.load %arg0[%c0_6, %c0_7] : memref<16x32xf32, #tpu.memory_space<vmem>>, vector<16x32xf32>
    %c0_8 = arith.constant 0 : index
    %c0_9 = arith.constant 0 : index
    %28 = vector.load %arg4[%c0_8, %c0_9] : memref<32x256xf32, #tpu.memory_space<vmem>>, vector<32x256xf32>
    %cst_10 = arith.constant dense<0.000000e+00> : vector<16x256xf32>
    %29 = tpu.matmul %27, %28, %cst_10 {dimension_numbers = #tpu.dot_dimension_numbers<[1], [0], [0], [1], [0, 0, 1, 1], [], []>} : vector<16x32xf32>, vector<32x256xf32>, vector<16x256xf32> -> vector<16x256xf32>
    %c0_11 = arith.constant 0 : index
    %c0_12 = arith.constant 0 : index
    %30 = vector.load %arg5[%c0_11, %c0_12] : memref<16x256xf32, #tpu.memory_space<vmem>>, vector<16x256xf32>
    %cst_13 = arith.constant dense<0.000000e+00> : vector<16x256xf32>
    %31 = tpu.matmul %26, %30, %cst_13 {dimension_numbers = #tpu.dot_dimension_numbers<[1], [0], [0], [1], [0, 0, 1, 1], [], []>} : vector<16x16xf32>, vector<16x256xf32>, vector<16x256xf32> -> vector<16x256xf32>
    %32 = arith.addf %29, %31 : vector<16x256xf32>
    %c0_14 = arith.constant 0 : index
    %c0_15 = arith.constant 0 : index
    %33 = vector.load %arg6[%c0_14, %c0_15] : memref<1x256xf32, #tpu.memory_space<vmem>>, vector<1x256xf32>
    %34 = vector.broadcast %33 : vector<1x256xf32> to vector<16x256xf32>
    %35 = arith.addf %32, %34 : vector<16x256xf32>
    %36 = vector.extract_strided_slice %35 {offsets = [0, 0], sizes = [8, 256], strides = [1, 1]} : vector<16x256xf32> to vector<8x256xf32>
    %c0_16 = arith.constant 0 : index
    %c0_17 = arith.constant 0 : index
    %c0_18 = arith.constant 0 : index
    %37 = vector.load %arg15[%c0_16, %c0_17, %c0_18] : memref<2x8x256xf32, #tpu.memory_space<vmem>>, vector<1x8x256xf32>
    %38 = vector.shape_cast %37 : vector<1x8x256xf32> to vector<8x256xf32>
    %39 = vector.shape_cast %36 : vector<8x256xf32> to vector<1x8x256xf32>
    tpu.vector_store %arg15[%c0_16, %c0_17, %c0_18], %39 {strides = array<i32>} : memref<2x8x256xf32, #tpu.memory_space<vmem>>, vector<1x8x256xf32>,
    %40 = vector.extract_strided_slice %35 {offsets = [8, 0], sizes = [8, 256], strides = [1, 1]} : vector<16x256xf32> to vector<8x256xf32>
    %c1 = arith.constant 1 : index
    %c0_19 = arith.constant 0 : index
    %c0_20 = arith.constant 0 : index
    %41 = vector.load %arg15[%c1, %c0_19, %c0_20] : memref<2x8x256xf32, #tpu.memory_space<vmem>>, vector<1x8x256xf32>
    %42 = vector.shape_cast %41 : vector<1x8x256xf32> to vector<8x256xf32>
    %43 = vector.shape_cast %40 : vector<8x256xf32> to vector<1x8x256xf32>
    tpu.vector_store %arg15[%c1, %c0_19, %c0_20], %43 {strides = array<i32>} : memref<2x8x256xf32, #tpu.memory_space<vmem>>, vector<1x8x256xf32>,
    %c0_21 = arith.constant 0 : index
    %c0_22 = arith.constant 0 : index
    %44 = vector.load %arg7[%c0_21, %c0_22] : memref<32x128xf32, #tpu.memory_space<vmem>>, vector<32x128xf32>
    %c0_23 = arith.constant 0 : index
    %c0_24 = arith.constant 0 : index
    %45 = vector.load %arg8[%c0_23, %c0_24] : memref<32x128xf32, #tpu.memory_space<vmem>>, vector<32x128xf32>
    %cst_25 = arith.constant 0.000000e+00 : f32
    %46 = vector.broadcast %cst_25 : f32 to vector<2x32xf32>
    %cst_26 = arith.constant 0.000000e+00 : f32
    %47 = vector.broadcast %cst_26 : f32 to vector<2x32xf32>
    %c0_27 = arith.constant 0 : index
    %c0_28 = arith.constant 0 : index
    %c0_29 = arith.constant 0 : index
    %48 = vector.load %arg15[%c0_27, %c0_28, %c0_29] : memref<2x8x256xf32, #tpu.memory_space<vmem>>, vector<2x1x128xf32>
    %49 = vector.shape_cast %48 : vector<2x1x128xf32> to vector<2x128xf32>
    %cst_30 = arith.constant dense<0.000000e+00> : vector<2x128xf32>
    %50 = tpu.matmul %46, %44, %cst_30 {dimension_numbers = #tpu.dot_dimension_numbers<[1], [0], [0], [1], [0, 0, 1, 1], [], []>} : vector<2x32xf32>, vector<32x128xf32>, vector<2x128xf32> -> vector<2x128xf32>
    %51 = arith.addf %49, %50 : vector<2x128xf32>
    %52 = vector.extract_strided_slice %51 {offsets = [0, 0], sizes = [2, 32], strides = [1, 1]} : vector<2x128xf32> to vector<2x32xf32>
    %53 = arith.negf %52 : vector<2x32xf32>
    %54 = math.exp %53 : vector<2x32xf32>
    %cst_31 = arith.constant 1.000000e+00 : f32
    %55 = vector.broadcast %cst_31 : f32 to vector<2x32xf32>
    %56 = arith.addf %55, %54 : vector<2x32xf32>
    %57 = arith.divf %55, %56 : vector<2x32xf32>
    %58 = vector.extract_strided_slice %51 {offsets = [0, 32], sizes = [2, 32], strides = [1, 1]} : vector<2x128xf32> to vector<2x32xf32>
    %59 = arith.negf %58 : vector<2x32xf32>
    %60 = math.exp %59 : vector<2x32xf32>
    %cst_32 = arith.constant 1.000000e+00 : f32
    %61 = vector.broadcast %cst_32 : f32 to vector<2x32xf32>
    %62 = arith.addf %61, %60 : vector<2x32xf32>
    %63 = arith.divf %61, %62 : vector<2x32xf32>
    %64 = vector.extract_strided_slice %51 {offsets = [0, 64], sizes = [2, 32], strides = [1, 1]} : vector<2x128xf32> to vector<2x32xf32>
    %65 = math.tanh %64 : vector<2x32xf32>
    %66 = vector.extract_strided_slice %51 {offsets = [0, 96], sizes = [2, 32], strides = [1, 1]} : vector<2x128xf32> to vector<2x32xf32>
    %67 = arith.negf %66 : vector<2x32xf32>
    %68 = math.exp %67 : vector<2x32xf32>
    %cst_33 = arith.constant 1.000000e+00 : f32
    %69 = vector.broadcast %cst_33 : f32 to vector<2x32xf32>
    %70 = arith.addf %69, %68 : vector<2x32xf32>
    %71 = arith.divf %69, %70 : vector<2x32xf32>
    %72 = arith.mulf %63, %47 : vector<2x32xf32>
    %73 = arith.mulf %57, %65 : vector<2x32xf32>
    %74 = arith.addf %72, %73 : vector<2x32xf32>
    %75 = math.tanh %74 : vector<2x32xf32>
    %76 = arith.mulf %71, %75 : vector<2x32xf32>
    %77 = vector.extract_strided_slice %76 {offsets = [0, 0], sizes = [1, 32], strides = [1, 1]} : vector<2x32xf32> to vector<1x32xf32>
    %c0_34 = arith.constant 0 : index
    %c0_35 = arith.constant 0 : index
    %78 = vector.load %arg16[%c0_34, %c0_35] : memref<16x32xf32, #tpu.memory_space<vmem>>, vector<1x32xf32>
    tpu.vector_store %arg16[%c0_34, %c0_35], %77 {strides = array<i32>} : memref<16x32xf32, #tpu.memory_space<vmem>>, vector<1x32xf32>,
    %79 = vector.extract_strided_slice %76 {offsets = [1, 0], sizes = [1, 32], strides = [1, 1]} : vector<2x32xf32> to vector<1x32xf32>
    %c8 = arith.constant 8 : index
    %c0_36 = arith.constant 0 : index
    %80 = vector.load %arg16[%c8, %c0_36] : memref<16x32xf32, #tpu.memory_space<vmem>>, vector<1x32xf32>
    tpu.vector_store %arg16[%c8, %c0_36], %79 {strides = array<i32>} : memref<16x32xf32, #tpu.memory_space<vmem>>, vector<1x32xf32>,
    %c0_37 = arith.constant 0 : index
    %c1_38 = arith.constant 1 : index
    %c0_39 = arith.constant 0 : index
    %81 = vector.load %arg15[%c0_37, %c1_38, %c0_39] : memref<2x8x256xf32, #tpu.memory_space<vmem>>, vector<2x1x128xf32>
    %82 = vector.shape_cast %81 : vector<2x1x128xf32> to vector<2x128xf32>
    %cst_40 = arith.constant dense<0.000000e+00> : vector<2x128xf32>
    %83 = tpu.matmul %76, %44, %cst_40 {dimension_numbers = #tpu.dot_dimension_numbers<[1], [0], [0], [1], [0, 0, 1, 1], [], []>} : vector<2x32xf32>, vector<32x128xf32>, vector<2x128xf32> -> vector<2x128xf32>
    %84 = arith.addf %82, %83 : vector<2x128xf32>
    %85 = vector.extract_strided_slice %84 {offsets = [0, 0], sizes = [2, 32], strides = [1, 1]} : vector<2x128xf32> to vector<2x32xf32>
    %86 = arith.negf %85 : vector<2x32xf32>
    %87 = math.exp %86 : vector<2x32xf32>
    %cst_41 = arith.constant 1.000000e+00 : f32
    %88 = vector.broadcast %cst_41 : f32 to vector<2x32xf32>
    %89 = arith.addf %88, %87 : vector<2x32xf32>
    %90 = arith.divf %88, %89 : vector<2x32xf32>
    %91 = vector.extract_strided_slice %84 {offsets = [0, 32], sizes = [2, 32], strides = [1, 1]} : vector<2x128xf32> to vector<2x32xf32>
    %92 = arith.negf %91 : vector<2x32xf32>
    %93 = math.exp %92 : vector<2x32xf32>
    %cst_42 = arith.constant 1.000000e+00 : f32
    %94 = vector.broadcast %cst_42 : f32 to vector<2x32xf32>
    %95 = arith.addf %94, %93 : vector<2x32xf32>
    %96 = arith.divf %94, %95 : vector<2x32xf32>
    %97 = vector.extract_strided_slice %84 {offsets = [0, 64], sizes = [2, 32], strides = [1, 1]} : vector<2x128xf32> to vector<2x32xf32>
    %98 = math.tanh %97 : vector<2x32xf32>
    %99 = vector.extract_strided_slice %84 {offsets = [0, 96], sizes = [2, 32], strides = [1, 1]} : vector<2x128xf32> to vector<2x32xf32>
    %100 = arith.negf %99 : vector<2x32xf32>
    %101 = math.exp %100 : vector<2x32xf32>
    %cst_43 = arith.constant 1.000000e+00 : f32
    %102 = vector.broadcast %cst_43 : f32 to vector<2x32xf32>
    %103 = arith.addf %102, %101 : vector<2x32xf32>
    %104 = arith.divf %102, %103 : vector<2x32xf32>
    %105 = arith.mulf %96, %74 : vector<2x32xf32>
    %106 = arith.mulf %90, %98 : vector<2x32xf32>
    %107 = arith.addf %105, %106 : vector<2x32xf32>
    %108 = math.tanh %107 : vector<2x32xf32>
    %109 = arith.mulf %104, %108 : vector<2x32xf32>
    %110 = vector.extract_strided_slice %109 {offsets = [0, 0], sizes = [1, 32], strides = [1, 1]} : vector<2x32xf32> to vector<1x32xf32>
    %c1_44 = arith.constant 1 : index
    %c0_45 = arith.constant 0 : index
    %111 = vector.load %arg16[%c1_44, %c0_45] : memref<16x32xf32, #tpu.memory_space<vmem>>, vector<1x32xf32>
    tpu.vector_store %arg16[%c1_44, %c0_45], %110 {strides = array<i32>} : memref<16x32xf32, #tpu.memory_space<vmem>>, vector<1x32xf32>,
    %112 = vector.extract_strided_slice %109 {offsets = [1, 0], sizes = [1, 32], strides = [1, 1]} : vector<2x32xf32> to vector<1x32xf32>
    %c9 = arith.constant 9 : index
    %c0_46 = arith.constant 0 : index
    %113 = vector.load %arg16[%c9, %c0_46] : memref<16x32xf32, #tpu.memory_space<vmem>>, vector<1x32xf32>
    tpu.vector_store %arg16[%c9, %c0_46], %112 {strides = array<i32>} : memref<16x32xf32, #tpu.memory_space<vmem>>, vector<1x32xf32>,
    %c0_47 = arith.constant 0 : index
    %c2 = arith.constant 2 : index
    %c0_48 = arith.constant 0 : index
    %114 = vector.load %arg15[%c0_47, %c2, %c0_48] : memref<2x8x256xf32, #tpu.memory_space<vmem>>, vector<2x1x128xf32>
    %115 = vector.shape_cast %114 : vector<2x1x128xf32> to vector<2x128xf32>
    %cst_49 = arith.constant dense<0.000000e+00> : vector<2x128xf32>
    %116 = tpu.matmul %109, %44, %cst_49 {dimension_numbers = #tpu.dot_dimension_numbers<[1], [0], [0], [1], [0, 0, 1, 1], [], []>} : vector<2x32xf32>, vector<32x128xf32>, vector<2x128xf32> -> vector<2x128xf32>
    %117 = arith.addf %115, %116 : vector<2x128xf32>
    %118 = vector.extract_strided_slice %117 {offsets = [0, 0], sizes = [2, 32], strides = [1, 1]} : vector<2x128xf32> to vector<2x32xf32>
    %119 = arith.negf %118 : vector<2x32xf32>
    %120 = math.exp %119 : vector<2x32xf32>
    %cst_50 = arith.constant 1.000000e+00 : f32
    %121 = vector.broadcast %cst_50 : f32 to vector<2x32xf32>
    %122 = arith.addf %121, %120 : vector<2x32xf32>
    %123 = arith.divf %121, %122 : vector<2x32xf32>
    %124 = vector.extract_strided_slice %117 {offsets = [0, 32], sizes = [2, 32], strides = [1, 1]} : vector<2x128xf32> to vector<2x32xf32>
    %125 = arith.negf %124 : vector<2x32xf32>
    %126 = math.exp %125 : vector<2x32xf32>
    %cst_51 = arith.constant 1.000000e+00 : f32
    %127 = vector.broadcast %cst_51 : f32 to vector<2x32xf32>
    %128 = arith.addf %127, %126 : vector<2x32xf32>
    %129 = arith.divf %127, %128 : vector<2x32xf32>
    %130 = vector.extract_strided_slice %117 {offsets = [0, 64], sizes = [2, 32], strides = [1, 1]} : vector<2x128xf32> to vector<2x32xf32>
    %131 = math.tanh %130 : vector<2x32xf32>
    %132 = vector.extract_strided_slice %117 {offsets = [0, 96], sizes = [2, 32], strides = [1, 1]} : vector<2x128xf32> to vector<2x32xf32>
    %133 = arith.negf %132 : vector<2x32xf32>
    %134 = math.exp %133 : vector<2x32xf32>
    %cst_52 = arith.constant 1.000000e+00 : f32
    %135 = vector.broadcast %cst_52 : f32 to vector<2x32xf32>
    %136 = arith.addf %135, %134 : vector<2x32xf32>
    %137 = arith.divf %135, %136 : vector<2x32xf32>
    %138 = arith.mulf %129, %107 : vector<2x32xf32>
    %139 = arith.mulf %123, %131 : vector<2x32xf32>
    %140 = arith.addf %138, %139 : vector<2x32xf32>
    %141 = math.tanh %140 : vector<2x32xf32>
    %142 = arith.mulf %137, %141 : vector<2x32xf32>
    %143 = vector.extract_strided_slice %142 {offsets = [0, 0], sizes = [1, 32], strides = [1, 1]} : vector<2x32xf32> to vector<1x32xf32>
    %c2_53 = arith.constant 2 : index
    %c0_54 = arith.constant 0 : index
    %144 = vector.load %arg16[%c2_53, %c0_54] : memref<16x32xf32, #tpu.memory_space<vmem>>, vector<1x32xf32>
    tpu.vector_store %arg16[%c2_53, %c0_54], %143 {strides = array<i32>} : memref<16x32xf32, #tpu.memory_space<vmem>>, vector<1x32xf32>,
    %145 = vector.extract_strided_slice %142 {offsets = [1, 0], sizes = [1, 32], strides = [1, 1]} : vector<2x32xf32> to vector<1x32xf32>
    %c10 = arith.constant 10 : index
    %c0_55 = arith.constant 0 : index
    %146 = vector.load %arg16[%c10, %c0_55] : memref<16x32xf32, #tpu.memory_space<vmem>>, vector<1x32xf32>
    tpu.vector_store %arg16[%c10, %c0_55], %145 {strides = array<i32>} : memref<16x32xf32, #tpu.memory_space<vmem>>, vector<1x32xf32>,
    %c0_56 = arith.constant 0 : index
    %c3 = arith.constant 3 : index
    %c0_57 = arith.constant 0 : index
    %147 = vector.load %arg15[%c0_56, %c3, %c0_57] : memref<2x8x256xf32, #tpu.memory_space<vmem>>, vector<2x1x128xf32>
    %148 = vector.shape_cast %147 : vector<2x1x128xf32> to vector<2x128xf32>
    %cst_58 = arith.constant dense<0.000000e+00> : vector<2x128xf32>
    %149 = tpu.matmul %142, %44, %cst_58 {dimension_numbers = #tpu.dot_dimension_numbers<[1], [0], [0], [1], [0, 0, 1, 1], [], []>} : vector<2x32xf32>, vector<32x128xf32>, vector<2x128xf32> -> vector<2x128xf32>
    %150 = arith.addf %148, %149 : vector<2x128xf32>
    %151 = vector.extract_strided_slice %150 {offsets = [0, 0], sizes = [2, 32], strides = [1, 1]} : vector<2x128xf32> to vector<2x32xf32>
    %152 = arith.negf %151 : vector<2x32xf32>
    %153 = math.exp %152 : vector<2x32xf32>
    %cst_59 = arith.constant 1.000000e+00 : f32
    %154 = vector.broadcast %cst_59 : f32 to vector<2x32xf32>
    %155 = arith.addf %154, %153 : vector<2x32xf32>
    %156 = arith.divf %154, %155 : vector<2x32xf32>
    %157 = vector.extract_strided_slice %150 {offsets = [0, 32], sizes = [2, 32], strides = [1, 1]} : vector<2x128xf32> to vector<2x32xf32>
    %158 = arith.negf %157 : vector<2x32xf32>
    %159 = math.exp %158 : vector<2x32xf32>
    %cst_60 = arith.constant 1.000000e+00 : f32
    %160 = vector.broadcast %cst_60 : f32 to vector<2x32xf32>
    %161 = arith.addf %160, %159 : vector<2x32xf32>
    %162 = arith.divf %160, %161 : vector<2x32xf32>
    %163 = vector.extract_strided_slice %150 {offsets = [0, 64], sizes = [2, 32], strides = [1, 1]} : vector<2x128xf32> to vector<2x32xf32>
    %164 = math.tanh %163 : vector<2x32xf32>
    %165 = vector.extract_strided_slice %150 {offsets = [0, 96], sizes = [2, 32], strides = [1, 1]} : vector<2x128xf32> to vector<2x32xf32>
    %166 = arith.negf %165 : vector<2x32xf32>
    %167 = math.exp %166 : vector<2x32xf32>
    %cst_61 = arith.constant 1.000000e+00 : f32
    %168 = vector.broadcast %cst_61 : f32 to vector<2x32xf32>
    %169 = arith.addf %168, %167 : vector<2x32xf32>
    %170 = arith.divf %168, %169 : vector<2x32xf32>
    %171 = arith.mulf %162, %140 : vector<2x32xf32>
    %172 = arith.mulf %156, %164 : vector<2x32xf32>
    %173 = arith.addf %171, %172 : vector<2x32xf32>
    %174 = math.tanh %173 : vector<2x32xf32>
    %175 = arith.mulf %170, %174 : vector<2x32xf32>
    %176 = vector.extract_strided_slice %175 {offsets = [0, 0], sizes = [1, 32], strides = [1, 1]} : vector<2x32xf32> to vector<1x32xf32>
    %c3_62 = arith.constant 3 : index
    %c0_63 = arith.constant 0 : index
    %177 = vector.load %arg16[%c3_62, %c0_63] : memref<16x32xf32, #tpu.memory_space<vmem>>, vector<1x32xf32>
    tpu.vector_store %arg16[%c3_62, %c0_63], %176 {strides = array<i32>} : memref<16x32xf32, #tpu.memory_space<vmem>>, vector<1x32xf32>,
    %178 = vector.extract_strided_slice %175 {offsets = [1, 0], sizes = [1, 32], strides = [1, 1]} : vector<2x32xf32> to vector<1x32xf32>
    %c11 = arith.constant 11 : index
    %c0_64 = arith.constant 0 : index
    %179 = vector.load %arg16[%c11, %c0_64] : memref<16x32xf32, #tpu.memory_space<vmem>>, vector<1x32xf32>
    tpu.vector_store %arg16[%c11, %c0_64], %178 {strides = array<i32>} : memref<16x32xf32, #tpu.memory_space<vmem>>, vector<1x32xf32>,
    %c0_65 = arith.constant 0 : index
    %c4 = arith.constant 4 : index
    %c0_66 = arith.constant 0 : index
    %180 = vector.load %arg15[%c0_65, %c4, %c0_66] : memref<2x8x256xf32, #tpu.memory_space<vmem>>, vector<2x1x128xf32>
    %181 = vector.shape_cast %180 : vector<2x1x128xf32> to vector<2x128xf32>
    %cst_67 = arith.constant dense<0.000000e+00> : vector<2x128xf32>
    %182 = tpu.matmul %175, %44, %cst_67 {dimension_numbers = #tpu.dot_dimension_numbers<[1], [0], [0], [1], [0, 0, 1, 1], [], []>} : vector<2x32xf32>, vector<32x128xf32>, vector<2x128xf32> -> vector<2x128xf32>
    %183 = arith.addf %181, %182 : vector<2x128xf32>
    %184 = vector.extract_strided_slice %183 {offsets = [0, 0], sizes = [2, 32], strides = [1, 1]} : vector<2x128xf32> to vector<2x32xf32>
    %185 = arith.negf %184 : vector<2x32xf32>
    %186 = math.exp %185 : vector<2x32xf32>
    %cst_68 = arith.constant 1.000000e+00 : f32
    %187 = vector.broadcast %cst_68 : f32 to vector<2x32xf32>
    %188 = arith.addf %187, %186 : vector<2x32xf32>
    %189 = arith.divf %187, %188 : vector<2x32xf32>
    %190 = vector.extract_strided_slice %183 {offsets = [0, 32], sizes = [2, 32], strides = [1, 1]} : vector<2x128xf32> to vector<2x32xf32>
    %191 = arith.negf %190 : vector<2x32xf32>
    %192 = math.exp %191 : vector<2x32xf32>
    %cst_69 = arith.constant 1.000000e+00 : f32
    %193 = vector.broadcast %cst_69 : f32 to vector<2x32xf32>
    %194 = arith.addf %193, %192 : vector<2x32xf32>
    %195 = arith.divf %193, %194 : vector<2x32xf32>
    %196 = vector.extract_strided_slice %183 {offsets = [0, 64], sizes = [2, 32], strides = [1, 1]} : vector<2x128xf32> to vector<2x32xf32>
    %197 = math.tanh %196 : vector<2x32xf32>
    %198 = vector.extract_strided_slice %183 {offsets = [0, 96], sizes = [2, 32], strides = [1, 1]} : vector<2x128xf32> to vector<2x32xf32>
    %199 = arith.negf %198 : vector<2x32xf32>
    %200 = math.exp %199 : vector<2x32xf32>
    %cst_70 = arith.constant 1.000000e+00 : f32
    %201 = vector.broadcast %cst_70 : f32 to vector<2x32xf32>
    %202 = arith.addf %201, %200 : vector<2x32xf32>
    %203 = arith.divf %201, %202 : vector<2x32xf32>
    %204 = arith.mulf %195, %173 : vector<2x32xf32>
    %205 = arith.mulf %189, %197 : vector<2x32xf32>
    %206 = arith.addf %204, %205 : vector<2x32xf32>
    %207 = math.tanh %206 : vector<2x32xf32>
    %208 = arith.mulf %203, %207 : vector<2x32xf32>
    %209 = vector.extract_strided_slice %208 {offsets = [0, 0], sizes = [1, 32], strides = [1, 1]} : vector<2x32xf32> to vector<1x32xf32>
    %c4_71 = arith.constant 4 : index
    %c0_72 = arith.constant 0 : index
    %210 = vector.load %arg16[%c4_71, %c0_72] : memref<16x32xf32, #tpu.memory_space<vmem>>, vector<1x32xf32>
    tpu.vector_store %arg16[%c4_71, %c0_72], %209 {strides = array<i32>} : memref<16x32xf32, #tpu.memory_space<vmem>>, vector<1x32xf32>,
    %211 = vector.extract_strided_slice %208 {offsets = [1, 0], sizes = [1, 32], strides = [1, 1]} : vector<2x32xf32> to vector<1x32xf32>
    %c12 = arith.constant 12 : index
    %c0_73 = arith.constant 0 : index
    %212 = vector.load %arg16[%c12, %c0_73] : memref<16x32xf32, #tpu.memory_space<vmem>>, vector<1x32xf32>
    tpu.vector_store %arg16[%c12, %c0_73], %211 {strides = array<i32>} : memref<16x32xf32, #tpu.memory_space<vmem>>, vector<1x32xf32>,
    %c0_74 = arith.constant 0 : index
    %c5 = arith.constant 5 : index
    %c0_75 = arith.constant 0 : index
    %213 = vector.load %arg15[%c0_74, %c5, %c0_75] : memref<2x8x256xf32, #tpu.memory_space<vmem>>, vector<2x1x128xf32>
    %214 = vector.shape_cast %213 : vector<2x1x128xf32> to vector<2x128xf32>
    %cst_76 = arith.constant dense<0.000000e+00> : vector<2x128xf32>
    %215 = tpu.matmul %208, %44, %cst_76 {dimension_numbers = #tpu.dot_dimension_numbers<[1], [0], [0], [1], [0, 0, 1, 1], [], []>} : vector<2x32xf32>, vector<32x128xf32>, vector<2x128xf32> -> vector<2x128xf32>
    %216 = arith.addf %214, %215 : vector<2x128xf32>
    %217 = vector.extract_strided_slice %216 {offsets = [0, 0], sizes = [2, 32], strides = [1, 1]} : vector<2x128xf32> to vector<2x32xf32>
    %218 = arith.negf %217 : vector<2x32xf32>
    %219 = math.exp %218 : vector<2x32xf32>
    %cst_77 = arith.constant 1.000000e+00 : f32
    %220 = vector.broadcast %cst_77 : f32 to vector<2x32xf32>
    %221 = arith.addf %220, %219 : vector<2x32xf32>
    %222 = arith.divf %220, %221 : vector<2x32xf32>
    %223 = vector.extract_strided_slice %216 {offsets = [0, 32], sizes = [2, 32], strides = [1, 1]} : vector<2x128xf32> to vector<2x32xf32>
    %224 = arith.negf %223 : vector<2x32xf32>
    %225 = math.exp %224 : vector<2x32xf32>
    %cst_78 = arith.constant 1.000000e+00 : f32
    %226 = vector.broadcast %cst_78 : f32 to vector<2x32xf32>
    %227 = arith.addf %226, %225 : vector<2x32xf32>
    %228 = arith.divf %226, %227 : vector<2x32xf32>
    %229 = vector.extract_strided_slice %216 {offsets = [0, 64], sizes = [2, 32], strides = [1, 1]} : vector<2x128xf32> to vector<2x32xf32>
    %230 = math.tanh %229 : vector<2x32xf32>
    %231 = vector.extract_strided_slice %216 {offsets = [0, 96], sizes = [2, 32], strides = [1, 1]} : vector<2x128xf32> to vector<2x32xf32>
    %232 = arith.negf %231 : vector<2x32xf32>
    %233 = math.exp %232 : vector<2x32xf32>
    %cst_79 = arith.constant 1.000000e+00 : f32
    %234 = vector.broadcast %cst_79 : f32 to vector<2x32xf32>
    %235 = arith.addf %234, %233 : vector<2x32xf32>
    %236 = arith.divf %234, %235 : vector<2x32xf32>
    %237 = arith.mulf %228, %206 : vector<2x32xf32>
    %238 = arith.mulf %222, %230 : vector<2x32xf32>
    %239 = arith.addf %237, %238 : vector<2x32xf32>
    %240 = math.tanh %239 : vector<2x32xf32>
    %241 = arith.mulf %236, %240 : vector<2x32xf32>
    %242 = vector.extract_strided_slice %241 {offsets = [0, 0], sizes = [1, 32], strides = [1, 1]} : vector<2x32xf32> to vector<1x32xf32>
    %c5_80 = arith.constant 5 : index
    %c0_81 = arith.constant 0 : index
    %243 = vector.load %arg16[%c5_80, %c0_81] : memref<16x32xf32, #tpu.memory_space<vmem>>, vector<1x32xf32>
    tpu.vector_store %arg16[%c5_80, %c0_81], %242 {strides = array<i32>} : memref<16x32xf32, #tpu.memory_space<vmem>>, vector<1x32xf32>,
    %244 = vector.extract_strided_slice %241 {offsets = [1, 0], sizes = [1, 32], strides = [1, 1]} : vector<2x32xf32> to vector<1x32xf32>
    %c13 = arith.constant 13 : index
    %c0_82 = arith.constant 0 : index
    %245 = vector.load %arg16[%c13, %c0_82] : memref<16x32xf32, #tpu.memory_space<vmem>>, vector<1x32xf32>
    tpu.vector_store %arg16[%c13, %c0_82], %244 {strides = array<i32>} : memref<16x32xf32, #tpu.memory_space<vmem>>, vector<1x32xf32>,
    %c0_83 = arith.constant 0 : index
    %c6 = arith.constant 6 : index
    %c0_84 = arith.constant 0 : index
    %246 = vector.load %arg15[%c0_83, %c6, %c0_84] : memref<2x8x256xf32, #tpu.memory_space<vmem>>, vector<2x1x128xf32>
    %247 = vector.shape_cast %246 : vector<2x1x128xf32> to vector<2x128xf32>
    %cst_85 = arith.constant dense<0.000000e+00> : vector<2x128xf32>
    %248 = tpu.matmul %241, %44, %cst_85 {dimension_numbers = #tpu.dot_dimension_numbers<[1], [0], [0], [1], [0, 0, 1, 1], [], []>} : vector<2x32xf32>, vector<32x128xf32>, vector<2x128xf32> -> vector<2x128xf32>
    %249 = arith.addf %247, %248 : vector<2x128xf32>
    %250 = vector.extract_strided_slice %249 {offsets = [0, 0], sizes = [2, 32], strides = [1, 1]} : vector<2x128xf32> to vector<2x32xf32>
    %251 = arith.negf %250 : vector<2x32xf32>
    %252 = math.exp %251 : vector<2x32xf32>
    %cst_86 = arith.constant 1.000000e+00 : f32
    %253 = vector.broadcast %cst_86 : f32 to vector<2x32xf32>
    %254 = arith.addf %253, %252 : vector<2x32xf32>
    %255 = arith.divf %253, %254 : vector<2x32xf32>
    %256 = vector.extract_strided_slice %249 {offsets = [0, 32], sizes = [2, 32], strides = [1, 1]} : vector<2x128xf32> to vector<2x32xf32>
    %257 = arith.negf %256 : vector<2x32xf32>
    %258 = math.exp %257 : vector<2x32xf32>
    %cst_87 = arith.constant 1.000000e+00 : f32
    %259 = vector.broadcast %cst_87 : f32 to vector<2x32xf32>
    %260 = arith.addf %259, %258 : vector<2x32xf32>
    %261 = arith.divf %259, %260 : vector<2x32xf32>
    %262 = vector.extract_strided_slice %249 {offsets = [0, 64], sizes = [2, 32], strides = [1, 1]} : vector<2x128xf32> to vector<2x32xf32>
    %263 = math.tanh %262 : vector<2x32xf32>
    %264 = vector.extract_strided_slice %249 {offsets = [0, 96], sizes = [2, 32], strides = [1, 1]} : vector<2x128xf32> to vector<2x32xf32>
    %265 = arith.negf %264 : vector<2x32xf32>
    %266 = math.exp %265 : vector<2x32xf32>
    %cst_88 = arith.constant 1.000000e+00 : f32
    %267 = vector.broadcast %cst_88 : f32 to vector<2x32xf32>
    %268 = arith.addf %267, %266 : vector<2x32xf32>
    %269 = arith.divf %267, %268 : vector<2x32xf32>
    %270 = arith.mulf %261, %239 : vector<2x32xf32>
    %271 = arith.mulf %255, %263 : vector<2x32xf32>
    %272 = arith.addf %270, %271 : vector<2x32xf32>
    %273 = math.tanh %272 : vector<2x32xf32>
    %274 = arith.mulf %269, %273 : vector<2x32xf32>
    %275 = vector.extract_strided_slice %274 {offsets = [0, 0], sizes = [1, 32], strides = [1, 1]} : vector<2x32xf32> to vector<1x32xf32>
    %c6_89 = arith.constant 6 : index
    %c0_90 = arith.constant 0 : index
    %276 = vector.load %arg16[%c6_89, %c0_90] : memref<16x32xf32, #tpu.memory_space<vmem>>, vector<1x32xf32>
    tpu.vector_store %arg16[%c6_89, %c0_90], %275 {strides = array<i32>} : memref<16x32xf32, #tpu.memory_space<vmem>>, vector<1x32xf32>,
    %277 = vector.extract_strided_slice %274 {offsets = [1, 0], sizes = [1, 32], strides = [1, 1]} : vector<2x32xf32> to vector<1x32xf32>
    %c14 = arith.constant 14 : index
    %c0_91 = arith.constant 0 : index
    %278 = vector.load %arg16[%c14, %c0_91] : memref<16x32xf32, #tpu.memory_space<vmem>>, vector<1x32xf32>
    tpu.vector_store %arg16[%c14, %c0_91], %277 {strides = array<i32>} : memref<16x32xf32, #tpu.memory_space<vmem>>, vector<1x32xf32>,
    %c0_92 = arith.constant 0 : index
    %c7 = arith.constant 7 : index
    %c0_93 = arith.constant 0 : index
    %279 = vector.load %arg15[%c0_92, %c7, %c0_93] : memref<2x8x256xf32, #tpu.memory_space<vmem>>, vector<2x1x128xf32>
    %280 = vector.shape_cast %279 : vector<2x1x128xf32> to vector<2x128xf32>
    %cst_94 = arith.constant dense<0.000000e+00> : vector<2x128xf32>
    %281 = tpu.matmul %274, %44, %cst_94 {dimension_numbers = #tpu.dot_dimension_numbers<[1], [0], [0], [1], [0, 0, 1, 1], [], []>} : vector<2x32xf32>, vector<32x128xf32>, vector<2x128xf32> -> vector<2x128xf32>
    %282 = arith.addf %280, %281 : vector<2x128xf32>
    %283 = vector.extract_strided_slice %282 {offsets = [0, 0], sizes = [2, 32], strides = [1, 1]} : vector<2x128xf32> to vector<2x32xf32>
    %284 = arith.negf %283 : vector<2x32xf32>
    %285 = math.exp %284 : vector<2x32xf32>
    %cst_95 = arith.constant 1.000000e+00 : f32
    %286 = vector.broadcast %cst_95 : f32 to vector<2x32xf32>
    %287 = arith.addf %286, %285 : vector<2x32xf32>
    %288 = arith.divf %286, %287 : vector<2x32xf32>
    %289 = vector.extract_strided_slice %282 {offsets = [0, 32], sizes = [2, 32], strides = [1, 1]} : vector<2x128xf32> to vector<2x32xf32>
    %290 = arith.negf %289 : vector<2x32xf32>
    %291 = math.exp %290 : vector<2x32xf32>
    %cst_96 = arith.constant 1.000000e+00 : f32
    %292 = vector.broadcast %cst_96 : f32 to vector<2x32xf32>
    %293 = arith.addf %292, %291 : vector<2x32xf32>
    %294 = arith.divf %292, %293 : vector<2x32xf32>
    %295 = vector.extract_strided_slice %282 {offsets = [0, 64], sizes = [2, 32], strides = [1, 1]} : vector<2x128xf32> to vector<2x32xf32>
    %296 = math.tanh %295 : vector<2x32xf32>
    %297 = vector.extract_strided_slice %282 {offsets = [0, 96], sizes = [2, 32], strides = [1, 1]} : vector<2x128xf32> to vector<2x32xf32>
    %298 = arith.negf %297 : vector<2x32xf32>
    %299 = math.exp %298 : vector<2x32xf32>
    %cst_97 = arith.constant 1.000000e+00 : f32
    %300 = vector.broadcast %cst_97 : f32 to vector<2x32xf32>
    %301 = arith.addf %300, %299 : vector<2x32xf32>
    %302 = arith.divf %300, %301 : vector<2x32xf32>
    %303 = arith.mulf %294, %272 : vector<2x32xf32>
    %304 = arith.mulf %288, %296 : vector<2x32xf32>
    %305 = arith.addf %303, %304 : vector<2x32xf32>
    %306 = math.tanh %305 : vector<2x32xf32>
    %307 = arith.mulf %302, %306 : vector<2x32xf32>
    %308 = vector.extract_strided_slice %307 {offsets = [0, 0], sizes = [1, 32], strides = [1, 1]} : vector<2x32xf32> to vector<1x32xf32>
    %c7_98 = arith.constant 7 : index
    %c0_99 = arith.constant 0 : index
    %309 = vector.load %arg16[%c7_98, %c0_99] : memref<16x32xf32, #tpu.memory_space<vmem>>, vector<1x32xf32>
    tpu.vector_store %arg16[%c7_98, %c0_99], %308 {strides = array<i32>} : memref<16x32xf32, #tpu.memory_space<vmem>>, vector<1x32xf32>,
    %310 = vector.extract_strided_slice %307 {offsets = [1, 0], sizes = [1, 32], strides = [1, 1]} : vector<2x32xf32> to vector<1x32xf32>
    %c15 = arith.constant 15 : index
    %c0_100 = arith.constant 0 : index
    %311 = vector.load %arg16[%c15, %c0_100] : memref<16x32xf32, #tpu.memory_space<vmem>>, vector<1x32xf32>
    tpu.vector_store %arg16[%c15, %c0_100], %310 {strides = array<i32>} : memref<16x32xf32, #tpu.memory_space<vmem>>, vector<1x32xf32>,
    %cst_101 = arith.constant 0.000000e+00 : f32
    %312 = vector.broadcast %cst_101 : f32 to vector<2x32xf32>
    %cst_102 = arith.constant 0.000000e+00 : f32
    %313 = vector.broadcast %cst_102 : f32 to vector<2x32xf32>
    %c0_103 = arith.constant 0 : index
    %c7_104 = arith.constant 7 : index
    %c128 = arith.constant 128 : index
    %314 = vector.load %arg15[%c0_103, %c7_104, %c128] : memref<2x8x256xf32, #tpu.memory_space<vmem>>, vector<2x1x128xf32>
    %315 = vector.shape_cast %314 : vector<2x1x128xf32> to vector<2x128xf32>
    %cst_105 = arith.constant dense<0.000000e+00> : vector<2x128xf32>
    %316 = tpu.matmul %312, %45, %cst_105 {dimension_numbers = #tpu.dot_dimension_numbers<[1], [0], [0], [1], [0, 0, 1, 1], [], []>} : vector<2x32xf32>, vector<32x128xf32>, vector<2x128xf32> -> vector<2x128xf32>
    %317 = arith.addf %315, %316 : vector<2x128xf32>
    %318 = vector.extract_strided_slice %317 {offsets = [0, 0], sizes = [2, 32], strides = [1, 1]} : vector<2x128xf32> to vector<2x32xf32>
    %319 = arith.negf %318 : vector<2x32xf32>
    %320 = math.exp %319 : vector<2x32xf32>
    %cst_106 = arith.constant 1.000000e+00 : f32
    %321 = vector.broadcast %cst_106 : f32 to vector<2x32xf32>
    %322 = arith.addf %321, %320 : vector<2x32xf32>
    %323 = arith.divf %321, %322 : vector<2x32xf32>
    %324 = vector.extract_strided_slice %317 {offsets = [0, 32], sizes = [2, 32], strides = [1, 1]} : vector<2x128xf32> to vector<2x32xf32>
    %325 = arith.negf %324 : vector<2x32xf32>
    %326 = math.exp %325 : vector<2x32xf32>
    %cst_107 = arith.constant 1.000000e+00 : f32
    %327 = vector.broadcast %cst_107 : f32 to vector<2x32xf32>
    %328 = arith.addf %327, %326 : vector<2x32xf32>
    %329 = arith.divf %327, %328 : vector<2x32xf32>
    %330 = vector.extract_strided_slice %317 {offsets = [0, 64], sizes = [2, 32], strides = [1, 1]} : vector<2x128xf32> to vector<2x32xf32>
    %331 = math.tanh %330 : vector<2x32xf32>
    %332 = vector.extract_strided_slice %317 {offsets = [0, 96], sizes = [2, 32], strides = [1, 1]} : vector<2x128xf32> to vector<2x32xf32>
    %333 = arith.negf %332 : vector<2x32xf32>
    %334 = math.exp %333 : vector<2x32xf32>
    %cst_108 = arith.constant 1.000000e+00 : f32
    %335 = vector.broadcast %cst_108 : f32 to vector<2x32xf32>
    %336 = arith.addf %335, %334 : vector<2x32xf32>
    %337 = arith.divf %335, %336 : vector<2x32xf32>
    %338 = arith.mulf %329, %313 : vector<2x32xf32>
    %339 = arith.mulf %323, %331 : vector<2x32xf32>
    %340 = arith.addf %338, %339 : vector<2x32xf32>
    %341 = math.tanh %340 : vector<2x32xf32>
    %342 = arith.mulf %337, %341 : vector<2x32xf32>
    %343 = vector.extract_strided_slice %342 {offsets = [0, 0], sizes = [1, 32], strides = [1, 1]} : vector<2x32xf32> to vector<1x32xf32>
    %c7_109 = arith.constant 7 : index
    %c0_110 = arith.constant 0 : index
    %344 = vector.load %arg17[%c7_109, %c0_110] : memref<16x32xf32, #tpu.memory_space<vmem>>, vector<1x32xf32>
    tpu.vector_store %arg17[%c7_109, %c0_110], %343 {strides = array<i32>} : memref<16x32xf32, #tpu.memory_space<vmem>>, vector<1x32xf32>,
    %345 = vector.extract_strided_slice %342 {offsets = [1, 0], sizes = [1, 32], strides = [1, 1]} : vector<2x32xf32> to vector<1x32xf32>
    %c15_111 = arith.constant 15 : index
    %c0_112 = arith.constant 0 : index
    %346 = vector.load %arg17[%c15_111, %c0_112] : memref<16x32xf32, #tpu.memory_space<vmem>>, vector<1x32xf32>
    tpu.vector_store %arg17[%c15_111, %c0_112], %345 {strides = array<i32>} : memref<16x32xf32, #tpu.memory_space<vmem>>, vector<1x32xf32>,
    %c0_113 = arith.constant 0 : index
    %c6_114 = arith.constant 6 : index
    %c128_115 = arith.constant 128 : index
    %347 = vector.load %arg15[%c0_113, %c6_114, %c128_115] : memref<2x8x256xf32, #tpu.memory_space<vmem>>, vector<2x1x128xf32>
    %348 = vector.shape_cast %347 : vector<2x1x128xf32> to vector<2x128xf32>
    %cst_116 = arith.constant dense<0.000000e+00> : vector<2x128xf32>
    %349 = tpu.matmul %342, %45, %cst_116 {dimension_numbers = #tpu.dot_dimension_numbers<[1], [0], [0], [1], [0, 0, 1, 1], [], []>} : vector<2x32xf32>, vector<32x128xf32>, vector<2x128xf32> -> vector<2x128xf32>
    %350 = arith.addf %348, %349 : vector<2x128xf32>
    %351 = vector.extract_strided_slice %350 {offsets = [0, 0], sizes = [2, 32], strides = [1, 1]} : vector<2x128xf32> to vector<2x32xf32>
    %352 = arith.negf %351 : vector<2x32xf32>
    %353 = math.exp %352 : vector<2x32xf32>
    %cst_117 = arith.constant 1.000000e+00 : f32
    %354 = vector.broadcast %cst_117 : f32 to vector<2x32xf32>
    %355 = arith.addf %354, %353 : vector<2x32xf32>
    %356 = arith.divf %354, %355 : vector<2x32xf32>
    %357 = vector.extract_strided_slice %350 {offsets = [0, 32], sizes = [2, 32], strides = [1, 1]} : vector<2x128xf32> to vector<2x32xf32>
    %358 = arith.negf %357 : vector<2x32xf32>
    %359 = math.exp %358 : vector<2x32xf32>
    %cst_118 = arith.constant 1.000000e+00 : f32
    %360 = vector.broadcast %cst_118 : f32 to vector<2x32xf32>
    %361 = arith.addf %360, %359 : vector<2x32xf32>
    %362 = arith.divf %360, %361 : vector<2x32xf32>
    %363 = vector.extract_strided_slice %350 {offsets = [0, 64], sizes = [2, 32], strides = [1, 1]} : vector<2x128xf32> to vector<2x32xf32>
    %364 = math.tanh %363 : vector<2x32xf32>
    %365 = vector.extract_strided_slice %350 {offsets = [0, 96], sizes = [2, 32], strides = [1, 1]} : vector<2x128xf32> to vector<2x32xf32>
    %366 = arith.negf %365 : vector<2x32xf32>
    %367 = math.exp %366 : vector<2x32xf32>
    %cst_119 = arith.constant 1.000000e+00 : f32
    %368 = vector.broadcast %cst_119 : f32 to vector<2x32xf32>
    %369 = arith.addf %368, %367 : vector<2x32xf32>
    %370 = arith.divf %368, %369 : vector<2x32xf32>
    %371 = arith.mulf %362, %340 : vector<2x32xf32>
    %372 = arith.mulf %356, %364 : vector<2x32xf32>
    %373 = arith.addf %371, %372 : vector<2x32xf32>
    %374 = math.tanh %373 : vector<2x32xf32>
    %375 = arith.mulf %370, %374 : vector<2x32xf32>
    %376 = vector.extract_strided_slice %375 {offsets = [0, 0], sizes = [1, 32], strides = [1, 1]} : vector<2x32xf32> to vector<1x32xf32>
    %c6_120 = arith.constant 6 : index
    %c0_121 = arith.constant 0 : index
    %377 = vector.load %arg17[%c6_120, %c0_121] : memref<16x32xf32, #tpu.memory_space<vmem>>, vector<1x32xf32>
    tpu.vector_store %arg17[%c6_120, %c0_121], %376 {strides = array<i32>} : memref<16x32xf32, #tpu.memory_space<vmem>>, vector<1x32xf32>,
    %378 = vector.extract_strided_slice %375 {offsets = [1, 0], sizes = [1, 32], strides = [1, 1]} : vector<2x32xf32> to vector<1x32xf32>
    %c14_122 = arith.constant 14 : index
    %c0_123 = arith.constant 0 : index
    %379 = vector.load %arg17[%c14_122, %c0_123] : memref<16x32xf32, #tpu.memory_space<vmem>>, vector<1x32xf32>
    tpu.vector_store %arg17[%c14_122, %c0_123], %378 {strides = array<i32>} : memref<16x32xf32, #tpu.memory_space<vmem>>, vector<1x32xf32>,
    %c0_124 = arith.constant 0 : index
    %c5_125 = arith.constant 5 : index
    %c128_126 = arith.constant 128 : index
    %380 = vector.load %arg15[%c0_124, %c5_125, %c128_126] : memref<2x8x256xf32, #tpu.memory_space<vmem>>, vector<2x1x128xf32>
    %381 = vector.shape_cast %380 : vector<2x1x128xf32> to vector<2x128xf32>
    %cst_127 = arith.constant dense<0.000000e+00> : vector<2x128xf32>
    %382 = tpu.matmul %375, %45, %cst_127 {dimension_numbers = #tpu.dot_dimension_numbers<[1], [0], [0], [1], [0, 0, 1, 1], [], []>} : vector<2x32xf32>, vector<32x128xf32>, vector<2x128xf32> -> vector<2x128xf32>
    %383 = arith.addf %381, %382 : vector<2x128xf32>
    %384 = vector.extract_strided_slice %383 {offsets = [0, 0], sizes = [2, 32], strides = [1, 1]} : vector<2x128xf32> to vector<2x32xf32>
    %385 = arith.negf %384 : vector<2x32xf32>
    %386 = math.exp %385 : vector<2x32xf32>
    %cst_128 = arith.constant 1.000000e+00 : f32
    %387 = vector.broadcast %cst_128 : f32 to vector<2x32xf32>
    %388 = arith.addf %387, %386 : vector<2x32xf32>
    %389 = arith.divf %387, %388 : vector<2x32xf32>
    %390 = vector.extract_strided_slice %383 {offsets = [0, 32], sizes = [2, 32], strides = [1, 1]} : vector<2x128xf32> to vector<2x32xf32>
    %391 = arith.negf %390 : vector<2x32xf32>
    %392 = math.exp %391 : vector<2x32xf32>
    %cst_129 = arith.constant 1.000000e+00 : f32
    %393 = vector.broadcast %cst_129 : f32 to vector<2x32xf32>
    %394 = arith.addf %393, %392 : vector<2x32xf32>
    %395 = arith.divf %393, %394 : vector<2x32xf32>
    %396 = vector.extract_strided_slice %383 {offsets = [0, 64], sizes = [2, 32], strides = [1, 1]} : vector<2x128xf32> to vector<2x32xf32>
    %397 = math.tanh %396 : vector<2x32xf32>
    %398 = vector.extract_strided_slice %383 {offsets = [0, 96], sizes = [2, 32], strides = [1, 1]} : vector<2x128xf32> to vector<2x32xf32>
    %399 = arith.negf %398 : vector<2x32xf32>
    %400 = math.exp %399 : vector<2x32xf32>
    %cst_130 = arith.constant 1.000000e+00 : f32
    %401 = vector.broadcast %cst_130 : f32 to vector<2x32xf32>
    %402 = arith.addf %401, %400 : vector<2x32xf32>
    %403 = arith.divf %401, %402 : vector<2x32xf32>
    %404 = arith.mulf %395, %373 : vector<2x32xf32>
    %405 = arith.mulf %389, %397 : vector<2x32xf32>
    %406 = arith.addf %404, %405 : vector<2x32xf32>
    %407 = math.tanh %406 : vector<2x32xf32>
    %408 = arith.mulf %403, %407 : vector<2x32xf32>
    %409 = vector.extract_strided_slice %408 {offsets = [0, 0], sizes = [1, 32], strides = [1, 1]} : vector<2x32xf32> to vector<1x32xf32>
    %c5_131 = arith.constant 5 : index
    %c0_132 = arith.constant 0 : index
    %410 = vector.load %arg17[%c5_131, %c0_132] : memref<16x32xf32, #tpu.memory_space<vmem>>, vector<1x32xf32>
    tpu.vector_store %arg17[%c5_131, %c0_132], %409 {strides = array<i32>} : memref<16x32xf32, #tpu.memory_space<vmem>>, vector<1x32xf32>,
    %411 = vector.extract_strided_slice %408 {offsets = [1, 0], sizes = [1, 32], strides = [1, 1]} : vector<2x32xf32> to vector<1x32xf32>
    %c13_133 = arith.constant 13 : index
    %c0_134 = arith.constant 0 : index
    %412 = vector.load %arg17[%c13_133, %c0_134] : memref<16x32xf32, #tpu.memory_space<vmem>>, vector<1x32xf32>
    tpu.vector_store %arg17[%c13_133, %c0_134], %411 {strides = array<i32>} : memref<16x32xf32, #tpu.memory_space<vmem>>, vector<1x32xf32>,
    %c0_135 = arith.constant 0 : index
    %c4_136 = arith.constant 4 : index
    %c128_137 = arith.constant 128 : index
    %413 = vector.load %arg15[%c0_135, %c4_136, %c128_137] : memref<2x8x256xf32, #tpu.memory_space<vmem>>, vector<2x1x128xf32>
    %414 = vector.shape_cast %413 : vector<2x1x128xf32> to vector<2x128xf32>
    %cst_138 = arith.constant dense<0.000000e+00> : vector<2x128xf32>
    %415 = tpu.matmul %408, %45, %cst_138 {dimension_numbers = #tpu.dot_dimension_numbers<[1], [0], [0], [1], [0, 0, 1, 1], [], []>} : vector<2x32xf32>, vector<32x128xf32>, vector<2x128xf32> -> vector<2x128xf32>
    %416 = arith.addf %414, %415 : vector<2x128xf32>
    %417 = vector.extract_strided_slice %416 {offsets = [0, 0], sizes = [2, 32], strides = [1, 1]} : vector<2x128xf32> to vector<2x32xf32>
    %418 = arith.negf %417 : vector<2x32xf32>
    %419 = math.exp %418 : vector<2x32xf32>
    %cst_139 = arith.constant 1.000000e+00 : f32
    %420 = vector.broadcast %cst_139 : f32 to vector<2x32xf32>
    %421 = arith.addf %420, %419 : vector<2x32xf32>
    %422 = arith.divf %420, %421 : vector<2x32xf32>
    %423 = vector.extract_strided_slice %416 {offsets = [0, 32], sizes = [2, 32], strides = [1, 1]} : vector<2x128xf32> to vector<2x32xf32>
    %424 = arith.negf %423 : vector<2x32xf32>
    %425 = math.exp %424 : vector<2x32xf32>
    %cst_140 = arith.constant 1.000000e+00 : f32
    %426 = vector.broadcast %cst_140 : f32 to vector<2x32xf32>
    %427 = arith.addf %426, %425 : vector<2x32xf32>
    %428 = arith.divf %426, %427 : vector<2x32xf32>
    %429 = vector.extract_strided_slice %416 {offsets = [0, 64], sizes = [2, 32], strides = [1, 1]} : vector<2x128xf32> to vector<2x32xf32>
    %430 = math.tanh %429 : vector<2x32xf32>
    %431 = vector.extract_strided_slice %416 {offsets = [0, 96], sizes = [2, 32], strides = [1, 1]} : vector<2x128xf32> to vector<2x32xf32>
    %432 = arith.negf %431 : vector<2x32xf32>
    %433 = math.exp %432 : vector<2x32xf32>
    %cst_141 = arith.constant 1.000000e+00 : f32
    %434 = vector.broadcast %cst_141 : f32 to vector<2x32xf32>
    %435 = arith.addf %434, %433 : vector<2x32xf32>
    %436 = arith.divf %434, %435 : vector<2x32xf32>
    %437 = arith.mulf %428, %406 : vector<2x32xf32>
    %438 = arith.mulf %422, %430 : vector<2x32xf32>
    %439 = arith.addf %437, %438 : vector<2x32xf32>
    %440 = math.tanh %439 : vector<2x32xf32>
    %441 = arith.mulf %436, %440 : vector<2x32xf32>
    %442 = vector.extract_strided_slice %441 {offsets = [0, 0], sizes = [1, 32], strides = [1, 1]} : vector<2x32xf32> to vector<1x32xf32>
    %c4_142 = arith.constant 4 : index
    %c0_143 = arith.constant 0 : index
    %443 = vector.load %arg17[%c4_142, %c0_143] : memref<16x32xf32, #tpu.memory_space<vmem>>, vector<1x32xf32>
    tpu.vector_store %arg17[%c4_142, %c0_143], %442 {strides = array<i32>} : memref<16x32xf32, #tpu.memory_space<vmem>>, vector<1x32xf32>,
    %444 = vector.extract_strided_slice %441 {offsets = [1, 0], sizes = [1, 32], strides = [1, 1]} : vector<2x32xf32> to vector<1x32xf32>
    %c12_144 = arith.constant 12 : index
    %c0_145 = arith.constant 0 : index
    %445 = vector.load %arg17[%c12_144, %c0_145] : memref<16x32xf32, #tpu.memory_space<vmem>>, vector<1x32xf32>
    tpu.vector_store %arg17[%c12_144, %c0_145], %444 {strides = array<i32>} : memref<16x32xf32, #tpu.memory_space<vmem>>, vector<1x32xf32>,
    %c0_146 = arith.constant 0 : index
    %c3_147 = arith.constant 3 : index
    %c128_148 = arith.constant 128 : index
    %446 = vector.load %arg15[%c0_146, %c3_147, %c128_148] : memref<2x8x256xf32, #tpu.memory_space<vmem>>, vector<2x1x128xf32>
    %447 = vector.shape_cast %446 : vector<2x1x128xf32> to vector<2x128xf32>
    %cst_149 = arith.constant dense<0.000000e+00> : vector<2x128xf32>
    %448 = tpu.matmul %441, %45, %cst_149 {dimension_numbers = #tpu.dot_dimension_numbers<[1], [0], [0], [1], [0, 0, 1, 1], [], []>} : vector<2x32xf32>, vector<32x128xf32>, vector<2x128xf32> -> vector<2x128xf32>
    %449 = arith.addf %447, %448 : vector<2x128xf32>
    %450 = vector.extract_strided_slice %449 {offsets = [0, 0], sizes = [2, 32], strides = [1, 1]} : vector<2x128xf32> to vector<2x32xf32>
    %451 = arith.negf %450 : vector<2x32xf32>
    %452 = math.exp %451 : vector<2x32xf32>
    %cst_150 = arith.constant 1.000000e+00 : f32
    %453 = vector.broadcast %cst_150 : f32 to vector<2x32xf32>
    %454 = arith.addf %453, %452 : vector<2x32xf32>
    %455 = arith.divf %453, %454 : vector<2x32xf32>
    %456 = vector.extract_strided_slice %449 {offsets = [0, 32], sizes = [2, 32], strides = [1, 1]} : vector<2x128xf32> to vector<2x32xf32>
    %457 = arith.negf %456 : vector<2x32xf32>
    %458 = math.exp %457 : vector<2x32xf32>
    %cst_151 = arith.constant 1.000000e+00 : f32
    %459 = vector.broadcast %cst_151 : f32 to vector<2x32xf32>
    %460 = arith.addf %459, %458 : vector<2x32xf32>
    %461 = arith.divf %459, %460 : vector<2x32xf32>
    %462 = vector.extract_strided_slice %449 {offsets = [0, 64], sizes = [2, 32], strides = [1, 1]} : vector<2x128xf32> to vector<2x32xf32>
    %463 = math.tanh %462 : vector<2x32xf32>
    %464 = vector.extract_strided_slice %449 {offsets = [0, 96], sizes = [2, 32], strides = [1, 1]} : vector<2x128xf32> to vector<2x32xf32>
    %465 = arith.negf %464 : vector<2x32xf32>
    %466 = math.exp %465 : vector<2x32xf32>
    %cst_152 = arith.constant 1.000000e+00 : f32
    %467 = vector.broadcast %cst_152 : f32 to vector<2x32xf32>
    %468 = arith.addf %467, %466 : vector<2x32xf32>
    %469 = arith.divf %467, %468 : vector<2x32xf32>
    %470 = arith.mulf %461, %439 : vector<2x32xf32>
    %471 = arith.mulf %455, %463 : vector<2x32xf32>
    %472 = arith.addf %470, %471 : vector<2x32xf32>
    %473 = math.tanh %472 : vector<2x32xf32>
    %474 = arith.mulf %469, %473 : vector<2x32xf32>
    %475 = vector.extract_strided_slice %474 {offsets = [0, 0], sizes = [1, 32], strides = [1, 1]} : vector<2x32xf32> to vector<1x32xf32>
    %c3_153 = arith.constant 3 : index
    %c0_154 = arith.constant 0 : index
    %476 = vector.load %arg17[%c3_153, %c0_154] : memref<16x32xf32, #tpu.memory_space<vmem>>, vector<1x32xf32>
    tpu.vector_store %arg17[%c3_153, %c0_154], %475 {strides = array<i32>} : memref<16x32xf32, #tpu.memory_space<vmem>>, vector<1x32xf32>,
    %477 = vector.extract_strided_slice %474 {offsets = [1, 0], sizes = [1, 32], strides = [1, 1]} : vector<2x32xf32> to vector<1x32xf32>
    %c11_155 = arith.constant 11 : index
    %c0_156 = arith.constant 0 : index
    %478 = vector.load %arg17[%c11_155, %c0_156] : memref<16x32xf32, #tpu.memory_space<vmem>>, vector<1x32xf32>
    tpu.vector_store %arg17[%c11_155, %c0_156], %477 {strides = array<i32>} : memref<16x32xf32, #tpu.memory_space<vmem>>, vector<1x32xf32>,
    %c0_157 = arith.constant 0 : index
    %c2_158 = arith.constant 2 : index
    %c128_159 = arith.constant 128 : index
    %479 = vector.load %arg15[%c0_157, %c2_158, %c128_159] : memref<2x8x256xf32, #tpu.memory_space<vmem>>, vector<2x1x128xf32>
    %480 = vector.shape_cast %479 : vector<2x1x128xf32> to vector<2x128xf32>
    %cst_160 = arith.constant dense<0.000000e+00> : vector<2x128xf32>
    %481 = tpu.matmul %474, %45, %cst_160 {dimension_numbers = #tpu.dot_dimension_numbers<[1], [0], [0], [1], [0, 0, 1, 1], [], []>} : vector<2x32xf32>, vector<32x128xf32>, vector<2x128xf32> -> vector<2x128xf32>
    %482 = arith.addf %480, %481 : vector<2x128xf32>
    %483 = vector.extract_strided_slice %482 {offsets = [0, 0], sizes = [2, 32], strides = [1, 1]} : vector<2x128xf32> to vector<2x32xf32>
    %484 = arith.negf %483 : vector<2x32xf32>
    %485 = math.exp %484 : vector<2x32xf32>
    %cst_161 = arith.constant 1.000000e+00 : f32
    %486 = vector.broadcast %cst_161 : f32 to vector<2x32xf32>
    %487 = arith.addf %486, %485 : vector<2x32xf32>
    %488 = arith.divf %486, %487 : vector<2x32xf32>
    %489 = vector.extract_strided_slice %482 {offsets = [0, 32], sizes = [2, 32], strides = [1, 1]} : vector<2x128xf32> to vector<2x32xf32>
    %490 = arith.negf %489 : vector<2x32xf32>
    %491 = math.exp %490 : vector<2x32xf32>
    %cst_162 = arith.constant 1.000000e+00 : f32
    %492 = vector.broadcast %cst_162 : f32 to vector<2x32xf32>
    %493 = arith.addf %492, %491 : vector<2x32xf32>
    %494 = arith.divf %492, %493 : vector<2x32xf32>
    %495 = vector.extract_strided_slice %482 {offsets = [0, 64], sizes = [2, 32], strides = [1, 1]} : vector<2x128xf32> to vector<2x32xf32>
    %496 = math.tanh %495 : vector<2x32xf32>
    %497 = vector.extract_strided_slice %482 {offsets = [0, 96], sizes = [2, 32], strides = [1, 1]} : vector<2x128xf32> to vector<2x32xf32>
    %498 = arith.negf %497 : vector<2x32xf32>
    %499 = math.exp %498 : vector<2x32xf32>
    %cst_163 = arith.constant 1.000000e+00 : f32
    %500 = vector.broadcast %cst_163 : f32 to vector<2x32xf32>
    %501 = arith.addf %500, %499 : vector<2x32xf32>
    %502 = arith.divf %500, %501 : vector<2x32xf32>
    %503 = arith.mulf %494, %472 : vector<2x32xf32>
    %504 = arith.mulf %488, %496 : vector<2x32xf32>
    %505 = arith.addf %503, %504 : vector<2x32xf32>
    %506 = math.tanh %505 : vector<2x32xf32>
    %507 = arith.mulf %502, %506 : vector<2x32xf32>
    %508 = vector.extract_strided_slice %507 {offsets = [0, 0], sizes = [1, 32], strides = [1, 1]} : vector<2x32xf32> to vector<1x32xf32>
    %c2_164 = arith.constant 2 : index
    %c0_165 = arith.constant 0 : index
    %509 = vector.load %arg17[%c2_164, %c0_165] : memref<16x32xf32, #tpu.memory_space<vmem>>, vector<1x32xf32>
    tpu.vector_store %arg17[%c2_164, %c0_165], %508 {strides = array<i32>} : memref<16x32xf32, #tpu.memory_space<vmem>>, vector<1x32xf32>,
    %510 = vector.extract_strided_slice %507 {offsets = [1, 0], sizes = [1, 32], strides = [1, 1]} : vector<2x32xf32> to vector<1x32xf32>
    %c10_166 = arith.constant 10 : index
    %c0_167 = arith.constant 0 : index
    %511 = vector.load %arg17[%c10_166, %c0_167] : memref<16x32xf32, #tpu.memory_space<vmem>>, vector<1x32xf32>
    tpu.vector_store %arg17[%c10_166, %c0_167], %510 {strides = array<i32>} : memref<16x32xf32, #tpu.memory_space<vmem>>, vector<1x32xf32>,
    %c0_168 = arith.constant 0 : index
    %c1_169 = arith.constant 1 : index
    %c128_170 = arith.constant 128 : index
    %512 = vector.load %arg15[%c0_168, %c1_169, %c128_170] : memref<2x8x256xf32, #tpu.memory_space<vmem>>, vector<2x1x128xf32>
    %513 = vector.shape_cast %512 : vector<2x1x128xf32> to vector<2x128xf32>
    %cst_171 = arith.constant dense<0.000000e+00> : vector<2x128xf32>
    %514 = tpu.matmul %507, %45, %cst_171 {dimension_numbers = #tpu.dot_dimension_numbers<[1], [0], [0], [1], [0, 0, 1, 1], [], []>} : vector<2x32xf32>, vector<32x128xf32>, vector<2x128xf32> -> vector<2x128xf32>
    %515 = arith.addf %513, %514 : vector<2x128xf32>
    %516 = vector.extract_strided_slice %515 {offsets = [0, 0], sizes = [2, 32], strides = [1, 1]} : vector<2x128xf32> to vector<2x32xf32>
    %517 = arith.negf %516 : vector<2x32xf32>
    %518 = math.exp %517 : vector<2x32xf32>
    %cst_172 = arith.constant 1.000000e+00 : f32
    %519 = vector.broadcast %cst_172 : f32 to vector<2x32xf32>
    %520 = arith.addf %519, %518 : vector<2x32xf32>
    %521 = arith.divf %519, %520 : vector<2x32xf32>
    %522 = vector.extract_strided_slice %515 {offsets = [0, 32], sizes = [2, 32], strides = [1, 1]} : vector<2x128xf32> to vector<2x32xf32>
    %523 = arith.negf %522 : vector<2x32xf32>
    %524 = math.exp %523 : vector<2x32xf32>
    %cst_173 = arith.constant 1.000000e+00 : f32
    %525 = vector.broadcast %cst_173 : f32 to vector<2x32xf32>
    %526 = arith.addf %525, %524 : vector<2x32xf32>
    %527 = arith.divf %525, %526 : vector<2x32xf32>
    %528 = vector.extract_strided_slice %515 {offsets = [0, 64], sizes = [2, 32], strides = [1, 1]} : vector<2x128xf32> to vector<2x32xf32>
    %529 = math.tanh %528 : vector<2x32xf32>
    %530 = vector.extract_strided_slice %515 {offsets = [0, 96], sizes = [2, 32], strides = [1, 1]} : vector<2x128xf32> to vector<2x32xf32>
    %531 = arith.negf %530 : vector<2x32xf32>
    %532 = math.exp %531 : vector<2x32xf32>
    %cst_174 = arith.constant 1.000000e+00 : f32
    %533 = vector.broadcast %cst_174 : f32 to vector<2x32xf32>
    %534 = arith.addf %533, %532 : vector<2x32xf32>
    %535 = arith.divf %533, %534 : vector<2x32xf32>
    %536 = arith.mulf %527, %505 : vector<2x32xf32>
    %537 = arith.mulf %521, %529 : vector<2x32xf32>
    %538 = arith.addf %536, %537 : vector<2x32xf32>
    %539 = math.tanh %538 : vector<2x32xf32>
    %540 = arith.mulf %535, %539 : vector<2x32xf32>
    %541 = vector.extract_strided_slice %540 {offsets = [0, 0], sizes = [1, 32], strides = [1, 1]} : vector<2x32xf32> to vector<1x32xf32>
    %c1_175 = arith.constant 1 : index
    %c0_176 = arith.constant 0 : index
    %542 = vector.load %arg17[%c1_175, %c0_176] : memref<16x32xf32, #tpu.memory_space<vmem>>, vector<1x32xf32>
    tpu.vector_store %arg17[%c1_175, %c0_176], %541 {strides = array<i32>} : memref<16x32xf32, #tpu.memory_space<vmem>>, vector<1x32xf32>,
    %543 = vector.extract_strided_slice %540 {offsets = [1, 0], sizes = [1, 32], strides = [1, 1]} : vector<2x32xf32> to vector<1x32xf32>
    %c9_177 = arith.constant 9 : index
    %c0_178 = arith.constant 0 : index
    %544 = vector.load %arg17[%c9_177, %c0_178] : memref<16x32xf32, #tpu.memory_space<vmem>>, vector<1x32xf32>
    tpu.vector_store %arg17[%c9_177, %c0_178], %543 {strides = array<i32>} : memref<16x32xf32, #tpu.memory_space<vmem>>, vector<1x32xf32>,
    %c0_179 = arith.constant 0 : index
    %c0_180 = arith.constant 0 : index
    %c128_181 = arith.constant 128 : index
    %545 = vector.load %arg15[%c0_179, %c0_180, %c128_181] : memref<2x8x256xf32, #tpu.memory_space<vmem>>, vector<2x1x128xf32>
    %546 = vector.shape_cast %545 : vector<2x1x128xf32> to vector<2x128xf32>
    %cst_182 = arith.constant dense<0.000000e+00> : vector<2x128xf32>
    %547 = tpu.matmul %540, %45, %cst_182 {dimension_numbers = #tpu.dot_dimension_numbers<[1], [0], [0], [1], [0, 0, 1, 1], [], []>} : vector<2x32xf32>, vector<32x128xf32>, vector<2x128xf32> -> vector<2x128xf32>
    %548 = arith.addf %546, %547 : vector<2x128xf32>
    %549 = vector.extract_strided_slice %548 {offsets = [0, 0], sizes = [2, 32], strides = [1, 1]} : vector<2x128xf32> to vector<2x32xf32>
    %550 = arith.negf %549 : vector<2x32xf32>
    %551 = math.exp %550 : vector<2x32xf32>
    %cst_183 = arith.constant 1.000000e+00 : f32
    %552 = vector.broadcast %cst_183 : f32 to vector<2x32xf32>
    %553 = arith.addf %552, %551 : vector<2x32xf32>
    %554 = arith.divf %552, %553 : vector<2x32xf32>
    %555 = vector.extract_strided_slice %548 {offsets = [0, 32], sizes = [2, 32], strides = [1, 1]} : vector<2x128xf32> to vector<2x32xf32>
    %556 = arith.negf %555 : vector<2x32xf32>
    %557 = math.exp %556 : vector<2x32xf32>
    %cst_184 = arith.constant 1.000000e+00 : f32
    %558 = vector.broadcast %cst_184 : f32 to vector<2x32xf32>
    %559 = arith.addf %558, %557 : vector<2x32xf32>
    %560 = arith.divf %558, %559 : vector<2x32xf32>
    %561 = vector.extract_strided_slice %548 {offsets = [0, 64], sizes = [2, 32], strides = [1, 1]} : vector<2x128xf32> to vector<2x32xf32>
    %562 = math.tanh %561 : vector<2x32xf32>
    %563 = vector.extract_strided_slice %548 {offsets = [0, 96], sizes = [2, 32], strides = [1, 1]} : vector<2x128xf32> to vector<2x32xf32>
    %564 = arith.negf %563 : vector<2x32xf32>
    %565 = math.exp %564 : vector<2x32xf32>
    %cst_185 = arith.constant 1.000000e+00 : f32
    %566 = vector.broadcast %cst_185 : f32 to vector<2x32xf32>
    %567 = arith.addf %566, %565 : vector<2x32xf32>
    %568 = arith.divf %566, %567 : vector<2x32xf32>
    %569 = arith.mulf %560, %538 : vector<2x32xf32>
    %570 = arith.mulf %554, %562 : vector<2x32xf32>
    %571 = arith.addf %569, %570 : vector<2x32xf32>
    %572 = math.tanh %571 : vector<2x32xf32>
    %573 = arith.mulf %568, %572 : vector<2x32xf32>
    %574 = vector.extract_strided_slice %573 {offsets = [0, 0], sizes = [1, 32], strides = [1, 1]} : vector<2x32xf32> to vector<1x32xf32>
    %c0_186 = arith.constant 0 : index
    %c0_187 = arith.constant 0 : index
    %575 = vector.load %arg17[%c0_186, %c0_187] : memref<16x32xf32, #tpu.memory_space<vmem>>, vector<1x32xf32>
    tpu.vector_store %arg17[%c0_186, %c0_187], %574 {strides = array<i32>} : memref<16x32xf32, #tpu.memory_space<vmem>>, vector<1x32xf32>,
    %576 = vector.extract_strided_slice %573 {offsets = [1, 0], sizes = [1, 32], strides = [1, 1]} : vector<2x32xf32> to vector<1x32xf32>
    %c8_188 = arith.constant 8 : index
    %c0_189 = arith.constant 0 : index
    %577 = vector.load %arg17[%c8_188, %c0_189] : memref<16x32xf32, #tpu.memory_space<vmem>>, vector<1x32xf32>
    tpu.vector_store %arg17[%c8_188, %c0_189], %576 {strides = array<i32>} : memref<16x32xf32, #tpu.memory_space<vmem>>, vector<1x32xf32>,
    %c0_190 = arith.constant 0 : index
    %c0_191 = arith.constant 0 : index
    %578 = vector.load %arg16[%c0_190, %c0_191] : memref<16x32xf32, #tpu.memory_space<vmem>>, vector<16x32xf32>
    %c0_192 = arith.constant 0 : index
    %c0_193 = arith.constant 0 : index
    %579 = vector.load %arg9[%c0_192, %c0_193] : memref<32x32xf32, #tpu.memory_space<vmem>>, vector<32x32xf32>
    %cst_194 = arith.constant dense<0.000000e+00> : vector<16x32xf32>
    %580 = tpu.matmul %578, %579, %cst_194 {dimension_numbers = #tpu.dot_dimension_numbers<[1], [0], [0], [1], [0, 0, 1, 1], [], []>} : vector<16x32xf32>, vector<32x32xf32>, vector<16x32xf32> -> vector<16x32xf32>
    %c0_195 = arith.constant 0 : index
    %c0_196 = arith.constant 0 : index
    %581 = vector.load %arg17[%c0_195, %c0_196] : memref<16x32xf32, #tpu.memory_space<vmem>>, vector<16x32xf32>
    %c0_197 = arith.constant 0 : index
    %c0_198 = arith.constant 0 : index
    %582 = vector.load %arg10[%c0_197, %c0_198] : memref<32x32xf32, #tpu.memory_space<vmem>>, vector<32x32xf32>
    %cst_199 = arith.constant dense<0.000000e+00> : vector<16x32xf32>
    %583 = tpu.matmul %581, %582, %cst_199 {dimension_numbers = #tpu.dot_dimension_numbers<[1], [0], [0], [1], [0, 0, 1, 1], [], []>} : vector<16x32xf32>, vector<32x32xf32>, vector<16x32xf32> -> vector<16x32xf32>
    %584 = arith.addf %580, %583 : vector<16x32xf32>
    %c0_200 = arith.constant 0 : index
    %c0_201 = arith.constant 0 : index
    %585 = vector.load %arg11[%c0_200, %c0_201] : memref<1x32xf32, #tpu.memory_space<vmem>>, vector<1x32xf32>
    %586 = vector.broadcast %585 : vector<1x32xf32> to vector<16x32xf32>
    %587 = arith.addf %584, %586 : vector<16x32xf32>
    %cst_202 = arith.constant 0.000000e+00 : f32
    %588 = vector.broadcast %cst_202 : f32 to vector<16x32xf32>
    %589 = arith.maximumf %587, %588 : vector<16x32xf32>
    %c0_203 = arith.constant 0 : index
    %c0_204 = arith.constant 0 : index
    %590 = vector.load %arg12[%c0_203, %c0_204] : memref<32x128xf32, #tpu.memory_space<vmem>>, vector<32x128xf32>
    %cst_205 = arith.constant dense<0.000000e+00> : vector<16x128xf32>
    %591 = tpu.matmul %589, %590, %cst_205 {dimension_numbers = #tpu.dot_dimension_numbers<[1], [0], [0], [1], [0, 0, 1, 1], [], []>} : vector<16x32xf32>, vector<32x128xf32>, vector<16x128xf32> -> vector<16x128xf32>
    %c0_206 = arith.constant 0 : index
    %c0_207 = arith.constant 0 : index
    %592 = vector.load %arg13[%c0_206, %c0_207] : memref<1x128xf32, #tpu.memory_space<vmem>>, vector<1x128xf32>
    %593 = vector.broadcast %592 : vector<1x128xf32> to vector<16x128xf32>
    %594 = arith.addf %591, %593 : vector<16x128xf32>
    %c0_208 = arith.constant 0 : index
    %c0_209 = arith.constant 0 : index
    %595 = vector.load %arg14[%c0_208, %c0_209] : memref<16x128xf32, #tpu.memory_space<vmem>>, vector<16x128xf32>
    tpu.vector_store %arg14[%c0_208, %c0_209], %594 {strides = array<i32>} : memref<16x128xf32, #tpu.memory_space<vmem>>, vector<16x128xf32>,
    return
  }
}

</mosaic_0001>

<llo_original>
// kernel: forward.1
$region0: #{forward.1}
  #allocation0 [shape = 'u32[]', space=smem, size = 0x4, offset = 0x4, fixed_abs, tag = 'smem constant byte address 0x4 - core index']
  #allocation1 [shape = 'u32[144,128]{1,0:T(1,128)}', space=vmem, size = 0x12000, scoped, tag = 'internal scratch']
  #allocation2 [shape = 'f32[2,8,256]{2,1,0:T(8,128)}', space=vmem, size = 0x4000, scoped, tag = 'scratch operand']
  #allocation3 [shape = 'f32[16,32]{1,0:T(8,128)}', space=vmem, size = 0x2000, scoped, tag = 'scratch operand']
  #allocation4 [shape = 'f32[16,32]{1,0:T(8,128)}', space=vmem, size = 0x2000, scoped, tag = 'scratch operand']
  %s0 = inlined_call_operand.vmem [shape: f32[16,32], index: 0, kind: input, shape index: {}]
  %s1 = inlined_call_operand.vmem [shape: f32[16,192], index: 1, kind: input, shape index: {}]
  %s2 = inlined_call_operand.vmem [shape: f32[192,160], index: 2, kind: input, shape index: {}]
  %s3 = inlined_call_operand.vmem [shape: f32[1,160], index: 3, kind: input, shape index: {}]
  %s4 = inlined_call_operand.vmem [shape: f32[32,256], index: 4, kind: input, shape index: {}]
  %s5 = inlined_call_operand.vmem [shape: f32[16,256], index: 5, kind: input, shape index: {}]
  %s6 = inlined_call_operand.vmem [shape: f32[1,256], index: 6, kind: input, shape index: {}]
  %s7 = inlined_call_operand.vmem [shape: f32[32,128], index: 7, kind: input, shape index: {}]
  %s8 = inlined_call_operand.vmem [shape: f32[32,128], index: 8, kind: input, shape index: {}]
  %s9 = inlined_call_operand.vmem [shape: f32[32,32], index: 9, kind: input, shape index: {}]
  %s10 = inlined_call_operand.vmem [shape: f32[32,32], index: 10, kind: input, shape index: {}]
  %s11 = inlined_call_operand.vmem [shape: f32[1,32], index: 11, kind: input, shape index: {}]
  %s12 = inlined_call_operand.vmem [shape: f32[32,128], index: 12, kind: input, shape index: {}]
  %s13 = inlined_call_operand.vmem [shape: f32[1,128], index: 13, kind: input, shape index: {}]
  %s14 = inlined_call_operand.vmem [shape: f32[16,128], index: 14, kind: output, shape index: {}]
  %s15 = sld [smem:[#allocation0]]
  $region66: #{forward.1} parent=0
    _
  %s17 = ssub.s32 1, %s15
  %s18 = scalar_select 0, %s17, %s15
  // Predicated region
  $region2: #{forward.1} parent=0 // pred_check
    _
  $region3: #{forward.1} parent=0 // pred_check_branch
    %20 = sbr.rel (0) target = $region5
  $region4: #{forward.1} parent=0 // pred_region
    _
  $region5: #{forward.1} parent=0 // pred_fallthru
    _
  // Predicated region
  $region6: #{forward.1} parent=0 // pred_check
    _
  $region7: #{forward.1} parent=0 // pred_check_branch
    %22 = sbr.rel (0) target = $region9
  $region8: #{forward.1} parent=0 // pred_region
    _
  $region9: #{forward.1} parent=0 // pred_fallthru
    _
  // Predicated region
  $region10: #{forward.1} parent=0 // pred_check
    _
  $region11: #{forward.1} parent=0 // pred_check_branch
    %24 = sbr.rel (0) target = $region13
  $region12: #{forward.1} parent=0 // pred_region
    _
  $region13: #{forward.1} parent=0 // pred_fallthru
    _
  // Predicated region
  $region14: #{forward.1} parent=0 // pred_check
    _
  $region15: #{forward.1} parent=0 // pred_check_branch
    %26 = sbr.rel (0) target = $region17
  $region16: #{forward.1} parent=0 // pred_region
    _
  $region17: #{forward.1} parent=0 // pred_fallthru
    _
  // Predicated region
  $region18: #{forward.1} parent=0 // pred_check
    _
  $region19: #{forward.1} parent=0 // pred_check_branch
    %28 = sbr.rel (0) target = $region21
  $region20: #{forward.1} parent=0 // pred_region
    _
  $region21: #{forward.1} parent=0 // pred_fallthru
    _
  // Predicated region
  $region22: #{forward.1} parent=0 // pred_check
    _
  $region23: #{forward.1} parent=0 // pred_check_branch
    %30 = sbr.rel (0) target = $region25
  $region24: #{forward.1} parent=0 // pred_region
    _
  $region25: #{forward.1} parent=0 // pred_fallthru
    _
  // Predicated region
  $region26: #{forward.1} parent=0 // pred_check
    _
  $region27: #{forward.1} parent=0 // pred_check_branch
    %32 = sbr.rel (0) target = $region29
  $region28: #{forward.1} parent=0 // pred_region
    _
  $region29: #{forward.1} parent=0 // pred_fallthru
    _
  // Predicated region
  $region30: #{forward.1} parent=0 // pred_check
    _
  $region31: #{forward.1} parent=0 // pred_check_branch
    %34 = sbr.rel (0) target = $region33
  $region32: #{forward.1} parent=0 // pred_region
    _
  $region33: #{forward.1} parent=0 // pred_fallthru
    _
  // Predicated region
  $region34: #{forward.1} parent=0 // pred_check
    _
  $region35: #{forward.1} parent=0 // pred_check_branch
    %36 = sbr.rel (0) target = $region37
  $region36: #{forward.1} parent=0 // pred_region
    _
  $region37: #{forward.1} parent=0 // pred_fallthru
    _
  // Predicated region
  $region38: #{forward.1} parent=0 // pred_check
    _
  $region39: #{forward.1} parent=0 // pred_check_branch
    %38 = sbr.rel (0) target = $region41
  $region40: #{forward.1} parent=0 // pred_region
    _
  $region41: #{forward.1} parent=0 // pred_fallthru
    _
  // Predicated region
  $region42: #{forward.1} parent=0 // pred_check
    _
  $region43: #{forward.1} parent=0 // pred_check_branch
    %40 = sbr.rel (0) target = $region45
  $region44: #{forward.1} parent=0 // pred_region
    _
  $region45: #{forward.1} parent=0 // pred_fallthru
    _
  // Predicated region
  $region46: #{forward.1} parent=0 // pred_check
    _
  $region47: #{forward.1} parent=0 // pred_check_branch
    %42 = sbr.rel (0) target = $region49
  $region48: #{forward.1} parent=0 // pred_region
    _
  $region49: #{forward.1} parent=0 // pred_fallthru
    _
  // Predicated region
  $region50: #{forward.1} parent=0 // pred_check
    _
  $region51: #{forward.1} parent=0 // pred_check_branch
    %44 = sbr.rel (0) target = $region53
  $region52: #{forward.1} parent=0 // pred_region
    _
  $region53: #{forward.1} parent=0 // pred_fallthru
    _
  // Predicated region
  $region54: #{forward.1} parent=0 // pred_check
    _
  $region55: #{forward.1} parent=0 // pred_check_branch
    %46 = sbr.rel (0) target = $region57
  $region56: #{forward.1} parent=0 // pred_region
    _
  $region57: #{forward.1} parent=0 // pred_fallthru
    _
  %v47 = vld [vmem:[%s1] sm:$0xff]
  %v48 = vld [vmem:[%s1 + $0x8] sm:$0xff]
  %v49 = vld [vmem:[%s1 + $0x10] sm:$0xff]
  %v50 = vld [vmem:[%s1 + $0x18] sm:$0xff]
  %v51 = vld [vmem:[%s2] sm:$0xff]
  %v52 = vld [vmem:[%s2 + $0x8] sm:$0xff]
  %v53 = vld [vmem:[%s2 + $0x10] sm:$0xff]
  %v54 = vld [vmem:[%s2 + $0x18] sm:$0xff]
  %v55 = vld [vmem:[%s2 + $0x20] sm:$0xff]
  %v56 = vld [vmem:[%s2 + $0x28] sm:$0xff]
  %v57 = vld [vmem:[%s2 + $0x30] sm:$0xff]
  %v58 = vld [vmem:[%s2 + $0x38] sm:$0xff]
  %v59 = vld [vmem:[%s2 + $0x40] sm:$0xff]
  %v60 = vld [vmem:[%s2 + $0x48] sm:$0xff]
  %v61 = vld [vmem:[%s2 + $0x50] sm:$0xff]
  %v62 = vld [vmem:[%s2 + $0x58] sm:$0xff]
  %v63 = vld [vmem:[%s2 + $0x60] sm:$0xff]
  %v64 = vld [vmem:[%s2 + $0x68] sm:$0xff]
  %v65 = vld [vmem:[%s2 + $0x70] sm:$0xff]
  %v66 = vld [vmem:[%s2 + $0x78] sm:$0xff]
  %v67 = vld [vmem:[%s2 + $0x80] sm:$0xff]
  %v68 = vld [vmem:[%s2 + $0x88] sm:$0xff]
  %v69 = vld [vmem:[%s2 + $0x90] sm:$0xff]
  %v70 = vld [vmem:[%s2 + $0x98] sm:$0xff]
  %v71 = vld [vmem:[%s2 + $0xa0] sm:$0xff]
  %v72 = vld [vmem:[%s2 + $0xa8] sm:$0xff]
  %v73 = vld [vmem:[%s2 + $0xb0] sm:$0xff]
  %v74 = vld [vmem:[%s2 + $0xb8] sm:$0xff]
  %v75 = vld [vmem:[%s2 + $0xc0] sm:$0xff]
  %v76 = vld [vmem:[%s2 + $0xc8] sm:$0xff]
  %v77 = vld [vmem:[%s2 + $0xd0] sm:$0xff]
  %v78 = vld [vmem:[%s2 + $0xd8] sm:$0xff]
  %v79 = vld [vmem:[%s2 + $0xe0] sm:$0xff]
  %v80 = vld [vmem:[%s2 + $0xe8] sm:$0xff]
  %v81 = vld [vmem:[%s2 + $0xf0] sm:$0xff]
  %v82 = vld [vmem:[%s2 + $0xf8] sm:$0xff]
  %v83 = vld [vmem:[%s2 + $0x100] sm:$0xff]
  %v84 = vld [vmem:[%s2 + $0x108] sm:$0xff]
  %v85 = vld [vmem:[%s2 + $0x110] sm:$0xff]
  %v86 = vld [vmem:[%s2 + $0x118] sm:$0xff]
  %v87 = vld [vmem:[%s2 + $0x120] sm:$0xff]
  %v88 = vld [vmem:[%s2 + $0x128] sm:$0xff]
  %v89 = vld [vmem:[%s2 + $0x130] sm:$0xff]
  %v90 = vld [vmem:[%s2 + $0x138] sm:$0xff]
  %v91 = vld [vmem:[%s2 + $0x140] sm:$0xff]
  %v92 = vld [vmem:[%s2 + $0x148] sm:$0xff]
  %v93 = vld [vmem:[%s2 + $0x150] sm:$0xff]
  %v94 = vld [vmem:[%s2 + $0x158] sm:$0xff]
  %v95 = vld [vmem:[%s2 + $0x160] sm:$0xff]
  %v96 = vld [vmem:[%s2 + $0x168] sm:$0xff]
  %v97 = vld [vmem:[%s2 + $0x170] sm:$0xff]
  %v98 = vld [vmem:[%s2 + $0x178] sm:$0xff]
  %v99 = vld [vmem:[%s3] sm:$0x3]
  %v101 = vlaneseq
  %v102 = vshrl.u32 %v101, 7
  %v103 = vsub.s32 0, %v102
  %v104 = vrot.slane %v99, %v103
  %v105 = vlaneseq
  %v106 = vshrl.u32 %v105, 7
  %v107 = vsub.s32 1, %v106
  %v108 = vrot.slane %v99, %v107
  %vm111 = vcmask 523264
  %v113 = vsel %vm111, %v48, 0
  %v116 = vsel %vm111, %v50, 0
  %118 = vmatprep.subr.mxu0 %v52
  %119 = vmatpush1.msra.mxu0 %v51
  %120 = vmatprep.subr.mxu0 %v54
  %121 = vmatpush1.msra.mxu0 %v53
  %122 = vmatprep.subr.mxu0 %v56
  %123 = vmatpush1.msra.mxu0 %v55
  %124 = vmatprep.subr.mxu0 %v58
  %125 = vmatpush1.msra.mxu0 %v57
  %126 = vmatprep.subr.mxu0 %v60
  %127 = vmatpush1.msra.mxu0 %v59
  %128 = vmatprep.subr.mxu0 %v62
  %129 = vmatpush1.msra.mxu0 %v61
  %130 = vmatprep.subr.mxu0 %v64
  %131 = vmatpush1.msra.mxu0 %v63
  %132 = vmatprep.subr.mxu0 %v66
  %133 = vmatpush1.msra.mxu0 %v65
  %134 = vmatprep.subr.mxu0 %v68
  %135 = vmatpush1.msra.mxu0 %v67
  %136 = vmatprep.subr.mxu0 %v70
  %137 = vmatpush1.msra.mxu0 %v69
  %138 = vmatprep.subr.mxu0 %v72
  %139 = vmatpush1.msra.mxu0 %v71
  %140 = vmatprep.subr.mxu0 %v74
  %141 = vmatpush1.msra.mxu0 %v73
  %142 = vmatprep.subr.mxu0 %v76
  %143 = vmatpush1.msra.mxu0 %v75
  %144 = vmatprep.subr.mxu0 %v78
  %145 = vmatpush1.msra.mxu0 %v77
  %146 = vmatprep.subr.mxu0 %v80
  %147 = vmatpush1.msra.mxu0 %v79
  %148 = vmatprep.subr.mxu0 %v82
  %149 = vmatpush1.msra.mxu0 %v81
  %150 = vmatprep.subr.mxu0 %v84
  %151 = vmatpush1.msra.mxu0 %v83
  %152 = vmatprep.subr.mxu0 %v86
  %153 = vmatpush1.msra.mxu0 %v85
  %154 = vmatprep.subr.mxu0 %v88
  %155 = vmatpush1.msra.mxu0 %v87
  %156 = vmatprep.subr.mxu0 %v90
  %157 = vmatpush1.msra.mxu0 %v89
  %158 = vmatprep.subr.mxu0 %v92
  %159 = vmatpush1.msra.mxu0 %v91
  %160 = vmatprep.subr.mxu0 %v94
  %161 = vmatpush1.msra.mxu0 %v93
  %162 = vmatprep.subr.mxu0 %v96
  %163 = vmatpush1.msra.mxu0 %v95
  %164 = vmatprep.subr.mxu0 %v98
  %165 = vmatpush1.msra.mxu0 %v97
  %166 = vmatprep.subr.mxu0 0.0
  %167 = vmatpush1.msra.mxu0 0.0
  %168 = vmatprep.subr.mxu0 0.0
  %169 = vmatpush1.msra.mxu0 0.0
  %170 = vmatprep.subr.mxu0 0.0
  %171 = vmatpush1.msra.mxu0 0.0
  %172 = vmatprep.subr.mxu0 0.0
  %173 = vmatpush1.msra.mxu0 0.0
  %174 = vmatprep.subr.mxu0 0.0
  %175 = vmatpush1.msra.mxu0 0.0
  %176 = vmatprep.subr.mxu0 0.0
  %177 = vmatpush1.msra.mxu0 0.0
  %178 = vmatprep.subr.mxu0 0.0
  %179 = vmatpush1.msra.mxu0 0.0
  %180 = vmatprep.subr.mxu0 0.0
  %181 = vmatpush1.msra.mxu0 0.0
  %182 = vmatprep.mubr.f32.mxu0 %v113
  %183 = vmatmul.mubr.f32.gmra.mrb[0].mxu0 %v47
  %v184 = vpop.f32.mrb[0].mxu0
  %v185 = vadd.f32 %v104, %v184
  %v186 = vpop.f32.mrb[0].mxu0
  %v187 = vadd.f32 %v108, %v186
  %188 = vmatprep.mubr.f32.mxu0 %v116
  %189 = vmatmul.mubr.f32.gmra.mrb[0].mxu0 %v49
  %v190 = vpop.f32.mrb[0].mxu0
  %v191 = vadd.f32 %v104, %v190
  %v192 = vpop.f32.mrb[0].mxu0
  %v193 = vadd.f32 %v108, %v192
  %194 = vdwg.mxu0
  %v195 = vmax.f32 %v185, 0.0
  %v196 = vmax.f32 %v187, 0.0
  %v197 = vmax.f32 %v191, 0.0
  %v198 = vmax.f32 %v193, 0.0
  %201 = vrot.lane.b32.xlu0 %v195, 112
  %v202 = vpop.permute.xlu0 %201
  %203 = vrot.lane.b32.xlu0 %v197, 112
  %v204 = vpop.permute.xlu0 %203
  %v207 = vmax.f32 %v195, %v202
  %v208 = vmax.f32 %v197, %v204
  %209 = vrot.lane.b32.xlu0 %v195, 96
  %v210 = vpop.permute.xlu0 %209
  %211 = vrot.lane.b32.xlu0 %v197, 96
  %v212 = vpop.permute.xlu0 %211
  %v215 = vmax.f32 %v207, %v210
  %v216 = vmax.f32 %v208, %v212
  %217 = vrot.lane.b32.xlu0 %v195, 80
  %v218 = vpop.permute.xlu0 %217
  %219 = vrot.lane.b32.xlu0 %v197, 80
  %v220 = vpop.permute.xlu0 %219
  %v223 = vmax.f32 %v215, %v218
  %v224 = vmax.f32 %v216, %v220
  %225 = vrot.lane.b32.xlu0 %v195, 64
  %v226 = vpop.permute.xlu0 %225
  %227 = vrot.lane.b32.xlu0 %v197, 64
  %v228 = vpop.permute.xlu0 %227
  %v231 = vmax.f32 %v223, %v226
  %v232 = vmax.f32 %v224, %v228
  %233 = vrot.lane.b32.xlu0 %v195, 48
  %v234 = vpop.permute.xlu0 %233
  %235 = vrot.lane.b32.xlu0 %v197, 48
  %v236 = vpop.permute.xlu0 %235
  %v239 = vmax.f32 %v231, %v234
  %v240 = vmax.f32 %v232, %v236
  %241 = vrot.lane.b32.xlu0 %v195, 32
  %v242 = vpop.permute.xlu0 %241
  %243 = vrot.lane.b32.xlu0 %v197, 32
  %v244 = vpop.permute.xlu0 %243
  %v247 = vmax.f32 %v239, %v242
  %v248 = vmax.f32 %v240, %v244
  %249 = vrot.lane.b32.xlu0 %v195, 16
  %v250 = vpop.permute.xlu0 %249
  %251 = vrot.lane.b32.xlu0 %v197, 16
  %v252 = vpop.permute.xlu0 %251
  %v255 = vmax.f32 %v247, %v250
  %v256 = vmax.f32 %v248, %v252
  %v257 = vmax.f32 %v255, %v196
  %v258 = vmax.f32 %v256, %v198
  %261 = vrot.lane.b32.xlu0 %v196, 112
  %v262 = vpop.permute.xlu0 %261
  %263 = vrot.lane.b32.xlu0 %v198, 112
  %v264 = vpop.permute.xlu0 %263
  %v267 = vmax.f32 %v257, %v262
  %v268 = vmax.f32 %v258, %v264
  %v269 = vld [vmem:[%s0] sm:$0xff]
  %v270 = vld [vmem:[%s0 + $0x8] sm:$0xff]
  %v271 = vld [vmem:[%s4] sm:$0xff]
  %v272 = vld [vmem:[%s4 + $0x8] sm:$0xff]
  %v273 = vld [vmem:[%s4 + $0x10] sm:$0xff]
  %v274 = vld [vmem:[%s4 + $0x18] sm:$0xff]
  %v275 = vld [vmem:[%s4 + $0x20] sm:$0xff]
  %v276 = vld [vmem:[%s4 + $0x28] sm:$0xff]
  %v277 = vld [vmem:[%s4 + $0x30] sm:$0xff]
  %v278 = vld [vmem:[%s4 + $0x38] sm:$0xff]
  %v279 = vld [vmem:[%s5] sm:$0xff]
  %v280 = vld [vmem:[%s5 + $0x8] sm:$0xff]
  %v281 = vld [vmem:[%s5 + $0x10] sm:$0xff]
  %v282 = vld [vmem:[%s5 + $0x18] sm:$0xff]
  %vm283 = vcmask 130048
  %v285 = vsel %vm283, %v267, 0
  %v288 = vsel %vm283, %v268, 0
  %290 = vmatprep.subr.mxu0 %v280
  %291 = vmatpush1.msra.mxu0 %v279
  %292 = vmatprep.subr.mxu0 %v282
  %293 = vmatpush1.msra.mxu0 %v281
  %294 = vmatprep.subr.mxu0 0.0
  %295 = vmatpush1.msra.mxu0 0.0
  %296 = vmatprep.subr.mxu0 0.0
  %297 = vmatpush1.msra.mxu0 0.0
  %298 = vmatprep.subr.mxu0 0.0
  %299 = vmatpush1.msra.mxu0 0.0
  %300 = vmatprep.subr.mxu0 0.0
  %301 = vmatpush1.msra.mxu0 0.0
  %302 = vmatprep.subr.mxu0 0.0
  %303 = vmatpush1.msra.mxu0 0.0
  %304 = vmatprep.subr.mxu0 0.0
  %305 = vmatpush1.msra.mxu0 0.0
  %306 = vmatprep.subr.mxu0 0.0
  %307 = vmatpush1.msra.mxu0 0.0
  %308 = vmatprep.subr.mxu0 0.0
  %309 = vmatpush1.msra.mxu0 0.0
  %310 = vmatprep.subr.mxu0 0.0
  %311 = vmatpush1.msra.mxu0 0.0
  %312 = vmatprep.subr.mxu0 0.0
  %313 = vmatpush1.msra.mxu0 0.0
  %314 = vmatprep.subr.mxu0 0.0
  %315 = vmatpush1.msra.mxu0 0.0
  %316 = vmatprep.subr.mxu0 0.0
  %317 = vmatpush1.msra.mxu0 0.0
  %318 = vmatprep.subr.mxu0 0.0
  %319 = vmatpush1.msra.mxu0 0.0
  %320 = vmatprep.subr.mxu0 0.0
  %321 = vmatpush1.msra.mxu0 0.0
  %322 = vmatprep.subr.mxu0 0.0
  %323 = vmatpush1.msra.mxu0 0.0
  %324 = vmatprep.subr.mxu0 0.0
  %325 = vmatpush1.msra.mxu0 0.0
  %326 = vmatprep.subr.mxu0 0.0
  %327 = vmatpush1.msra.mxu0 0.0
  %328 = vmatprep.subr.mxu0 0.0
  %329 = vmatpush1.msra.mxu0 0.0
  %330 = vmatprep.subr.mxu0 0.0
  %331 = vmatpush1.msra.mxu0 0.0
  %332 = vmatprep.subr.mxu0 0.0
  %333 = vmatpush1.msra.mxu0 0.0
  %334 = vmatprep.subr.mxu0 0.0
  %335 = vmatpush1.msra.mxu0 0.0
  %336 = vmatprep.subr.mxu0 0.0
  %337 = vmatpush1.msra.mxu0 0.0
  %338 = vmatprep.subr.mxu0 0.0
  %339 = vmatpush1.msra.mxu0 0.0
  %340 = vmatprep.subr.mxu0 0.0
  %341 = vmatpush1.msra.mxu0 0.0
  %342 = vmatprep.subr.mxu0 0.0
  %343 = vmatpush1.msra.mxu0 0.0
  %344 = vmatprep.subr.mxu0 0.0
  %345 = vmatpush1.msra.mxu0 0.0
  %346 = vmatprep.subr.mxu0 0.0
  %347 = vmatpush1.msra.mxu0 0.0
  %348 = vmatprep.subr.mxu0 0.0
  %349 = vmatpush1.msra.mxu0 0.0
  %350 = vmatprep.subr.mxu0 0.0
  %351 = vmatpush1.msra.mxu0 0.0
  %352 = vmatprep.subr.mxu0 0.0
  %353 = vmatpush1.msra.mxu0 0.0
  %354 = vmatprep.mubr.f32.mxu0 0.0
  %355 = vmatmul.mubr.f32.gmra.mrb[0].mxu0 %v285
  %v356 = vpop.f32.mrb[0].mxu0
  %v357 = vadd.f32 0.0, %v356
  %v358 = vpop.f32.mrb[0].mxu0
  %v359 = vadd.f32 0.0, %v358
  %360 = vmatprep.mubr.f32.mxu0 0.0
  %361 = vmatmul.mubr.f32.gmra.mrb[0].mxu0 %v288
  %v362 = vpop.f32.mrb[0].mxu0
  %v363 = vadd.f32 0.0, %v362
  %v364 = vpop.f32.mrb[0].mxu0
  %v365 = vadd.f32 0.0, %v364
  %366 = vdwg.mxu0
  %vm367 = vcmask 261120
  %v369 = vsel %vm367, %v269, 0
  %v372 = vsel %vm367, %v270, 0
  %374 = vmatprep.subr.mxu0 %v272
  %375 = vmatpush1.msra.mxu0 %v271
  %376 = vmatprep.subr.mxu0 %v274
  %377 = vmatpush1.msra.mxu0 %v273
  %378 = vmatprep.subr.mxu0 %v276
  %379 = vmatpush1.msra.mxu0 %v275
  %380 = vmatprep.subr.mxu0 %v278
  %381 = vmatpush1.msra.mxu0 %v277
  %382 = vmatprep.subr.mxu0 0.0
  %383 = vmatpush1.msra.mxu0 0.0
  %384 = vmatprep.subr.mxu0 0.0
  %385 = vmatpush1.msra.mxu0 0.0
  %386 = vmatprep.subr.mxu0 0.0
  %387 = vmatpush1.msra.mxu0 0.0
  %388 = vmatprep.subr.mxu0 0.0
  %389 = vmatpush1.msra.mxu0 0.0
  %390 = vmatprep.subr.mxu0 0.0
  %391 = vmatpush1.msra.mxu0 0.0
  %392 = vmatprep.subr.mxu0 0.0
  %393 = vmatpush1.msra.mxu0 0.0
  %394 = vmatprep.subr.mxu0 0.0
  %395 = vmatpush1.msra.mxu0 0.0
  %396 = vmatprep.subr.mxu0 0.0
  %397 = vmatpush1.msra.mxu0 0.0
  %398 = vmatprep.subr.mxu0 0.0
  %399 = vmatpush1.msra.mxu0 0.0
  %400 = vmatprep.subr.mxu0 0.0
  %401 = vmatpush1.msra.mxu0 0.0
  %402 = vmatprep.subr.mxu0 0.0
  %403 = vmatpush1.msra.mxu0 0.0
  %404 = vmatprep.subr.mxu0 0.0
  %405 = vmatpush1.msra.mxu0 0.0
  %406 = vmatprep.subr.mxu0 0.0
  %407 = vmatpush1.msra.mxu0 0.0
  %408 = vmatprep.subr.mxu0 0.0
  %409 = vmatpush1.msra.mxu0 0.0
  %410 = vmatprep.subr.mxu0 0.0
  %411 = vmatpush1.msra.mxu0 0.0
  %412 = vmatprep.subr.mxu0 0.0
  %413 = vmatpush1.msra.mxu0 0.0
  %414 = vmatprep.subr.mxu0 0.0
  %415 = vmatpush1.msra.mxu0 0.0
  %416 = vmatprep.subr.mxu0 0.0
  %417 = vmatpush1.msra.mxu0 0.0
  %418 = vmatprep.subr.mxu0 0.0
  %419 = vmatpush1.msra.mxu0 0.0
  %420 = vmatprep.subr.mxu0 0.0
  %421 = vmatpush1.msra.mxu0 0.0
  %422 = vmatprep.subr.mxu0 0.0
  %423 = vmatpush1.msra.mxu0 0.0
  %424 = vmatprep.subr.mxu0 0.0
  %425 = vmatpush1.msra.mxu0 0.0
  %426 = vmatprep.subr.mxu0 0.0
  %427 = vmatpush1.msra.mxu0 0.0
  %428 = vmatprep.subr.mxu0 0.0
  %429 = vmatpush1.msra.mxu0 0.0
  %430 = vmatprep.subr.mxu0 0.0
  %431 = vmatpush1.msra.mxu0 0.0
  %432 = vmatprep.subr.mxu0 0.0
  %433 = vmatpush1.msra.mxu0 0.0
  %434 = vmatprep.subr.mxu0 0.0
  %435 = vmatpush1.msra.mxu0 0.0
  %436 = vmatprep.subr.mxu0 0.0
  %437 = vmatpush1.msra.mxu0 0.0
  %438 = vmatprep.mubr.f32.mxu0 0.0
  %439 = vmatmul.mubr.f32.gmra.mrb[0].mxu0 %v369
  %v440 = vpop.f32.mrb[0].mxu0
  %v441 = vadd.f32 %v357, %v440
  %v442 = vpop.f32.mrb[0].mxu0
  %v443 = vadd.f32 %v359, %v442
  %444 = vmatprep.mubr.f32.mxu0 0.0
  %445 = vmatmul.mubr.f32.gmra.mrb[0].mxu0 %v372
  %v446 = vpop.f32.mrb[0].mxu0
  %v447 = vadd.f32 %v363, %v446
  %v448 = vpop.f32.mrb[0].mxu0
  %v449 = vadd.f32 %v365, %v448
  %450 = vdwg.mxu0
  %v451 = vld [vmem:[%s6] sm:$0x3]
  %v453 = vlaneseq
  %v454 = vshrl.u32 %v453, 7
  %v455 = vsub.s32 0, %v454
  %v456 = vrot.slane %v451, %v455
  %v457 = vlaneseq
  %v458 = vshrl.u32 %v457, 7
  %v459 = vsub.s32 1, %v458
  %v460 = vrot.slane %v451, %v459
  %v463 = vadd.f32 %v441, %v456
  %v464 = vadd.f32 %v443, %v460
  %v465 = vadd.f32 %v447, %v456
  %v466 = vadd.f32 %v449, %v460
  %467 = vst [vmem:[#allocation2] sm:$0xff] %v463
  %468 = vst [vmem:[#allocation2 + $0x8] sm:$0xff] %v464
  %s469 = scalar_lea.vmem [#allocation2], 16
  %470 = vst [vmem:[%s469] sm:$0xff] %v465
  %471 = vst [vmem:[%s469 + $0x8] sm:$0xff] %v466
  %v472 = vld [vmem:[%s7] sm:$0xff]
  %v473 = vld [vmem:[%s7 + $0x8] sm:$0xff]
  %v474 = vld [vmem:[%s7 + $0x10] sm:$0xff]
  %v475 = vld [vmem:[%s7 + $0x18] sm:$0xff]
  %v476 = vld [vmem:[%s8] sm:$0xff]
  %v477 = vld [vmem:[%s8 + $0x8] sm:$0xff]
  %v478 = vld [vmem:[%s8 + $0x10] sm:$0xff]
  %v479 = vld [vmem:[%s8 + $0x18] sm:$0xff]
  %v480 = vld [vmem:[#allocation2] ss:$0 sm:$0xff]
  %v481 = vld [vmem:[#allocation2 + $0x10] ss:$0 sm:$0xff]
  %v483 = vsel %vm367, 0.0, 0
  %485 = vmatprep.subr.mxu0 0.0
  %486 = vmatpush1.msra.mxu0 %v472
  %487 = vmatprep.subr.mxu0 0.0
  %488 = vmatpush1.msra.mxu0 %v473
  %489 = vmatprep.subr.mxu0 0.0
  %490 = vmatpush1.msra.mxu0 %v474
  %491 = vmatprep.subr.mxu0 0.0
  %492 = vmatpush1.msra.mxu0 %v475
  %493 = vmatprep.subr.mxu0 0.0
  %494 = vmatpush1.msra.mxu0 0.0
  %495 = vmatprep.subr.mxu0 0.0
  %496 = vmatpush1.msra.mxu0 0.0
  %497 = vmatprep.subr.mxu0 0.0
  %498 = vmatpush1.msra.mxu0 0.0
  %499 = vmatprep.subr.mxu0 0.0
  %500 = vmatpush1.msra.mxu0 0.0
  %501 = vmatprep.subr.mxu0 0.0
  %502 = vmatpush1.msra.mxu0 0.0
  %503 = vmatprep.subr.mxu0 0.0
  %504 = vmatpush1.msra.mxu0 0.0
  %505 = vmatprep.subr.mxu0 0.0
  %506 = vmatpush1.msra.mxu0 0.0
  %507 = vmatprep.subr.mxu0 0.0
  %508 = vmatpush1.msra.mxu0 0.0
  %509 = vmatprep.subr.mxu0 0.0
  %510 = vmatpush1.msra.mxu0 0.0
  %511 = vmatprep.subr.mxu0 0.0
  %512 = vmatpush1.msra.mxu0 0.0
  %513 = vmatprep.subr.mxu0 0.0
  %514 = vmatpush1.msra.mxu0 0.0
  %515 = vmatprep.subr.mxu0 0.0
  %516 = vmatpush1.msra.mxu0 0.0
  %517 = vmatprep.subr.mxu0 0.0
  %518 = vmatpush1.msra.mxu0 0.0
  %519 = vmatprep.subr.mxu0 0.0
  %520 = vmatpush1.msra.mxu0 0.0
  %521 = vmatprep.subr.mxu0 0.0
  %522 = vmatpush1.msra.mxu0 0.0
  %523 = vmatprep.subr.mxu0 0.0
  %524 = vmatpush1.msra.mxu0 0.0
  %525 = vmatprep.subr.mxu0 0.0
  %526 = vmatpush1.msra.mxu0 0.0
  %527 = vmatprep.subr.mxu0 0.0
  %528 = vmatpush1.msra.mxu0 0.0
  %529 = vmatprep.subr.mxu0 0.0
  %530 = vmatpush1.msra.mxu0 0.0
  %531 = vmatprep.subr.mxu0 0.0
  %532 = vmatpush1.msra.mxu0 0.0
  %533 = vmatprep.subr.mxu0 0.0
  %534 = vmatpush1.msra.mxu0 0.0
  %535 = vmatprep.subr.mxu0 0.0
  %536 = vmatpush1.msra.mxu0 0.0
  %537 = vmatprep.subr.mxu0 0.0
  %538 = vmatpush1.msra.mxu0 0.0
  %539 = vmatprep.subr.mxu0 0.0
  %540 = vmatpush1.msra.mxu0 0.0
  %541 = vmatprep.subr.mxu0 0.0
  %542 = vmatpush1.msra.mxu0 0.0
  %543 = vmatprep.subr.mxu0 0.0
  %544 = vmatpush1.msra.mxu0 0.0
  %545 = vmatprep.subr.mxu0 0.0
  %546 = vmatpush1.msra.mxu0 0.0
  %547 = vmatprep.subr.mxu0 0.0
  %548 = vmatpush1.msra.mxu0 0.0
  %549 = vmatprep.mubr.f32.mxu0 0.0
  %550 = vmatmul.mubr.f32.gmra.mrb[0].mxu0 %v483
  %v551 = vpop.f32.mrb[0].mxu0
  %v552 = vadd.f32 0.0, %v551
  %v553 = vpop.f32.mrb[0].mxu0
  %554 = vdwg.mxu0
  %v556 = vrot.slane %v552, 1
  %v559 = vadd.f32 %v480, %v552
  %v560 = vadd.f32 %v481, %v556
  %v561 = vxor.u32 %v559, 2147483648
  %v562 = vxor.u32 %v560, 2147483648
  %v563 = vmul.f32 %v561, 1.442695
  %v564 = vpow.pop %v563
  %v565 = vmul.f32 %v562, 1.442695
  %v566 = vpow.pop %v565
  %v567 = vadd.f32 %v564, 1.0
  %v568 = vadd.f32 %v566, 1.0
  %v569 = vrcp.pop %v567
  %v570 = vmul.f32 1.0, %v569
  %v571 = vrcp.pop %v568
  %v572 = vmul.f32 1.0, %v571
  %v573 = vtanh.pop %v559
  %v574 = vtanh.pop %v560
  %v575 = vmul.f32 %v570, 0.0
  %v576 = vmul.f32 %v572, 0.0
  %579 = vrot.lane.b32.xlu0 %v573, 64
  %v580 = vpop.permute.xlu0 %579
  %581 = vrot.lane.b32.xlu0 %v574, 64
  %v582 = vpop.permute.xlu0 %581
  %v585 = vmul.f32 %v570, %v580
  %v586 = vmul.f32 %v572, %v582
  %589 = vrot.lane.b32.xlu0 %v585, 32
  %v590 = vpop.permute.xlu0 %589
  %591 = vrot.lane.b32.xlu0 %v586, 32
  %v592 = vpop.permute.xlu0 %591
  %v595 = vadd.f32 %v575, %v590
  %v596 = vadd.f32 %v576, %v592
  %v597 = vtanh.pop %v595
  %v598 = vtanh.pop %v596
  %601 = vrot.lane.b32.xlu0 %v597, 64
  %v602 = vpop.permute.xlu0 %601
  %603 = vrot.lane.b32.xlu0 %v598, 64
  %v604 = vpop.permute.xlu0 %603
  %v607 = vmul.f32 %v570, %v602
  %v608 = vmul.f32 %v572, %v604
  %610 = vrot.lane.b32.xlu0 %v607, 32
  %v611 = vpop.permute.xlu0 %610
  %vm613 = vcmask 253952
  %614 = vst.msk [vmem:[#allocation3] sm:$0x1] %vm613, %v611
  %616 = vrot.lane.b32.xlu0 %v608, 32
  %v617 = vpop.permute.xlu0 %616
  %619 = vst.msk [vmem:[#allocation3 + $0x8] sm:$0x1] %vm613, %v617
  %v620 = vld [vmem:[#allocation2 + $0x1] ss:$0 sm:$0xff]
  %v621 = vld [vmem:[#allocation2 + $0x11] ss:$0 sm:$0xff]
  %v622 = vrot.slane %v608, 7
  %vm623 = vcmask 1041409
  %v624 = vsel %vm623, %v622, %v607
  %625 = vrot.lane.b32.xlu0 %v624, 32
  %v626 = vpop.permute.xlu0 %625
  %v627 = vsel %vm367, %v626, 0
  %629 = vmatprep.subr.mxu0 0.0
  %630 = vmatpush1.msra.mxu0 %v472
  %631 = vmatprep.subr.mxu0 0.0
  %632 = vmatpush1.msra.mxu0 %v473
  %633 = vmatprep.subr.mxu0 0.0
  %634 = vmatpush1.msra.mxu0 %v474
  %635 = vmatprep.subr.mxu0 0.0
  %636 = vmatpush1.msra.mxu0 %v475
  %637 = vmatprep.subr.mxu0 0.0
  %638 = vmatpush1.msra.mxu0 0.0
  %639 = vmatprep.subr.mxu0 0.0
  %640 = vmatpush1.msra.mxu0 0.0
  %641 = vmatprep.subr.mxu0 0.0
  %642 = vmatpush1.msra.mxu0 0.0
  %643 = vmatprep.subr.mxu0 0.0
  %644 = vmatpush1.msra.mxu0 0.0
  %645 = vmatprep.subr.mxu0 0.0
  %646 = vmatpush1.msra.mxu0 0.0
  %647 = vmatprep.subr.mxu0 0.0
  %648 = vmatpush1.msra.mxu0 0.0
  %649 = vmatprep.subr.mxu0 0.0
  %650 = vmatpush1.msra.mxu0 0.0
  %651 = vmatprep.subr.mxu0 0.0
  %652 = vmatpush1.msra.mxu0 0.0
  %653 = vmatprep.subr.mxu0 0.0
  %654 = vmatpush1.msra.mxu0 0.0
  %655 = vmatprep.subr.mxu0 0.0
  %656 = vmatpush1.msra.mxu0 0.0
  %657 = vmatprep.subr.mxu0 0.0
  %658 = vmatpush1.msra.mxu0 0.0
  %659 = vmatprep.subr.mxu0 0.0
  %660 = vmatpush1.msra.mxu0 0.0
  %661 = vmatprep.subr.mxu0 0.0
  %662 = vmatpush1.msra.mxu0 0.0
  %663 = vmatprep.subr.mxu0 0.0
  %664 = vmatpush1.msra.mxu0 0.0
  %665 = vmatprep.subr.mxu0 0.0
  %666 = vmatpush1.msra.mxu0 0.0
  %667 = vmatprep.subr.mxu0 0.0
  %668 = vmatpush1.msra.mxu0 0.0
  %669 = vmatprep.subr.mxu0 0.0
  %670 = vmatpush1.msra.mxu0 0.0
  %671 = vmatprep.subr.mxu0 0.0
  %672 = vmatpush1.msra.mxu0 0.0
  %673 = vmatprep.subr.mxu0 0.0
  %674 = vmatpush1.msra.mxu0 0.0
  %675 = vmatprep.subr.mxu0 0.0
  %676 = vmatpush1.msra.mxu0 0.0
  %677 = vmatprep.subr.mxu0 0.0
  %678 = vmatpush1.msra.mxu0 0.0
  %679 = vmatprep.subr.mxu0 0.0
  %680 = vmatpush1.msra.mxu0 0.0
  %681 = vmatprep.subr.mxu0 0.0
  %682 = vmatpush1.msra.mxu0 0.0
  %683 = vmatprep.subr.mxu0 0.0
  %684 = vmatpush1.msra.mxu0 0.0
  %685 = vmatprep.subr.mxu0 0.0
  %686 = vmatpush1.msra.mxu0 0.0
  %687 = vmatprep.subr.mxu0 0.0
  %688 = vmatpush1.msra.mxu0 0.0
  %689 = vmatprep.subr.mxu0 0.0
  %690 = vmatpush1.msra.mxu0 0.0
  %691 = vmatprep.subr.mxu0 0.0
  %692 = vmatpush1.msra.mxu0 0.0
  %693 = vmatprep.mubr.f32.mxu0 0.0
  %694 = vmatmul.mubr.f32.gmra.mrb[0].mxu0 %v627
  %v695 = vpop.f32.mrb[0].mxu0
  %v696 = vadd.f32 0.0, %v695
  %v697 = vpop.f32.mrb[0].mxu0
  %698 = vdwg.mxu0
  %v700 = vrot.slane %v696, 1
  %v703 = vadd.f32 %v620, %v696
  %v704 = vadd.f32 %v621, %v700
  %v705 = vxor.u32 %v703, 2147483648
  %v706 = vxor.u32 %v704, 2147483648
  %v707 = vmul.f32 %v705, 1.442695
  %v708 = vpow.pop %v707
  %v709 = vmul.f32 %v706, 1.442695
  %v710 = vpow.pop %v709
  %v711 = vadd.f32 %v708, 1.0
  %v712 = vadd.f32 %v710, 1.0
  %v713 = vrcp.pop %v711
  %v714 = vmul.f32 1.0, %v713
  %v715 = vrcp.pop %v712
  %v716 = vmul.f32 1.0, %v715
  %v717 = vtanh.pop %v703
  %v718 = vtanh.pop %v704
  %v719 = vmul.f32 %v714, %v595
  %v720 = vmul.f32 %v716, %v596
  %723 = vrot.lane.b32.xlu0 %v717, 64
  %v724 = vpop.permute.xlu0 %723
  %725 = vrot.lane.b32.xlu0 %v718, 64
  %v726 = vpop.permute.xlu0 %725
  %v729 = vmul.f32 %v714, %v724
  %v730 = vmul.f32 %v716, %v726
  %733 = vrot.lane.b32.xlu0 %v729, 32
  %v734 = vpop.permute.xlu0 %733
  %735 = vrot.lane.b32.xlu0 %v730, 32
  %v736 = vpop.permute.xlu0 %735
  %v739 = vadd.f32 %v719, %v734
  %v740 = vadd.f32 %v720, %v736
  %v741 = vtanh.pop %v739
  %v742 = vtanh.pop %v740
  %745 = vrot.lane.b32.xlu0 %v741, 64
  %v746 = vpop.permute.xlu0 %745
  %747 = vrot.lane.b32.xlu0 %v742, 64
  %v748 = vpop.permute.xlu0 %747
  %v751 = vmul.f32 %v714, %v746
  %v752 = vmul.f32 %v716, %v748
  %754 = vrot.lane.b32.xlu0 %v751, 32
  %v755 = vpop.permute.xlu0 %754
  %757 = vst.msk [vmem:[#allocation3 + $0x1] sm:$0x1] %vm613, %v755
  %759 = vrot.lane.b32.xlu0 %v752, 32
  %v760 = vpop.permute.xlu0 %759
  %762 = vst.msk [vmem:[#allocation3 + $0x9] sm:$0x1] %vm613, %v760
  %v763 = vld [vmem:[#allocation2 + $0x2] ss:$0 sm:$0xff]
  %v764 = vld [vmem:[#allocation2 + $0x12] ss:$0 sm:$0xff]
  %v765 = vrot.slane %v752, 7
  %v766 = vsel %vm623, %v765, %v751
  %767 = vrot.lane.b32.xlu0 %v766, 32
  %v768 = vpop.permute.xlu0 %767
  %v769 = vsel %vm367, %v768, 0
  %771 = vmatprep.subr.mxu0 0.0
  %772 = vmatpush1.msra.mxu0 %v472
  %773 = vmatprep.subr.mxu0 0.0
  %774 = vmatpush1.msra.mxu0 %v473
  %775 = vmatprep.subr.mxu0 0.0
  %776 = vmatpush1.msra.mxu0 %v474
  %777 = vmatprep.subr.mxu0 0.0
  %778 = vmatpush1.msra.mxu0 %v475
  %779 = vmatprep.subr.mxu0 0.0
  %780 = vmatpush1.msra.mxu0 0.0
  %781 = vmatprep.subr.mxu0 0.0
  %782 = vmatpush1.msra.mxu0 0.0
  %783 = vmatprep.subr.mxu0 0.0
  %784 = vmatpush1.msra.mxu0 0.0
  %785 = vmatprep.subr.mxu0 0.0
  %786 = vmatpush1.msra.mxu0 0.0
  %787 = vmatprep.subr.mxu0 0.0
  %788 = vmatpush1.msra.mxu0 0.0
  %789 = vmatprep.subr.mxu0 0.0
  %790 = vmatpush1.msra.mxu0 0.0
  %791 = vmatprep.subr.mxu0 0.0
  %792 = vmatpush1.msra.mxu0 0.0
  %793 = vmatprep.subr.mxu0 0.0
  %794 = vmatpush1.msra.mxu0 0.0
  %795 = vmatprep.subr.mxu0 0.0
  %796 = vmatpush1.msra.mxu0 0.0
  %797 = vmatprep.subr.mxu0 0.0
  %798 = vmatpush1.msra.mxu0 0.0
  %799 = vmatprep.subr.mxu0 0.0
  %800 = vmatpush1.msra.mxu0 0.0
  %801 = vmatprep.subr.mxu0 0.0
  %802 = vmatpush1.msra.mxu0 0.0
  %803 = vmatprep.subr.mxu0 0.0
  %804 = vmatpush1.msra.mxu0 0.0
  %805 = vmatprep.subr.mxu0 0.0
  %806 = vmatpush1.msra.mxu0 0.0
  %807 = vmatprep.subr.mxu0 0.0
  %808 = vmatpush1.msra.mxu0 0.0
  %809 = vmatprep.subr.mxu0 0.0
  %810 = vmatpush1.msra.mxu0 0.0
  %811 = vmatprep.subr.mxu0 0.0
  %812 = vmatpush1.msra.mxu0 0.0
  %813 = vmatprep.subr.mxu0 0.0
  %814 = vmatpush1.msra.mxu0 0.0
  %815 = vmatprep.subr.mxu0 0.0
  %816 = vmatpush1.msra.mxu0 0.0
  %817 = vmatprep.subr.mxu0 0.0
  %818 = vmatpush1.msra.mxu0 0.0
  %819 = vmatprep.subr.mxu0 0.0
  %820 = vmatpush1.msra.mxu0 0.0
  %821 = vmatprep.subr.mxu0 0.0
  %822 = vmatpush1.msra.mxu0 0.0
  %823 = vmatprep.subr.mxu0 0.0
  %824 = vmatpush1.msra.mxu0 0.0
  %825 = vmatprep.subr.mxu0 0.0
  %826 = vmatpush1.msra.mxu0 0.0
  %827 = vmatprep.subr.mxu0 0.0
  %828 = vmatpush1.msra.mxu0 0.0
  %829 = vmatprep.subr.mxu0 0.0
  %830 = vmatpush1.msra.mxu0 0.0
  %831 = vmatprep.subr.mxu0 0.0
  %832 = vmatpush1.msra.mxu0 0.0
  %833 = vmatprep.subr.mxu0 0.0
  %834 = vmatpush1.msra.mxu0 0.0
  %835 = vmatprep.mubr.f32.mxu0 0.0
  %836 = vmatmul.mubr.f32.gmra.mrb[0].mxu0 %v769
  %v837 = vpop.f32.mrb[0].mxu0
  %v838 = vadd.f32 0.0, %v837
  %v839 = vpop.f32.mrb[0].mxu0
  %840 = vdwg.mxu0
  %v842 = vrot.slane %v838, 1
  %v845 = vadd.f32 %v763, %v838
  %v846 = vadd.f32 %v764, %v842
  %v847 = vxor.u32 %v845, 2147483648
  %v848 = vxor.u32 %v846, 2147483648
  %v849 = vmul.f32 %v847, 1.442695
  %v850 = vpow.pop %v849
  %v851 = vmul.f32 %v848, 1.442695
  %v852 = vpow.pop %v851
  %v853 = vadd.f32 %v850, 1.0
  %v854 = vadd.f32 %v852, 1.0
  %v855 = vrcp.pop %v853
  %v856 = vmul.f32 1.0, %v855
  %v857 = vrcp.pop %v854
  %v858 = vmul.f32 1.0, %v857
  %v859 = vtanh.pop %v845
  %v860 = vtanh.pop %v846
  %v861 = vmul.f32 %v856, %v739
  %v862 = vmul.f32 %v858, %v740
  %865 = vrot.lane.b32.xlu0 %v859, 64
  %v866 = vpop.permute.xlu0 %865
  %867 = vrot.lane.b32.xlu0 %v860, 64
  %v868 = vpop.permute.xlu0 %867
  %v871 = vmul.f32 %v856, %v866
  %v872 = vmul.f32 %v858, %v868
  %875 = vrot.lane.b32.xlu0 %v871, 32
  %v876 = vpop.permute.xlu0 %875
  %877 = vrot.lane.b32.xlu0 %v872, 32
  %v878 = vpop.permute.xlu0 %877
  %v881 = vadd.f32 %v861, %v876
  %v882 = vadd.f32 %v862, %v878
  %v883 = vtanh.pop %v881
  %v884 = vtanh.pop %v882
  %887 = vrot.lane.b32.xlu0 %v883, 64
  %v888 = vpop.permute.xlu0 %887
  %889 = vrot.lane.b32.xlu0 %v884, 64
  %v890 = vpop.permute.xlu0 %889
  %v893 = vmul.f32 %v856, %v888
  %v894 = vmul.f32 %v858, %v890
  %896 = vrot.lane.b32.xlu0 %v893, 32
  %v897 = vpop.permute.xlu0 %896
  %899 = vst.msk [vmem:[#allocation3 + $0x2] sm:$0x1] %vm613, %v897
  %901 = vrot.lane.b32.xlu0 %v894, 32
  %v902 = vpop.permute.xlu0 %901
  %904 = vst.msk [vmem:[#allocation3 + $0xa] sm:$0x1] %vm613, %v902
  %v905 = vld [vmem:[#allocation2 + $0x3] ss:$0 sm:$0xff]
  %v906 = vld [vmem:[#allocation2 + $0x13] ss:$0 sm:$0xff]
  %v907 = vrot.slane %v894, 7
  %v908 = vsel %vm623, %v907, %v893
  %909 = vrot.lane.b32.xlu0 %v908, 32
  %v910 = vpop.permute.xlu0 %909
  %v911 = vsel %vm367, %v910, 0
  %913 = vmatprep.subr.mxu0 0.0
  %914 = vmatpush1.msra.mxu0 %v472
  %915 = vmatprep.subr.mxu0 0.0
  %916 = vmatpush1.msra.mxu0 %v473
  %917 = vmatprep.subr.mxu0 0.0
  %918 = vmatpush1.msra.mxu0 %v474
  %919 = vmatprep.subr.mxu0 0.0
  %920 = vmatpush1.msra.mxu0 %v475
  %921 = vmatprep.subr.mxu0 0.0
  %922 = vmatpush1.msra.mxu0 0.0
  %923 = vmatprep.subr.mxu0 0.0
  %924 = vmatpush1.msra.mxu0 0.0
  %925 = vmatprep.subr.mxu0 0.0
  %926 = vmatpush1.msra.mxu0 0.0
  %927 = vmatprep.subr.mxu0 0.0
  %928 = vmatpush1.msra.mxu0 0.0
  %929 = vmatprep.subr.mxu0 0.0
  %930 = vmatpush1.msra.mxu0 0.0
  %931 = vmatprep.subr.mxu0 0.0
  %932 = vmatpush1.msra.mxu0 0.0
  %933 = vmatprep.subr.mxu0 0.0
  %934 = vmatpush1.msra.mxu0 0.0
  %935 = vmatprep.subr.mxu0 0.0
  %936 = vmatpush1.msra.mxu0 0.0
  %937 = vmatprep.subr.mxu0 0.0
  %938 = vmatpush1.msra.mxu0 0.0
  %939 = vmatprep.subr.mxu0 0.0
  %940 = vmatpush1.msra.mxu0 0.0
  %941 = vmatprep.subr.mxu0 0.0
  %942 = vmatpush1.msra.mxu0 0.0
  %943 = vmatprep.subr.mxu0 0.0
  %944 = vmatpush1.msra.mxu0 0.0
  %945 = vmatprep.subr.mxu0 0.0
  %946 = vmatpush1.msra.mxu0 0.0
  %947 = vmatprep.subr.mxu0 0.0
  %948 = vmatpush1.msra.mxu0 0.0
  %949 = vmatprep.subr.mxu0 0.0
  %950 = vmatpush1.msra.mxu0 0.0
  %951 = vmatprep.subr.mxu0 0.0
  %952 = vmatpush1.msra.mxu0 0.0
  %953 = vmatprep.subr.mxu0 0.0
  %954 = vmatpush1.msra.mxu0 0.0
  %955 = vmatprep.subr.mxu0 0.0
  %956 = vmatpush1.msra.mxu0 0.0
  %957 = vmatprep.subr.mxu0 0.0
  %958 = vmatpush1.msra.mxu0 0.0
  %959 = vmatprep.subr.mxu0 0.0
  %960 = vmatpush1.msra.mxu0 0.0
  %961 = vmatprep.subr.mxu0 0.0
  %962 = vmatpush1.msra.mxu0 0.0
  %963 = vmatprep.subr.mxu0 0.0
  %964 = vmatpush1.msra.mxu0 0.0
  %965 = vmatprep.subr.mxu0 0.0
  %966 = vmatpush1.msra.mxu0 0.0
  %967 = vmatprep.subr.mxu0 0.0
  %968 = vmatpush1.msra.mxu0 0.0
  %969 = vmatprep.subr.mxu0 0.0
  %970 = vmatpush1.msra.mxu0 0.0
  %971 = vmatprep.subr.mxu0 0.0
  %972 = vmatpush1.msra.mxu0 0.0
  %973 = vmatprep.subr.mxu0 0.0
  %974 = vmatpush1.msra.mxu0 0.0
  %975 = vmatprep.subr.mxu0 0.0
  %976 = vmatpush1.msra.mxu0 0.0
  %977 = vmatprep.mubr.f32.mxu0 0.0
  %978 = vmatmul.mubr.f32.gmra.mrb[0].mxu0 %v911
  %v979 = vpop.f32.mrb[0].mxu0
  %v980 = vadd.f32 0.0, %v979
  %v981 = vpop.f32.mrb[0].mxu0
  %982 = vdwg.mxu0
  %v984 = vrot.slane %v980, 1
  %v987 = vadd.f32 %v905, %v980
  %v988 = vadd.f32 %v906, %v984
  %v989 = vxor.u32 %v987, 2147483648
  %v990 = vxor.u32 %v988, 2147483648
  %v991 = vmul.f32 %v989, 1.442695
  %v992 = vpow.pop %v991
  %v993 = vmul.f32 %v990, 1.442695
  %v994 = vpow.pop %v993
  %v995 = vadd.f32 %v992, 1.0
  %v996 = vadd.f32 %v994, 1.0
  %v997 = vrcp.pop %v995
  %v998 = vmul.f32 1.0, %v997
  %v999 = vrcp.pop %v996
  %v1000 = vmul.f32 1.0, %v999
  %v1001 = vtanh.pop %v987
  %v1002 = vtanh.pop %v988
  %v1003 = vmul.f32 %v998, %v881
  %v1004 = vmul.f32 %v1000, %v882
  %1007 = vrot.lane.b32.xlu0 %v1001, 64
  %v1008 = vpop.permute.xlu0 %1007
  %1009 = vrot.lane.b32.xlu0 %v1002, 64
  %v1010 = vpop.permute.xlu0 %1009
  %v1013 = vmul.f32 %v998, %v1008
  %v1014 = vmul.f32 %v1000, %v1010
  %1017 = vrot.lane.b32.xlu0 %v1013, 32
  %v1018 = vpop.permute.xlu0 %1017
  %1019 = vrot.lane.b32.xlu0 %v1014, 32
  %v1020 = vpop.permute.xlu0 %1019
  %v1023 = vadd.f32 %v1003, %v1018
  %v1024 = vadd.f32 %v1004, %v1020
  %v1025 = vtanh.pop %v1023
  %v1026 = vtanh.pop %v1024
  %1029 = vrot.lane.b32.xlu0 %v1025, 64
  %v1030 = vpop.permute.xlu0 %1029
  %1031 = vrot.lane.b32.xlu0 %v1026, 64
  %v1032 = vpop.permute.xlu0 %1031
  %v1035 = vmul.f32 %v998, %v1030
  %v1036 = vmul.f32 %v1000, %v1032
  %1038 = vrot.lane.b32.xlu0 %v1035, 32
  %v1039 = vpop.permute.xlu0 %1038
  %1041 = vst.msk [vmem:[#allocation3 + $0x3] sm:$0x1] %vm613, %v1039
  %1043 = vrot.lane.b32.xlu0 %v1036, 32
  %v1044 = vpop.permute.xlu0 %1043
  %1046 = vst.msk [vmem:[#allocation3 + $0xb] sm:$0x1] %vm613, %v1044
  %v1047 = vld [vmem:[#allocation2 + $0x4] ss:$0 sm:$0xff]
  %v1048 = vld [vmem:[#allocation2 + $0x14] ss:$0 sm:$0xff]
  %v1049 = vrot.slane %v1036, 7
  %v1050 = vsel %vm623, %v1049, %v1035
  %1051 = vrot.lane.b32.xlu0 %v1050, 32
  %v1052 = vpop.permute.xlu0 %1051
  %v1053 = vsel %vm367, %v1052, 0
  %1055 = vmatprep.subr.mxu0 0.0
  %1056 = vmatpush1.msra.mxu0 %v472
  %1057 = vmatprep.subr.mxu0 0.0
  %1058 = vmatpush1.msra.mxu0 %v473
  %1059 = vmatprep.subr.mxu0 0.0
  %1060 = vmatpush1.msra.mxu0 %v474
  %1061 = vmatprep.subr.mxu0 0.0
  %1062 = vmatpush1.msra.mxu0 %v475
  %1063 = vmatprep.subr.mxu0 0.0
  %1064 = vmatpush1.msra.mxu0 0.0
  %1065 = vmatprep.subr.mxu0 0.0
  %1066 = vmatpush1.msra.mxu0 0.0
  %1067 = vmatprep.subr.mxu0 0.0
  %1068 = vmatpush1.msra.mxu0 0.0
  %1069 = vmatprep.subr.mxu0 0.0
  %1070 = vmatpush1.msra.mxu0 0.0
  %1071 = vmatprep.subr.mxu0 0.0
  %1072 = vmatpush1.msra.mxu0 0.0
  %1073 = vmatprep.subr.mxu0 0.0
  %1074 = vmatpush1.msra.mxu0 0.0
  %1075 = vmatprep.subr.mxu0 0.0
  %1076 = vmatpush1.msra.mxu0 0.0
  %1077 = vmatprep.subr.mxu0 0.0
  %1078 = vmatpush1.msra.mxu0 0.0
  %1079 = vmatprep.subr.mxu0 0.0
  %1080 = vmatpush1.msra.mxu0 0.0
  %1081 = vmatprep.subr.mxu0 0.0
  %1082 = vmatpush1.msra.mxu0 0.0
  %1083 = vmatprep.subr.mxu0 0.0
  %1084 = vmatpush1.msra.mxu0 0.0
  %1085 = vmatprep.subr.mxu0 0.0
  %1086 = vmatpush1.msra.mxu0 0.0
  %1087 = vmatprep.subr.mxu0 0.0
  %1088 = vmatpush1.msra.mxu0 0.0
  %1089 = vmatprep.subr.mxu0 0.0
  %1090 = vmatpush1.msra.mxu0 0.0
  %1091 = vmatprep.subr.mxu0 0.0
  %1092 = vmatpush1.msra.mxu0 0.0
  %1093 = vmatprep.subr.mxu0 0.0
  %1094 = vmatpush1.msra.mxu0 0.0
  %1095 = vmatprep.subr.mxu0 0.0
  %1096 = vmatpush1.msra.mxu0 0.0
  %1097 = vmatprep.subr.mxu0 0.0
  %1098 = vmatpush1.msra.mxu0 0.0
  %1099 = vmatprep.subr.mxu0 0.0
  %1100 = vmatpush1.msra.mxu0 0.0
  %1101 = vmatprep.subr.mxu0 0.0
  %1102 = vmatpush1.msra.mxu0 0.0
  %1103 = vmatprep.subr.mxu0 0.0
  %1104 = vmatpush1.msra.mxu0 0.0
  %1105 = vmatprep.subr.mxu0 0.0
  %1106 = vmatpush1.msra.mxu0 0.0
  %1107 = vmatprep.subr.mxu0 0.0
  %1108 = vmatpush1.msra.mxu0 0.0
  %1109 = vmatprep.subr.mxu0 0.0
  %1110 = vmatpush1.msra.mxu0 0.0
  %1111 = vmatprep.subr.mxu0 0.0
  %1112 = vmatpush1.msra.mxu0 0.0
  %1113 = vmatprep.subr.mxu0 0.0
  %1114 = vmatpush1.msra.mxu0 0.0
  %1115 = vmatprep.subr.mxu0 0.0
  %1116 = vmatpush1.msra.mxu0 0.0
  %1117 = vmatprep.subr.mxu0 0.0
  %1118 = vmatpush1.msra.mxu0 0.0
  %1119 = vmatprep.mubr.f32.mxu0 0.0
  %1120 = vmatmul.mubr.f32.gmra.mrb[0].mxu0 %v1053
  %v1121 = vpop.f32.mrb[0].mxu0
  %v1122 = vadd.f32 0.0, %v1121
  %v1123 = vpop.f32.mrb[0].mxu0
  %1124 = vdwg.mxu0
  %v1126 = vrot.slane %v1122, 1
  %v1129 = vadd.f32 %v1047, %v1122
  %v1130 = vadd.f32 %v1048, %v1126
  %v1131 = vxor.u32 %v1129, 2147483648
  %v1132 = vxor.u32 %v1130, 2147483648
  %v1133 = vmul.f32 %v1131, 1.442695
  %v1134 = vpow.pop %v1133
  %v1135 = vmul.f32 %v1132, 1.442695
  %v1136 = vpow.pop %v1135
  %v1137 = vadd.f32 %v1134, 1.0
  %v1138 = vadd.f32 %v1136, 1.0
  %v1139 = vrcp.pop %v1137
  %v1140 = vmul.f32 1.0, %v1139
  %v1141 = vrcp.pop %v1138
  %v1142 = vmul.f32 1.0, %v1141
  %v1143 = vtanh.pop %v1129
  %v1144 = vtanh.pop %v1130
  %v1145 = vmul.f32 %v1140, %v1023
  %v1146 = vmul.f32 %v1142, %v1024
  %1149 = vrot.lane.b32.xlu0 %v1143, 64
  %v1150 = vpop.permute.xlu0 %1149
  %1151 = vrot.lane.b32.xlu0 %v1144, 64
  %v1152 = vpop.permute.xlu0 %1151
  %v1155 = vmul.f32 %v1140, %v1150
  %v1156 = vmul.f32 %v1142, %v1152
  %1159 = vrot.lane.b32.xlu0 %v1155, 32
  %v1160 = vpop.permute.xlu0 %1159
  %1161 = vrot.lane.b32.xlu0 %v1156, 32
  %v1162 = vpop.permute.xlu0 %1161
  %v1165 = vadd.f32 %v1145, %v1160
  %v1166 = vadd.f32 %v1146, %v1162
  %v1167 = vtanh.pop %v1165
  %v1168 = vtanh.pop %v1166
  %1171 = vrot.lane.b32.xlu0 %v1167, 64
  %v1172 = vpop.permute.xlu0 %1171
  %1173 = vrot.lane.b32.xlu0 %v1168, 64
  %v1174 = vpop.permute.xlu0 %1173
  %v1177 = vmul.f32 %v1140, %v1172
  %v1178 = vmul.f32 %v1142, %v1174
  %1180 = vrot.lane.b32.xlu0 %v1177, 32
  %v1181 = vpop.permute.xlu0 %1180
  %1183 = vst.msk [vmem:[#allocation3 + $0x4] sm:$0x1] %vm613, %v1181
  %1185 = vrot.lane.b32.xlu0 %v1178, 32
  %v1186 = vpop.permute.xlu0 %1185
  %1188 = vst.msk [vmem:[#allocation3 + $0xc] sm:$0x1] %vm613, %v1186
  %v1189 = vld [vmem:[#allocation2 + $0x5] ss:$0 sm:$0xff]
  %v1190 = vld [vmem:[#allocation2 + $0x15] ss:$0 sm:$0xff]
  %v1191 = vrot.slane %v1178, 7
  %v1192 = vsel %vm623, %v1191, %v1177
  %1193 = vrot.lane.b32.xlu0 %v1192, 32
  %v1194 = vpop.permute.xlu0 %1193
  %v1195 = vsel %vm367, %v1194, 0
  %1197 = vmatprep.subr.mxu0 0.0
  %1198 = vmatpush1.msra.mxu0 %v472
  %1199 = vmatprep.subr.mxu0 0.0
  %1200 = vmatpush1.msra.mxu0 %v473
  %1201 = vmatprep.subr.mxu0 0.0
  %1202 = vmatpush1.msra.mxu0 %v474
  %1203 = vmatprep.subr.mxu0 0.0
  %1204 = vmatpush1.msra.mxu0 %v475
  %1205 = vmatprep.subr.mxu0 0.0
  %1206 = vmatpush1.msra.mxu0 0.0
  %1207 = vmatprep.subr.mxu0 0.0
  %1208 = vmatpush1.msra.mxu0 0.0
  %1209 = vmatprep.subr.mxu0 0.0
  %1210 = vmatpush1.msra.mxu0 0.0
  %1211 = vmatprep.subr.mxu0 0.0
  %1212 = vmatpush1.msra.mxu0 0.0
  %1213 = vmatprep.subr.mxu0 0.0
  %1214 = vmatpush1.msra.mxu0 0.0
  %1215 = vmatprep.subr.mxu0 0.0
  %1216 = vmatpush1.msra.mxu0 0.0
  %1217 = vmatprep.subr.mxu0 0.0
  %1218 = vmatpush1.msra.mxu0 0.0
  %1219 = vmatprep.subr.mxu0 0.0
  %1220 = vmatpush1.msra.mxu0 0.0
  %1221 = vmatprep.subr.mxu0 0.0
  %1222 = vmatpush1.msra.mxu0 0.0
  %1223 = vmatprep.subr.mxu0 0.0
  %1224 = vmatpush1.msra.mxu0 0.0
  %1225 = vmatprep.subr.mxu0 0.0
  %1226 = vmatpush1.msra.mxu0 0.0
  %1227 = vmatprep.subr.mxu0 0.0
  %1228 = vmatpush1.msra.mxu0 0.0
  %1229 = vmatprep.subr.mxu0 0.0
  %1230 = vmatpush1.msra.mxu0 0.0
  %1231 = vmatprep.subr.mxu0 0.0
  %1232 = vmatpush1.msra.mxu0 0.0
  %1233 = vmatprep.subr.mxu0 0.0
  %1234 = vmatpush1.msra.mxu0 0.0
  %1235 = vmatprep.subr.mxu0 0.0
  %1236 = vmatpush1.msra.mxu0 0.0
  %1237 = vmatprep.subr.mxu0 0.0
  %1238 = vmatpush1.msra.mxu0 0.0
  %1239 = vmatprep.subr.mxu0 0.0
  %1240 = vmatpush1.msra.mxu0 0.0
  %1241 = vmatprep.subr.mxu0 0.0
  %1242 = vmatpush1.msra.mxu0 0.0
  %1243 = vmatprep.subr.mxu0 0.0
  %1244 = vmatpush1.msra.mxu0 0.0
  %1245 = vmatprep.subr.mxu0 0.0
  %1246 = vmatpush1.msra.mxu0 0.0
  %1247 = vmatprep.subr.mxu0 0.0
  %1248 = vmatpush1.msra.mxu0 0.0
  %1249 = vmatprep.subr.mxu0 0.0
  %1250 = vmatpush1.msra.mxu0 0.0
  %1251 = vmatprep.subr.mxu0 0.0
  %1252 = vmatpush1.msra.mxu0 0.0
  %1253 = vmatprep.subr.mxu0 0.0
  %1254 = vmatpush1.msra.mxu0 0.0
  %1255 = vmatprep.subr.mxu0 0.0
  %1256 = vmatpush1.msra.mxu0 0.0
  %1257 = vmatprep.subr.mxu0 0.0
  %1258 = vmatpush1.msra.mxu0 0.0
  %1259 = vmatprep.subr.mxu0 0.0
  %1260 = vmatpush1.msra.mxu0 0.0
  %1261 = vmatprep.mubr.f32.mxu0 0.0
  %1262 = vmatmul.mubr.f32.gmra.mrb[0].mxu0 %v1195
  %v1263 = vpop.f32.mrb[0].mxu0
  %v1264 = vadd.f32 0.0, %v1263
  %v1265 = vpop.f32.mrb[0].mxu0
  %1266 = vdwg.mxu0
  %v1268 = vrot.slane %v1264, 1
  %v1271 = vadd.f32 %v1189, %v1264
  %v1272 = vadd.f32 %v1190, %v1268
  %v1273 = vxor.u32 %v1271, 2147483648
  %v1274 = vxor.u32 %v1272, 2147483648
  %v1275 = vmul.f32 %v1273, 1.442695
  %v1276 = vpow.pop %v1275
  %v1277 = vmul.f32 %v1274, 1.442695
  %v1278 = vpow.pop %v1277
  %v1279 = vadd.f32 %v1276, 1.0
  %v1280 = vadd.f32 %v1278, 1.0
  %v1281 = vrcp.pop %v1279
  %v1282 = vmul.f32 1.0, %v1281
  %v1283 = vrcp.pop %v1280
  %v1284 = vmul.f32 1.0, %v1283
  %v1285 = vtanh.pop %v1271
  %v1286 = vtanh.pop %v1272
  %v1287 = vmul.f32 %v1282, %v1165
  %v1288 = vmul.f32 %v1284, %v1166
  %1291 = vrot.lane.b32.xlu0 %v1285, 64
  %v1292 = vpop.permute.xlu0 %1291
  %1293 = vrot.lane.b32.xlu0 %v1286, 64
  %v1294 = vpop.permute.xlu0 %1293
  %v1297 = vmul.f32 %v1282, %v1292
  %v1298 = vmul.f32 %v1284, %v1294
  %1301 = vrot.lane.b32.xlu0 %v1297, 32
  %v1302 = vpop.permute.xlu0 %1301
  %1303 = vrot.lane.b32.xlu0 %v1298, 32
  %v1304 = vpop.permute.xlu0 %1303
  %v1307 = vadd.f32 %v1287, %v1302
  %v1308 = vadd.f32 %v1288, %v1304
  %v1309 = vtanh.pop %v1307
  %v1310 = vtanh.pop %v1308
  %1313 = vrot.lane.b32.xlu0 %v1309, 64
  %v1314 = vpop.permute.xlu0 %1313
  %1315 = vrot.lane.b32.xlu0 %v1310, 64
  %v1316 = vpop.permute.xlu0 %1315
  %v1319 = vmul.f32 %v1282, %v1314
  %v1320 = vmul.f32 %v1284, %v1316
  %1322 = vrot.lane.b32.xlu0 %v1319, 32
  %v1323 = vpop.permute.xlu0 %1322
  %1325 = vst.msk [vmem:[#allocation3 + $0x5] sm:$0x1] %vm613, %v1323
  %1327 = vrot.lane.b32.xlu0 %v1320, 32
  %v1328 = vpop.permute.xlu0 %1327
  %1330 = vst.msk [vmem:[#allocation3 + $0xd] sm:$0x1] %vm613, %v1328
  %v1331 = vld [vmem:[#allocation2 + $0x6] ss:$0 sm:$0xff]
  %v1332 = vld [vmem:[#allocation2 + $0x16] ss:$0 sm:$0xff]
  %v1333 = vrot.slane %v1320, 7
  %v1334 = vsel %vm623, %v1333, %v1319
  %1335 = vrot.lane.b32.xlu0 %v1334, 32
  %v1336 = vpop.permute.xlu0 %1335
  %v1337 = vsel %vm367, %v1336, 0
  %1339 = vmatprep.subr.mxu0 0.0
  %1340 = vmatpush1.msra.mxu0 %v472
  %1341 = vmatprep.subr.mxu0 0.0
  %1342 = vmatpush1.msra.mxu0 %v473
  %1343 = vmatprep.subr.mxu0 0.0
  %1344 = vmatpush1.msra.mxu0 %v474
  %1345 = vmatprep.subr.mxu0 0.0
  %1346 = vmatpush1.msra.mxu0 %v475
  %1347 = vmatprep.subr.mxu0 0.0
  %1348 = vmatpush1.msra.mxu0 0.0
  %1349 = vmatprep.subr.mxu0 0.0
  %1350 = vmatpush1.msra.mxu0 0.0
  %1351 = vmatprep.subr.mxu0 0.0
  %1352 = vmatpush1.msra.mxu0 0.0
  %1353 = vmatprep.subr.mxu0 0.0
  %1354 = vmatpush1.msra.mxu0 0.0
  %1355 = vmatprep.subr.mxu0 0.0
  %1356 = vmatpush1.msra.mxu0 0.0
  %1357 = vmatprep.subr.mxu0 0.0
  %1358 = vmatpush1.msra.mxu0 0.0
  %1359 = vmatprep.subr.mxu0 0.0
  %1360 = vmatpush1.msra.mxu0 0.0
  %1361 = vmatprep.subr.mxu0 0.0
  %1362 = vmatpush1.msra.mxu0 0.0
  %1363 = vmatprep.subr.mxu0 0.0
  %1364 = vmatpush1.msra.mxu0 0.0
  %1365 = vmatprep.subr.mxu0 0.0
  %1366 = vmatpush1.msra.mxu0 0.0
  %1367 = vmatprep.subr.mxu0 0.0
  %1368 = vmatpush1.msra.mxu0 0.0
  %1369 = vmatprep.subr.mxu0 0.0
  %1370 = vmatpush1.msra.mxu0 0.0
  %1371 = vmatprep.subr.mxu0 0.0
  %1372 = vmatpush1.msra.mxu0 0.0
  %1373 = vmatprep.subr.mxu0 0.0
  %1374 = vmatpush1.msra.mxu0 0.0
  %1375 = vmatprep.subr.mxu0 0.0
  %1376 = vmatpush1.msra.mxu0 0.0
  %1377 = vmatprep.subr.mxu0 0.0
  %1378 = vmatpush1.msra.mxu0 0.0
  %1379 = vmatprep.subr.mxu0 0.0
  %1380 = vmatpush1.msra.mxu0 0.0
  %1381 = vmatprep.subr.mxu0 0.0
  %1382 = vmatpush1.msra.mxu0 0.0
  %1383 = vmatprep.subr.mxu0 0.0
  %1384 = vmatpush1.msra.mxu0 0.0
  %1385 = vmatprep.subr.mxu0 0.0
  %1386 = vmatpush1.msra.mxu0 0.0
  %1387 = vmatprep.subr.mxu0 0.0
  %1388 = vmatpush1.msra.mxu0 0.0
  %1389 = vmatprep.subr.mxu0 0.0
  %1390 = vmatpush1.msra.mxu0 0.0
  %1391 = vmatprep.subr.mxu0 0.0
  %1392 = vmatpush1.msra.mxu0 0.0
  %1393 = vmatprep.subr.mxu0 0.0
  %1394 = vmatpush1.msra.mxu0 0.0
  %1395 = vmatprep.subr.mxu0 0.0
  %1396 = vmatpush1.msra.mxu0 0.0
  %1397 = vmatprep.subr.mxu0 0.0
  %1398 = vmatpush1.msra.mxu0 0.0
  %1399 = vmatprep.subr.mxu0 0.0
  %1400 = vmatpush1.msra.mxu0 0.0
  %1401 = vmatprep.subr.mxu0 0.0
  %1402 = vmatpush1.msra.mxu0 0.0
  %1403 = vmatprep.mubr.f32.mxu0 0.0
  %1404 = vmatmul.mubr.f32.gmra.mrb[0].mxu0 %v1337
  %v1405 = vpop.f32.mrb[0].mxu0
  %v1406 = vadd.f32 0.0, %v1405
  %v1407 = vpop.f32.mrb[0].mxu0
  %1408 = vdwg.mxu0
  %v1410 = vrot.slane %v1406, 1
  %v1413 = vadd.f32 %v1331, %v1406
  %v1414 = vadd.f32 %v1332, %v1410
  %v1415 = vxor.u32 %v1413, 2147483648
  %v1416 = vxor.u32 %v1414, 2147483648
  %v1417 = vmul.f32 %v1415, 1.442695
  %v1418 = vpow.pop %v1417
  %v1419 = vmul.f32 %v1416, 1.442695
  %v1420 = vpow.pop %v1419
  %v1421 = vadd.f32 %v1418, 1.0
  %v1422 = vadd.f32 %v1420, 1.0
  %v1423 = vrcp.pop %v1421
  %v1424 = vmul.f32 1.0, %v1423
  %v1425 = vrcp.pop %v1422
  %v1426 = vmul.f32 1.0, %v1425
  %v1427 = vtanh.pop %v1413
  %v1428 = vtanh.pop %v1414
  %v1429 = vmul.f32 %v1424, %v1307
  %v1430 = vmul.f32 %v1426, %v1308
  %1433 = vrot.lane.b32.xlu0 %v1427, 64
  %v1434 = vpop.permute.xlu0 %1433
  %1435 = vrot.lane.b32.xlu0 %v1428, 64
  %v1436 = vpop.permute.xlu0 %1435
  %v1439 = vmul.f32 %v1424, %v1434
  %v1440 = vmul.f32 %v1426, %v1436
  %1443 = vrot.lane.b32.xlu0 %v1439, 32
  %v1444 = vpop.permute.xlu0 %1443
  %1445 = vrot.lane.b32.xlu0 %v1440, 32
  %v1446 = vpop.permute.xlu0 %1445
  %v1449 = vadd.f32 %v1429, %v1444
  %v1450 = vadd.f32 %v1430, %v1446
  %v1451 = vtanh.pop %v1449
  %v1452 = vtanh.pop %v1450
  %1455 = vrot.lane.b32.xlu0 %v1451, 64
  %v1456 = vpop.permute.xlu0 %1455
  %1457 = vrot.lane.b32.xlu0 %v1452, 64
  %v1458 = vpop.permute.xlu0 %1457
  %v1461 = vmul.f32 %v1424, %v1456
  %v1462 = vmul.f32 %v1426, %v1458
  %1464 = vrot.lane.b32.xlu0 %v1461, 32
  %v1465 = vpop.permute.xlu0 %1464
  %1467 = vst.msk [vmem:[#allocation3 + $0x6] sm:$0x1] %vm613, %v1465
  %1469 = vrot.lane.b32.xlu0 %v1462, 32
  %v1470 = vpop.permute.xlu0 %1469
  %1472 = vst.msk [vmem:[#allocation3 + $0xe] sm:$0x1] %vm613, %v1470
  %v1473 = vld [vmem:[#allocation2 + $0x7] ss:$0 sm:$0xff]
  %v1474 = vld [vmem:[#allocation2 + $0x17] ss:$0 sm:$0xff]
  %v1475 = vrot.slane %v1462, 7
  %v1476 = vsel %vm623, %v1475, %v1461
  %1477 = vrot.lane.b32.xlu0 %v1476, 32
  %v1478 = vpop.permute.xlu0 %1477
  %v1479 = vsel %vm367, %v1478, 0
  %1481 = vmatprep.subr.mxu0 0.0
  %1482 = vmatpush1.msra.mxu0 %v472
  %1483 = vmatprep.subr.mxu0 0.0
  %1484 = vmatpush1.msra.mxu0 %v473
  %1485 = vmatprep.subr.mxu0 0.0
  %1486 = vmatpush1.msra.mxu0 %v474
  %1487 = vmatprep.subr.mxu0 0.0
  %1488 = vmatpush1.msra.mxu0 %v475
  %1489 = vmatprep.subr.mxu0 0.0
  %1490 = vmatpush1.msra.mxu0 0.0
  %1491 = vmatprep.subr.mxu0 0.0
  %1492 = vmatpush1.msra.mxu0 0.0
  %1493 = vmatprep.subr.mxu0 0.0
  %1494 = vmatpush1.msra.mxu0 0.0
  %1495 = vmatprep.subr.mxu0 0.0
  %1496 = vmatpush1.msra.mxu0 0.0
  %1497 = vmatprep.subr.mxu0 0.0
  %1498 = vmatpush1.msra.mxu0 0.0
  %1499 = vmatprep.subr.mxu0 0.0
  %1500 = vmatpush1.msra.mxu0 0.0
  %1501 = vmatprep.subr.mxu0 0.0
  %1502 = vmatpush1.msra.mxu0 0.0
  %1503 = vmatprep.subr.mxu0 0.0
  %1504 = vmatpush1.msra.mxu0 0.0
  %1505 = vmatprep.subr.mxu0 0.0
  %1506 = vmatpush1.msra.mxu0 0.0
  %1507 = vmatprep.subr.mxu0 0.0
  %1508 = vmatpush1.msra.mxu0 0.0
  %1509 = vmatprep.subr.mxu0 0.0
  %1510 = vmatpush1.msra.mxu0 0.0
  %1511 = vmatprep.subr.mxu0 0.0
  %1512 = vmatpush1.msra.mxu0 0.0
  %1513 = vmatprep.subr.mxu0 0.0
  %1514 = vmatpush1.msra.mxu0 0.0
  %1515 = vmatprep.subr.mxu0 0.0
  %1516 = vmatpush1.msra.mxu0 0.0
  %1517 = vmatprep.subr.mxu0 0.0
  %1518 = vmatpush1.msra.mxu0 0.0
  %1519 = vmatprep.subr.mxu0 0.0
  %1520 = vmatpush1.msra.mxu0 0.0
  %1521 = vmatprep.subr.mxu0 0.0
  %1522 = vmatpush1.msra.mxu0 0.0
  %1523 = vmatprep.subr.mxu0 0.0
  %1524 = vmatpush1.msra.mxu0 0.0
  %1525 = vmatprep.subr.mxu0 0.0
  %1526 = vmatpush1.msra.mxu0 0.0
  %1527 = vmatprep.subr.mxu0 0.0
  %1528 = vmatpush1.msra.mxu0 0.0
  %1529 = vmatprep.subr.mxu0 0.0
  %1530 = vmatpush1.msra.mxu0 0.0
  %1531 = vmatprep.subr.mxu0 0.0
  %1532 = vmatpush1.msra.mxu0 0.0
  %1533 = vmatprep.subr.mxu0 0.0
  %1534 = vmatpush1.msra.mxu0 0.0
  %1535 = vmatprep.subr.mxu0 0.0
  %1536 = vmatpush1.msra.mxu0 0.0
  %1537 = vmatprep.subr.mxu0 0.0
  %1538 = vmatpush1.msra.mxu0 0.0
  %1539 = vmatprep.subr.mxu0 0.0
  %1540 = vmatpush1.msra.mxu0 0.0
  %1541 = vmatprep.subr.mxu0 0.0
  %1542 = vmatpush1.msra.mxu0 0.0
  %1543 = vmatprep.subr.mxu0 0.0
  %1544 = vmatpush1.msra.mxu0 0.0
  %1545 = vmatprep.mubr.f32.mxu0 0.0
  %1546 = vmatmul.mubr.f32.gmra.mrb[0].mxu0 %v1479
  %v1547 = vpop.f32.mrb[0].mxu0
  %v1548 = vadd.f32 0.0, %v1547
  %v1549 = vpop.f32.mrb[0].mxu0
  %1550 = vdwg.mxu0
  %v1552 = vrot.slane %v1548, 1
  %v1555 = vadd.f32 %v1473, %v1548
  %v1556 = vadd.f32 %v1474, %v1552
  %v1557 = vxor.u32 %v1555, 2147483648
  %v1558 = vxor.u32 %v1556, 2147483648
  %v1559 = vmul.f32 %v1557, 1.442695
  %v1560 = vpow.pop %v1559
  %v1561 = vmul.f32 %v1558, 1.442695
  %v1562 = vpow.pop %v1561
  %v1563 = vadd.f32 %v1560, 1.0
  %v1564 = vadd.f32 %v1562, 1.0
  %v1565 = vrcp.pop %v1563
  %v1566 = vmul.f32 1.0, %v1565
  %v1567 = vrcp.pop %v1564
  %v1568 = vmul.f32 1.0, %v1567
  %v1569 = vtanh.pop %v1555
  %v1570 = vtanh.pop %v1556
  %v1571 = vmul.f32 %v1566, %v1449
  %v1572 = vmul.f32 %v1568, %v1450
  %1575 = vrot.lane.b32.xlu0 %v1569, 64
  %v1576 = vpop.permute.xlu0 %1575
  %1577 = vrot.lane.b32.xlu0 %v1570, 64
  %v1578 = vpop.permute.xlu0 %1577
  %v1581 = vmul.f32 %v1566, %v1576
  %v1582 = vmul.f32 %v1568, %v1578
  %1585 = vrot.lane.b32.xlu0 %v1581, 32
  %v1586 = vpop.permute.xlu0 %1585
  %1587 = vrot.lane.b32.xlu0 %v1582, 32
  %v1588 = vpop.permute.xlu0 %1587
  %v1591 = vadd.f32 %v1571, %v1586
  %v1592 = vadd.f32 %v1572, %v1588
  %v1593 = vtanh.pop %v1591
  %v1594 = vtanh.pop %v1592
  %1597 = vrot.lane.b32.xlu0 %v1593, 64
  %v1598 = vpop.permute.xlu0 %1597
  %1599 = vrot.lane.b32.xlu0 %v1594, 64
  %v1600 = vpop.permute.xlu0 %1599
  %v1603 = vmul.f32 %v1566, %v1598
  %v1604 = vmul.f32 %v1568, %v1600
  %1606 = vrot.lane.b32.xlu0 %v1603, 32
  %v1607 = vpop.permute.xlu0 %1606
  %1609 = vst.msk [vmem:[#allocation3 + $0x7] sm:$0x1] %vm613, %v1607
  %1611 = vrot.lane.b32.xlu0 %v1604, 32
  %v1612 = vpop.permute.xlu0 %1611
  %1614 = vst.msk [vmem:[#allocation3 + $0xf] sm:$0x1] %vm613, %v1612
  %v1615 = vld [vmem:[#allocation2 + $0xf] ss:$0 sm:$0xff]
  %v1616 = vld [vmem:[#allocation2 + $0x1f] ss:$0 sm:$0xff]
  %1617 = vmatprep.subr.mxu0 0.0
  %1618 = vmatpush1.msra.mxu0 %v476
  %1619 = vmatprep.subr.mxu0 0.0
  %1620 = vmatpush1.msra.mxu0 %v477
  %1621 = vmatprep.subr.mxu0 0.0
  %1622 = vmatpush1.msra.mxu0 %v478
  %1623 = vmatprep.subr.mxu0 0.0
  %1624 = vmatpush1.msra.mxu0 %v479
  %1625 = vmatprep.subr.mxu0 0.0
  %1626 = vmatpush1.msra.mxu0 0.0
  %1627 = vmatprep.subr.mxu0 0.0
  %1628 = vmatpush1.msra.mxu0 0.0
  %1629 = vmatprep.subr.mxu0 0.0
  %1630 = vmatpush1.msra.mxu0 0.0
  %1631 = vmatprep.subr.mxu0 0.0
  %1632 = vmatpush1.msra.mxu0 0.0
  %1633 = vmatprep.subr.mxu0 0.0
  %1634 = vmatpush1.msra.mxu0 0.0
  %1635 = vmatprep.subr.mxu0 0.0
  %1636 = vmatpush1.msra.mxu0 0.0
  %1637 = vmatprep.subr.mxu0 0.0
  %1638 = vmatpush1.msra.mxu0 0.0
  %1639 = vmatprep.subr.mxu0 0.0
  %1640 = vmatpush1.msra.mxu0 0.0
  %1641 = vmatprep.subr.mxu0 0.0
  %1642 = vmatpush1.msra.mxu0 0.0
  %1643 = vmatprep.subr.mxu0 0.0
  %1644 = vmatpush1.msra.mxu0 0.0
  %1645 = vmatprep.subr.mxu0 0.0
  %1646 = vmatpush1.msra.mxu0 0.0
  %1647 = vmatprep.subr.mxu0 0.0
  %1648 = vmatpush1.msra.mxu0 0.0
  %1649 = vmatprep.subr.mxu0 0.0
  %1650 = vmatpush1.msra.mxu0 0.0
  %1651 = vmatprep.subr.mxu0 0.0
  %1652 = vmatpush1.msra.mxu0 0.0
  %1653 = vmatprep.subr.mxu0 0.0
  %1654 = vmatpush1.msra.mxu0 0.0
  %1655 = vmatprep.subr.mxu0 0.0
  %1656 = vmatpush1.msra.mxu0 0.0
  %1657 = vmatprep.subr.mxu0 0.0
  %1658 = vmatpush1.msra.mxu0 0.0
  %1659 = vmatprep.subr.mxu0 0.0
  %1660 = vmatpush1.msra.mxu0 0.0
  %1661 = vmatprep.subr.mxu0 0.0
  %1662 = vmatpush1.msra.mxu0 0.0
  %1663 = vmatprep.subr.mxu0 0.0
  %1664 = vmatpush1.msra.mxu0 0.0
  %1665 = vmatprep.subr.mxu0 0.0
  %1666 = vmatpush1.msra.mxu0 0.0
  %1667 = vmatprep.subr.mxu0 0.0
  %1668 = vmatpush1.msra.mxu0 0.0
  %1669 = vmatprep.subr.mxu0 0.0
  %1670 = vmatpush1.msra.mxu0 0.0
  %1671 = vmatprep.subr.mxu0 0.0
  %1672 = vmatpush1.msra.mxu0 0.0
  %1673 = vmatprep.subr.mxu0 0.0
  %1674 = vmatpush1.msra.mxu0 0.0
  %1675 = vmatprep.subr.mxu0 0.0
  %1676 = vmatpush1.msra.mxu0 0.0
  %1677 = vmatprep.subr.mxu0 0.0
  %1678 = vmatpush1.msra.mxu0 0.0
  %1679 = vmatprep.subr.mxu0 0.0
  %1680 = vmatpush1.msra.mxu0 0.0
  %1681 = vmatprep.mubr.f32.mxu0 0.0
  %1682 = vmatmul.mubr.f32.gmra.mrb[0].mxu0 %v483
  %v1683 = vpop.f32.mrb[0].mxu0
  %v1684 = vadd.f32 0.0, %v1683
  %v1685 = vpop.f32.mrb[0].mxu0
  %1686 = vdwg.mxu0
  %v1688 = vrot.slane %v1684, 1
  %v1691 = vadd.f32 %v1615, %v1684
  %v1692 = vadd.f32 %v1616, %v1688
  %v1693 = vxor.u32 %v1691, 2147483648
  %v1694 = vxor.u32 %v1692, 2147483648
  %v1695 = vmul.f32 %v1693, 1.442695
  %v1696 = vpow.pop %v1695
  %v1697 = vmul.f32 %v1694, 1.442695
  %v1698 = vpow.pop %v1697
  %v1699 = vadd.f32 %v1696, 1.0
  %v1700 = vadd.f32 %v1698, 1.0
  %v1701 = vrcp.pop %v1699
  %v1702 = vmul.f32 1.0, %v1701
  %v1703 = vrcp.pop %v1700
  %v1704 = vmul.f32 1.0, %v1703
  %v1705 = vtanh.pop %v1691
  %v1706 = vtanh.pop %v1692
  %v1707 = vmul.f32 %v1702, 0.0
  %v1708 = vmul.f32 %v1704, 0.0
  %1711 = vrot.lane.b32.xlu0 %v1705, 64
  %v1712 = vpop.permute.xlu0 %1711
  %1713 = vrot.lane.b32.xlu0 %v1706, 64
  %v1714 = vpop.permute.xlu0 %1713
  %v1717 = vmul.f32 %v1702, %v1712
  %v1718 = vmul.f32 %v1704, %v1714
  %1721 = vrot.lane.b32.xlu0 %v1717, 32
  %v1722 = vpop.permute.xlu0 %1721
  %1723 = vrot.lane.b32.xlu0 %v1718, 32
  %v1724 = vpop.permute.xlu0 %1723
  %v1727 = vadd.f32 %v1707, %v1722
  %v1728 = vadd.f32 %v1708, %v1724
  %v1729 = vtanh.pop %v1727
  %v1730 = vtanh.pop %v1728
  %1733 = vrot.lane.b32.xlu0 %v1729, 64
  %v1734 = vpop.permute.xlu0 %1733
  %1735 = vrot.lane.b32.xlu0 %v1730, 64
  %v1736 = vpop.permute.xlu0 %1735
  %v1739 = vmul.f32 %v1702, %v1734
  %v1740 = vmul.f32 %v1704, %v1736
  %1742 = vrot.lane.b32.xlu0 %v1739, 32
  %v1743 = vpop.permute.xlu0 %1742
  %1745 = vst.msk [vmem:[#allocation4 + $0x7] sm:$0x1] %vm613, %v1743
  %1747 = vrot.lane.b32.xlu0 %v1740, 32
  %v1748 = vpop.permute.xlu0 %1747
  %1750 = vst.msk [vmem:[#allocation4 + $0xf] sm:$0x1] %vm613, %v1748
  %v1751 = vld [vmem:[#allocation2 + $0xe] ss:$0 sm:$0xff]
  %v1752 = vld [vmem:[#allocation2 + $0x1e] ss:$0 sm:$0xff]
  %v1753 = vrot.slane %v1740, 7
  %v1754 = vsel %vm623, %v1753, %v1739
  %1755 = vrot.lane.b32.xlu0 %v1754, 32
  %v1756 = vpop.permute.xlu0 %1755
  %v1757 = vsel %vm367, %v1756, 0
  %1759 = vmatprep.subr.mxu0 0.0
  %1760 = vmatpush1.msra.mxu0 %v476
  %1761 = vmatprep.subr.mxu0 0.0
  %1762 = vmatpush1.msra.mxu0 %v477
  %1763 = vmatprep.subr.mxu0 0.0
  %1764 = vmatpush1.msra.mxu0 %v478
  %1765 = vmatprep.subr.mxu0 0.0
  %1766 = vmatpush1.msra.mxu0 %v479
  %1767 = vmatprep.subr.mxu0 0.0
  %1768 = vmatpush1.msra.mxu0 0.0
  %1769 = vmatprep.subr.mxu0 0.0
  %1770 = vmatpush1.msra.mxu0 0.0
  %1771 = vmatprep.subr.mxu0 0.0
  %1772 = vmatpush1.msra.mxu0 0.0
  %1773 = vmatprep.subr.mxu0 0.0
  %1774 = vmatpush1.msra.mxu0 0.0
  %1775 = vmatprep.subr.mxu0 0.0
  %1776 = vmatpush1.msra.mxu0 0.0
  %1777 = vmatprep.subr.mxu0 0.0
  %1778 = vmatpush1.msra.mxu0 0.0
  %1779 = vmatprep.subr.mxu0 0.0
  %1780 = vmatpush1.msra.mxu0 0.0
  %1781 = vmatprep.subr.mxu0 0.0
  %1782 = vmatpush1.msra.mxu0 0.0
  %1783 = vmatprep.subr.mxu0 0.0
  %1784 = vmatpush1.msra.mxu0 0.0
  %1785 = vmatprep.subr.mxu0 0.0
  %1786 = vmatpush1.msra.mxu0 0.0
  %1787 = vmatprep.subr.mxu0 0.0
  %1788 = vmatpush1.msra.mxu0 0.0
  %1789 = vmatprep.subr.mxu0 0.0
  %1790 = vmatpush1.msra.mxu0 0.0
  %1791 = vmatprep.subr.mxu0 0.0
  %1792 = vmatpush1.msra.mxu0 0.0
  %1793 = vmatprep.subr.mxu0 0.0
  %1794 = vmatpush1.msra.mxu0 0.0
  %1795 = vmatprep.subr.mxu0 0.0
  %1796 = vmatpush1.msra.mxu0 0.0
  %1797 = vmatprep.subr.mxu0 0.0
  %1798 = vmatpush1.msra.mxu0 0.0
  %1799 = vmatprep.subr.mxu0 0.0
  %1800 = vmatpush1.msra.mxu0 0.0
  %1801 = vmatprep.subr.mxu0 0.0
  %1802 = vmatpush1.msra.mxu0 0.0
  %1803 = vmatprep.subr.mxu0 0.0
  %1804 = vmatpush1.msra.mxu0 0.0
  %1805 = vmatprep.subr.mxu0 0.0
  %1806 = vmatpush1.msra.mxu0 0.0
  %1807 = vmatprep.subr.mxu0 0.0
  %1808 = vmatpush1.msra.mxu0 0.0
  %1809 = vmatprep.subr.mxu0 0.0
  %1810 = vmatpush1.msra.mxu0 0.0
  %1811 = vmatprep.subr.mxu0 0.0
  %1812 = vmatpush1.msra.mxu0 0.0
  %1813 = vmatprep.subr.mxu0 0.0
  %1814 = vmatpush1.msra.mxu0 0.0
  %1815 = vmatprep.subr.mxu0 0.0
  %1816 = vmatpush1.msra.mxu0 0.0
  %1817 = vmatprep.subr.mxu0 0.0
  %1818 = vmatpush1.msra.mxu0 0.0
  %1819 = vmatprep.subr.mxu0 0.0
  %1820 = vmatpush1.msra.mxu0 0.0
  %1821 = vmatprep.subr.mxu0 0.0
  %1822 = vmatpush1.msra.mxu0 0.0
  %1823 = vmatprep.mubr.f32.mxu0 0.0
  %1824 = vmatmul.mubr.f32.gmra.mrb[0].mxu0 %v1757
  %v1825 = vpop.f32.mrb[0].mxu0
  %v1826 = vadd.f32 0.0, %v1825
  %v1827 = vpop.f32.mrb[0].mxu0
  %1828 = vdwg.mxu0
  %v1830 = vrot.slane %v1826, 1
  %v1833 = vadd.f32 %v1751, %v1826
  %v1834 = vadd.f32 %v1752, %v1830
  %v1835 = vxor.u32 %v1833, 2147483648
  %v1836 = vxor.u32 %v1834, 2147483648
  %v1837 = vmul.f32 %v1835, 1.442695
  %v1838 = vpow.pop %v1837
  %v1839 = vmul.f32 %v1836, 1.442695
  %v1840 = vpow.pop %v1839
  %v1841 = vadd.f32 %v1838, 1.0
  %v1842 = vadd.f32 %v1840, 1.0
  %v1843 = vrcp.pop %v1841
  %v1844 = vmul.f32 1.0, %v1843
  %v1845 = vrcp.pop %v1842
  %v1846 = vmul.f32 1.0, %v1845
  %v1847 = vtanh.pop %v1833
  %v1848 = vtanh.pop %v1834
  %v1849 = vmul.f32 %v1844, %v1727
  %v1850 = vmul.f32 %v1846, %v1728
  %1853 = vrot.lane.b32.xlu0 %v1847, 64
  %v1854 = vpop.permute.xlu0 %1853
  %1855 = vrot.lane.b32.xlu0 %v1848, 64
  %v1856 = vpop.permute.xlu0 %1855
  %v1859 = vmul.f32 %v1844, %v1854
  %v1860 = vmul.f32 %v1846, %v1856
  %1863 = vrot.lane.b32.xlu0 %v1859, 32
  %v1864 = vpop.permute.xlu0 %1863
  %1865 = vrot.lane.b32.xlu0 %v1860, 32
  %v1866 = vpop.permute.xlu0 %1865
  %v1869 = vadd.f32 %v1849, %v1864
  %v1870 = vadd.f32 %v1850, %v1866
  %v1871 = vtanh.pop %v1869
  %v1872 = vtanh.pop %v1870
  %1875 = vrot.lane.b32.xlu0 %v1871, 64
  %v1876 = vpop.permute.xlu0 %1875
  %1877 = vrot.lane.b32.xlu0 %v1872, 64
  %v1878 = vpop.permute.xlu0 %1877
  %v1881 = vmul.f32 %v1844, %v1876
  %v1882 = vmul.f32 %v1846, %v1878
  %1884 = vrot.lane.b32.xlu0 %v1881, 32
  %v1885 = vpop.permute.xlu0 %1884
  %1887 = vst.msk [vmem:[#allocation4 + $0x6] sm:$0x1] %vm613, %v1885
  %1889 = vrot.lane.b32.xlu0 %v1882, 32
  %v1890 = vpop.permute.xlu0 %1889
  %1892 = vst.msk [vmem:[#allocation4 + $0xe] sm:$0x1] %vm613, %v1890
  %v1893 = vld [vmem:[#allocation2 + $0xd] ss:$0 sm:$0xff]
  %v1894 = vld [vmem:[#allocation2 + $0x1d] ss:$0 sm:$0xff]
  %v1895 = vrot.slane %v1882, 7
  %v1896 = vsel %vm623, %v1895, %v1881
  %1897 = vrot.lane.b32.xlu0 %v1896, 32
  %v1898 = vpop.permute.xlu0 %1897
  %v1899 = vsel %vm367, %v1898, 0
  %1901 = vmatprep.subr.mxu0 0.0
  %1902 = vmatpush1.msra.mxu0 %v476
  %1903 = vmatprep.subr.mxu0 0.0
  %1904 = vmatpush1.msra.mxu0 %v477
  %1905 = vmatprep.subr.mxu0 0.0
  %1906 = vmatpush1.msra.mxu0 %v478
  %1907 = vmatprep.subr.mxu0 0.0
  %1908 = vmatpush1.msra.mxu0 %v479
  %1909 = vmatprep.subr.mxu0 0.0
  %1910 = vmatpush1.msra.mxu0 0.0
  %1911 = vmatprep.subr.mxu0 0.0
  %1912 = vmatpush1.msra.mxu0 0.0
  %1913 = vmatprep.subr.mxu0 0.0
  %1914 = vmatpush1.msra.mxu0 0.0
  %1915 = vmatprep.subr.mxu0 0.0
  %1916 = vmatpush1.msra.mxu0 0.0
  %1917 = vmatprep.subr.mxu0 0.0
  %1918 = vmatpush1.msra.mxu0 0.0
  %1919 = vmatprep.subr.mxu0 0.0
  %1920 = vmatpush1.msra.mxu0 0.0
  %1921 = vmatprep.subr.mxu0 0.0
  %1922 = vmatpush1.msra.mxu0 0.0
  %1923 = vmatprep.subr.mxu0 0.0
  %1924 = vmatpush1.msra.mxu0 0.0
  %1925 = vmatprep.subr.mxu0 0.0
  %1926 = vmatpush1.msra.mxu0 0.0
  %1927 = vmatprep.subr.mxu0 0.0
  %1928 = vmatpush1.msra.mxu0 0.0
  %1929 = vmatprep.subr.mxu0 0.0
  %1930 = vmatpush1.msra.mxu0 0.0
  %1931 = vmatprep.subr.mxu0 0.0
  %1932 = vmatpush1.msra.mxu0 0.0
  %1933 = vmatprep.subr.mxu0 0.0
  %1934 = vmatpush1.msra.mxu0 0.0
  %1935 = vmatprep.subr.mxu0 0.0
  %1936 = vmatpush1.msra.mxu0 0.0
  %1937 = vmatprep.subr.mxu0 0.0
  %1938 = vmatpush1.msra.mxu0 0.0
  %1939 = vmatprep.subr.mxu0 0.0
  %1940 = vmatpush1.msra.mxu0 0.0
  %1941 = vmatprep.subr.mxu0 0.0
  %1942 = vmatpush1.msra.mxu0 0.0
  %1943 = vmatprep.subr.mxu0 0.0
  %1944 = vmatpush1.msra.mxu0 0.0
  %1945 = vmatprep.subr.mxu0 0.0
  %1946 = vmatpush1.msra.mxu0 0.0
  %1947 = vmatprep.subr.mxu0 0.0
  %1948 = vmatpush1.msra.mxu0 0.0
  %1949 = vmatprep.subr.mxu0 0.0
  %1950 = vmatpush1.msra.mxu0 0.0
  %1951 = vmatprep.subr.mxu0 0.0
  %1952 = vmatpush1.msra.mxu0 0.0
  %1953 = vmatprep.subr.mxu0 0.0
  %1954 = vmatpush1.msra.mxu0 0.0
  %1955 = vmatprep.subr.mxu0 0.0
  %1956 = vmatpush1.msra.mxu0 0.0
  %1957 = vmatprep.subr.mxu0 0.0
  %1958 = vmatpush1.msra.mxu0 0.0
  %1959 = vmatprep.subr.mxu0 0.0
  %1960 = vmatpush1.msra.mxu0 0.0
  %1961 = vmatprep.subr.mxu0 0.0
  %1962 = vmatpush1.msra.mxu0 0.0
  %1963 = vmatprep.subr.mxu0 0.0
  %1964 = vmatpush1.msra.mxu0 0.0
  %1965 = vmatprep.mubr.f32.mxu0 0.0
  %1966 = vmatmul.mubr.f32.gmra.mrb[0].mxu0 %v1899
  %v1967 = vpop.f32.mrb[0].mxu0
  %v1968 = vadd.f32 0.0, %v1967
  %v1969 = vpop.f32.mrb[0].mxu0
  %1970 = vdwg.mxu0
  %v1972 = vrot.slane %v1968, 1
  %v1975 = vadd.f32 %v1893, %v1968
  %v1976 = vadd.f32 %v1894, %v1972
  %v1977 = vxor.u32 %v1975, 2147483648
  %v1978 = vxor.u32 %v1976, 2147483648
  %v1979 = vmul.f32 %v1977, 1.442695
  %v1980 = vpow.pop %v1979
  %v1981 = vmul.f32 %v1978, 1.442695
  %v1982 = vpow.pop %v1981
  %v1983 = vadd.f32 %v1980, 1.0
  %v1984 = vadd.f32 %v1982, 1.0
  %v1985 = vrcp.pop %v1983
  %v1986 = vmul.f32 1.0, %v1985
  %v1987 = vrcp.pop %v1984
  %v1988 = vmul.f32 1.0, %v1987
  %v1989 = vtanh.pop %v1975
  %v1990 = vtanh.pop %v1976
  %v1991 = vmul.f32 %v1986, %v1869
  %v1992 = vmul.f32 %v1988, %v1870
  %1995 = vrot.lane.b32.xlu0 %v1989, 64
  %v1996 = vpop.permute.xlu0 %1995
  %1997 = vrot.lane.b32.xlu0 %v1990, 64
  %v1998 = vpop.permute.xlu0 %1997
  %v2001 = vmul.f32 %v1986, %v1996
  %v2002 = vmul.f32 %v1988, %v1998
  %2005 = vrot.lane.b32.xlu0 %v2001, 32
  %v2006 = vpop.permute.xlu0 %2005
  %2007 = vrot.lane.b32.xlu0 %v2002, 32
  %v2008 = vpop.permute.xlu0 %2007
  %v2011 = vadd.f32 %v1991, %v2006
  %v2012 = vadd.f32 %v1992, %v2008
  %v2013 = vtanh.pop %v2011
  %v2014 = vtanh.pop %v2012
  %2017 = vrot.lane.b32.xlu0 %v2013, 64
  %v2018 = vpop.permute.xlu0 %2017
  %2019 = vrot.lane.b32.xlu0 %v2014, 64
  %v2020 = vpop.permute.xlu0 %2019
  %v2023 = vmul.f32 %v1986, %v2018
  %v2024 = vmul.f32 %v1988, %v2020
  %2026 = vrot.lane.b32.xlu0 %v2023, 32
  %v2027 = vpop.permute.xlu0 %2026
  %2029 = vst.msk [vmem:[#allocation4 + $0x5] sm:$0x1] %vm613, %v2027
  %2031 = vrot.lane.b32.xlu0 %v2024, 32
  %v2032 = vpop.permute.xlu0 %2031
  %2034 = vst.msk [vmem:[#allocation4 + $0xd] sm:$0x1] %vm613, %v2032
  %v2035 = vld [vmem:[#allocation2 + $0xc] ss:$0 sm:$0xff]
  %v2036 = vld [vmem:[#allocation2 + $0x1c] ss:$0 sm:$0xff]
  %v2037 = vrot.slane %v2024, 7
  %v2038 = vsel %vm623, %v2037, %v2023
  %2039 = vrot.lane.b32.xlu0 %v2038, 32
  %v2040 = vpop.permute.xlu0 %2039
  %v2041 = vsel %vm367, %v2040, 0
  %2043 = vmatprep.subr.mxu0 0.0
  %2044 = vmatpush1.msra.mxu0 %v476
  %2045 = vmatprep.subr.mxu0 0.0
  %2046 = vmatpush1.msra.mxu0 %v477
  %2047 = vmatprep.subr.mxu0 0.0
  %2048 = vmatpush1.msra.mxu0 %v478
  %2049 = vmatprep.subr.mxu0 0.0
  %2050 = vmatpush1.msra.mxu0 %v479
  %2051 = vmatprep.subr.mxu0 0.0
  %2052 = vmatpush1.msra.mxu0 0.0
  %2053 = vmatprep.subr.mxu0 0.0
  %2054 = vmatpush1.msra.mxu0 0.0
  %2055 = vmatprep.subr.mxu0 0.0
  %2056 = vmatpush1.msra.mxu0 0.0
  %2057 = vmatprep.subr.mxu0 0.0
  %2058 = vmatpush1.msra.mxu0 0.0
  %2059 = vmatprep.subr.mxu0 0.0
  %2060 = vmatpush1.msra.mxu0 0.0
  %2061 = vmatprep.subr.mxu0 0.0
  %2062 = vmatpush1.msra.mxu0 0.0
  %2063 = vmatprep.subr.mxu0 0.0
  %2064 = vmatpush1.msra.mxu0 0.0
  %2065 = vmatprep.subr.mxu0 0.0
  %2066 = vmatpush1.msra.mxu0 0.0
  %2067 = vmatprep.subr.mxu0 0.0
  %2068 = vmatpush1.msra.mxu0 0.0
  %2069 = vmatprep.subr.mxu0 0.0
  %2070 = vmatpush1.msra.mxu0 0.0
  %2071 = vmatprep.subr.mxu0 0.0
  %2072 = vmatpush1.msra.mxu0 0.0
  %2073 = vmatprep.subr.mxu0 0.0
  %2074 = vmatpush1.msra.mxu0 0.0
  %2075 = vmatprep.subr.mxu0 0.0
  %2076 = vmatpush1.msra.mxu0 0.0
  %2077 = vmatprep.subr.mxu0 0.0
  %2078 = vmatpush1.msra.mxu0 0.0
  %2079 = vmatprep.subr.mxu0 0.0
  %2080 = vmatpush1.msra.mxu0 0.0
  %2081 = vmatprep.subr.mxu0 0.0
  %2082 = vmatpush1.msra.mxu0 0.0
  %2083 = vmatprep.subr.mxu0 0.0
  %2084 = vmatpush1.msra.mxu0 0.0
  %2085 = vmatprep.subr.mxu0 0.0
  %2086 = vmatpush1.msra.mxu0 0.0
  %2087 = vmatprep.subr.mxu0 0.0
  %2088 = vmatpush1.msra.mxu0 0.0
  %2089 = vmatprep.subr.mxu0 0.0
  %2090 = vmatpush1.msra.mxu0 0.0
  %2091 = vmatprep.subr.mxu0 0.0
  %2092 = vmatpush1.msra.mxu0 0.0
  %2093 = vmatprep.subr.mxu0 0.0
  %2094 = vmatpush1.msra.mxu0 0.0
  %2095 = vmatprep.subr.mxu0 0.0
  %2096 = vmatpush1.msra.mxu0 0.0
  %2097 = vmatprep.subr.mxu0 0.0
  %2098 = vmatpush1.msra.mxu0 0.0
  %2099 = vmatprep.subr.mxu0 0.0
  %2100 = vmatpush1.msra.mxu0 0.0
  %2101 = vmatprep.subr.mxu0 0.0
  %2102 = vmatpush1.msra.mxu0 0.0
  %2103 = vmatprep.subr.mxu0 0.0
  %2104 = vmatpush1.msra.mxu0 0.0
  %2105 = vmatprep.subr.mxu0 0.0
  %2106 = vmatpush1.msra.mxu0 0.0
  %2107 = vmatprep.mubr.f32.mxu0 0.0
  %2108 = vmatmul.mubr.f32.gmra.mrb[0].mxu0 %v2041
  %v2109 = vpop.f32.mrb[0].mxu0
  %v2110 = vadd.f32 0.0, %v2109
  %v2111 = vpop.f32.mrb[0].mxu0
  %2112 = vdwg.mxu0
  %v2114 = vrot.slane %v2110, 1
  %v2117 = vadd.f32 %v2035, %v2110
  %v2118 = vadd.f32 %v2036, %v2114
  %v2119 = vxor.u32 %v2117, 2147483648
  %v2120 = vxor.u32 %v2118, 2147483648
  %v2121 = vmul.f32 %v2119, 1.442695
  %v2122 = vpow.pop %v2121
  %v2123 = vmul.f32 %v2120, 1.442695
  %v2124 = vpow.pop %v2123
  %v2125 = vadd.f32 %v2122, 1.0
  %v2126 = vadd.f32 %v2124, 1.0
  %v2127 = vrcp.pop %v2125
  %v2128 = vmul.f32 1.0, %v2127
  %v2129 = vrcp.pop %v2126
  %v2130 = vmul.f32 1.0, %v2129
  %v2131 = vtanh.pop %v2117
  %v2132 = vtanh.pop %v2118
  %v2133 = vmul.f32 %v2128, %v2011
  %v2134 = vmul.f32 %v2130, %v2012
  %2137 = vrot.lane.b32.xlu0 %v2131, 64
  %v2138 = vpop.permute.xlu0 %2137
  %2139 = vrot.lane.b32.xlu0 %v2132, 64
  %v2140 = vpop.permute.xlu0 %2139
  %v2143 = vmul.f32 %v2128, %v2138
  %v2144 = vmul.f32 %v2130, %v2140
  %2147 = vrot.lane.b32.xlu0 %v2143, 32
  %v2148 = vpop.permute.xlu0 %2147
  %2149 = vrot.lane.b32.xlu0 %v2144, 32
  %v2150 = vpop.permute.xlu0 %2149
  %v2153 = vadd.f32 %v2133, %v2148
  %v2154 = vadd.f32 %v2134, %v2150
  %v2155 = vtanh.pop %v2153
  %v2156 = vtanh.pop %v2154
  %2159 = vrot.lane.b32.xlu0 %v2155, 64
  %v2160 = vpop.permute.xlu0 %2159
  %2161 = vrot.lane.b32.xlu0 %v2156, 64
  %v2162 = vpop.permute.xlu0 %2161
  %v2165 = vmul.f32 %v2128, %v2160
  %v2166 = vmul.f32 %v2130, %v2162
  %2168 = vrot.lane.b32.xlu0 %v2165, 32
  %v2169 = vpop.permute.xlu0 %2168
  %2171 = vst.msk [vmem:[#allocation4 + $0x4] sm:$0x1] %vm613, %v2169
  %2173 = vrot.lane.b32.xlu0 %v2166, 32
  %v2174 = vpop.permute.xlu0 %2173
  %2176 = vst.msk [vmem:[#allocation4 + $0xc] sm:$0x1] %vm613, %v2174
  %v2177 = vld [vmem:[#allocation2 + $0xb] ss:$0 sm:$0xff]
  %v2178 = vld [vmem:[#allocation2 + $0x1b] ss:$0 sm:$0xff]
  %v2179 = vrot.slane %v2166, 7
  %v2180 = vsel %vm623, %v2179, %v2165
  %2181 = vrot.lane.b32.xlu0 %v2180, 32
  %v2182 = vpop.permute.xlu0 %2181
  %v2183 = vsel %vm367, %v2182, 0
  %2185 = vmatprep.subr.mxu0 0.0
  %2186 = vmatpush1.msra.mxu0 %v476
  %2187 = vmatprep.subr.mxu0 0.0
  %2188 = vmatpush1.msra.mxu0 %v477
  %2189 = vmatprep.subr.mxu0 0.0
  %2190 = vmatpush1.msra.mxu0 %v478
  %2191 = vmatprep.subr.mxu0 0.0
  %2192 = vmatpush1.msra.mxu0 %v479
  %2193 = vmatprep.subr.mxu0 0.0
  %2194 = vmatpush1.msra.mxu0 0.0
  %2195 = vmatprep.subr.mxu0 0.0
  %2196 = vmatpush1.msra.mxu0 0.0
  %2197 = vmatprep.subr.mxu0 0.0
  %2198 = vmatpush1.msra.mxu0 0.0
  %2199 = vmatprep.subr.mxu0 0.0
  %2200 = vmatpush1.msra.mxu0 0.0
  %2201 = vmatprep.subr.mxu0 0.0
  %2202 = vmatpush1.msra.mxu0 0.0
  %2203 = vmatprep.subr.mxu0 0.0
  %2204 = vmatpush1.msra.mxu0 0.0
  %2205 = vmatprep.subr.mxu0 0.0
  %2206 = vmatpush1.msra.mxu0 0.0
  %2207 = vmatprep.subr.mxu0 0.0
  %2208 = vmatpush1.msra.mxu0 0.0
  %2209 = vmatprep.subr.mxu0 0.0
  %2210 = vmatpush1.msra.mxu0 0.0
  %2211 = vmatprep.subr.mxu0 0.0
  %2212 = vmatpush1.msra.mxu0 0.0
  %2213 = vmatprep.subr.mxu0 0.0
  %2214 = vmatpush1.msra.mxu0 0.0
  %2215 = vmatprep.subr.mxu0 0.0
  %2216 = vmatpush1.msra.mxu0 0.0
  %2217 = vmatprep.subr.mxu0 0.0
  %2218 = vmatpush1.msra.mxu0 0.0
  %2219 = vmatprep.subr.mxu0 0.0
  %2220 = vmatpush1.msra.mxu0 0.0
  %2221 = vmatprep.subr.mxu0 0.0
  %2222 = vmatpush1.msra.mxu0 0.0
  %2223 = vmatprep.subr.mxu0 0.0
  %2224 = vmatpush1.msra.mxu0 0.0
  %2225 = vmatprep.subr.mxu0 0.0
  %2226 = vmatpush1.msra.mxu0 0.0
  %2227 = vmatprep.subr.mxu0 0.0
  %2228 = vmatpush1.msra.mxu0 0.0
  %2229 = vmatprep.subr.mxu0 0.0
  %2230 = vmatpush1.msra.mxu0 0.0
  %2231 = vmatprep.subr.mxu0 0.0
  %2232 = vmatpush1.msra.mxu0 0.0
  %2233 = vmatprep.subr.mxu0 0.0
  %2234 = vmatpush1.msra.mxu0 0.0
  %2235 = vmatprep.subr.mxu0 0.0
  %2236 = vmatpush1.msra.mxu0 0.0
  %2237 = vmatprep.subr.mxu0 0.0
  %2238 = vmatpush1.msra.mxu0 0.0
  %2239 = vmatprep.subr.mxu0 0.0
  %2240 = vmatpush1.msra.mxu0 0.0
  %2241 = vmatprep.subr.mxu0 0.0
  %2242 = vmatpush1.msra.mxu0 0.0
  %2243 = vmatprep.subr.mxu0 0.0
  %2244 = vmatpush1.msra.mxu0 0.0
  %2245 = vmatprep.subr.mxu0 0.0
  %2246 = vmatpush1.msra.mxu0 0.0
  %2247 = vmatprep.subr.mxu0 0.0
  %2248 = vmatpush1.msra.mxu0 0.0
  %2249 = vmatprep.mubr.f32.mxu0 0.0
  %2250 = vmatmul.mubr.f32.gmra.mrb[0].mxu0 %v2183
  %v2251 = vpop.f32.mrb[0].mxu0
  %v2252 = vadd.f32 0.0, %v2251
  %v2253 = vpop.f32.mrb[0].mxu0
  %2254 = vdwg.mxu0
  %v2256 = vrot.slane %v2252, 1
  %v2259 = vadd.f32 %v2177, %v2252
  %v2260 = vadd.f32 %v2178, %v2256
  %v2261 = vxor.u32 %v2259, 2147483648
  %v2262 = vxor.u32 %v2260, 2147483648
  %v2263 = vmul.f32 %v2261, 1.442695
  %v2264 = vpow.pop %v2263
  %v2265 = vmul.f32 %v2262, 1.442695
  %v2266 = vpow.pop %v2265
  %v2267 = vadd.f32 %v2264, 1.0
  %v2268 = vadd.f32 %v2266, 1.0
  %v2269 = vrcp.pop %v2267
  %v2270 = vmul.f32 1.0, %v2269
  %v2271 = vrcp.pop %v2268
  %v2272 = vmul.f32 1.0, %v2271
  %v2273 = vtanh.pop %v2259
  %v2274 = vtanh.pop %v2260
  %v2275 = vmul.f32 %v2270, %v2153
  %v2276 = vmul.f32 %v2272, %v2154
  %2279 = vrot.lane.b32.xlu0 %v2273, 64
  %v2280 = vpop.permute.xlu0 %2279
  %2281 = vrot.lane.b32.xlu0 %v2274, 64
  %v2282 = vpop.permute.xlu0 %2281
  %v2285 = vmul.f32 %v2270, %v2280
  %v2286 = vmul.f32 %v2272, %v2282
  %2289 = vrot.lane.b32.xlu0 %v2285, 32
  %v2290 = vpop.permute.xlu0 %2289
  %2291 = vrot.lane.b32.xlu0 %v2286, 32
  %v2292 = vpop.permute.xlu0 %2291
  %v2295 = vadd.f32 %v2275, %v2290
  %v2296 = vadd.f32 %v2276, %v2292
  %v2297 = vtanh.pop %v2295
  %v2298 = vtanh.pop %v2296
  %2301 = vrot.lane.b32.xlu0 %v2297, 64
  %v2302 = vpop.permute.xlu0 %2301
  %2303 = vrot.lane.b32.xlu0 %v2298, 64
  %v2304 = vpop.permute.xlu0 %2303
  %v2307 = vmul.f32 %v2270, %v2302
  %v2308 = vmul.f32 %v2272, %v2304
  %2310 = vrot.lane.b32.xlu0 %v2307, 32
  %v2311 = vpop.permute.xlu0 %2310
  %2313 = vst.msk [vmem:[#allocation4 + $0x3] sm:$0x1] %vm613, %v2311
  %2315 = vrot.lane.b32.xlu0 %v2308, 32
  %v2316 = vpop.permute.xlu0 %2315
  %2318 = vst.msk [vmem:[#allocation4 + $0xb] sm:$0x1] %vm613, %v2316
  %v2319 = vld [vmem:[#allocation2 + $0xa] ss:$0 sm:$0xff]
  %v2320 = vld [vmem:[#allocation2 + $0x1a] ss:$0 sm:$0xff]
  %v2321 = vrot.slane %v2308, 7
  %v2322 = vsel %vm623, %v2321, %v2307
  %2323 = vrot.lane.b32.xlu0 %v2322, 32
  %v2324 = vpop.permute.xlu0 %2323
  %v2325 = vsel %vm367, %v2324, 0
  %2327 = vmatprep.subr.mxu0 0.0
  %2328 = vmatpush1.msra.mxu0 %v476
  %2329 = vmatprep.subr.mxu0 0.0
  %2330 = vmatpush1.msra.mxu0 %v477
  %2331 = vmatprep.subr.mxu0 0.0
  %2332 = vmatpush1.msra.mxu0 %v478
  %2333 = vmatprep.subr.mxu0 0.0
  %2334 = vmatpush1.msra.mxu0 %v479
  %2335 = vmatprep.subr.mxu0 0.0
  %2336 = vmatpush1.msra.mxu0 0.0
  %2337 = vmatprep.subr.mxu0 0.0
  %2338 = vmatpush1.msra.mxu0 0.0
  %2339 = vmatprep.subr.mxu0 0.0
  %2340 = vmatpush1.msra.mxu0 0.0
  %2341 = vmatprep.subr.mxu0 0.0
  %2342 = vmatpush1.msra.mxu0 0.0
  %2343 = vmatprep.subr.mxu0 0.0
  %2344 = vmatpush1.msra.mxu0 0.0
  %2345 = vmatprep.subr.mxu0 0.0
  %2346 = vmatpush1.msra.mxu0 0.0
  %2347 = vmatprep.subr.mxu0 0.0
  %2348 = vmatpush1.msra.mxu0 0.0
  %2349 = vmatprep.subr.mxu0 0.0
  %2350 = vmatpush1.msra.mxu0 0.0
  %2351 = vmatprep.subr.mxu0 0.0
  %2352 = vmatpush1.msra.mxu0 0.0
  %2353 = vmatprep.subr.mxu0 0.0
  %2354 = vmatpush1.msra.mxu0 0.0
  %2355 = vmatprep.subr.mxu0 0.0
  %2356 = vmatpush1.msra.mxu0 0.0
  %2357 = vmatprep.subr.mxu0 0.0
  %2358 = vmatpush1.msra.mxu0 0.0
  %2359 = vmatprep.subr.mxu0 0.0
  %2360 = vmatpush1.msra.mxu0 0.0
  %2361 = vmatprep.subr.mxu0 0.0
  %2362 = vmatpush1.msra.mxu0 0.0
  %2363 = vmatprep.subr.mxu0 0.0
  %2364 = vmatpush1.msra.mxu0 0.0
  %2365 = vmatprep.subr.mxu0 0.0
  %2366 = vmatpush1.msra.mxu0 0.0
  %2367 = vmatprep.subr.mxu0 0.0
  %2368 = vmatpush1.msra.mxu0 0.0
  %2369 = vmatprep.subr.mxu0 0.0
  %2370 = vmatpush1.msra.mxu0 0.0
  %2371 = vmatprep.subr.mxu0 0.0
  %2372 = vmatpush1.msra.mxu0 0.0
  %2373 = vmatprep.subr.mxu0 0.0
  %2374 = vmatpush1.msra.mxu0 0.0
  %2375 = vmatprep.subr.mxu0 0.0
  %2376 = vmatpush1.msra.mxu0 0.0
  %2377 = vmatprep.subr.mxu0 0.0
  %2378 = vmatpush1.msra.mxu0 0.0
  %2379 = vmatprep.subr.mxu0 0.0
  %2380 = vmatpush1.msra.mxu0 0.0
  %2381 = vmatprep.subr.mxu0 0.0
  %2382 = vmatpush1.msra.mxu0 0.0
  %2383 = vmatprep.subr.mxu0 0.0
  %2384 = vmatpush1.msra.mxu0 0.0
  %2385 = vmatprep.subr.mxu0 0.0
  %2386 = vmatpush1.msra.mxu0 0.0
  %2387 = vmatprep.subr.mxu0 0.0
  %2388 = vmatpush1.msra.mxu0 0.0
  %2389 = vmatprep.subr.mxu0 0.0
  %2390 = vmatpush1.msra.mxu0 0.0
  %2391 = vmatprep.mubr.f32.mxu0 0.0
  %2392 = vmatmul.mubr.f32.gmra.mrb[0].mxu0 %v2325
  %v2393 = vpop.f32.mrb[0].mxu0
  %v2394 = vadd.f32 0.0, %v2393
  %v2395 = vpop.f32.mrb[0].mxu0
  %2396 = vdwg.mxu0
  %v2398 = vrot.slane %v2394, 1
  %v2401 = vadd.f32 %v2319, %v2394
  %v2402 = vadd.f32 %v2320, %v2398
  %v2403 = vxor.u32 %v2401, 2147483648
  %v2404 = vxor.u32 %v2402, 2147483648
  %v2405 = vmul.f32 %v2403, 1.442695
  %v2406 = vpow.pop %v2405
  %v2407 = vmul.f32 %v2404, 1.442695
  %v2408 = vpow.pop %v2407
  %v2409 = vadd.f32 %v2406, 1.0
  %v2410 = vadd.f32 %v2408, 1.0
  %v2411 = vrcp.pop %v2409
  %v2412 = vmul.f32 1.0, %v2411
  %v2413 = vrcp.pop %v2410
  %v2414 = vmul.f32 1.0, %v2413
  %v2415 = vtanh.pop %v2401
  %v2416 = vtanh.pop %v2402
  %v2417 = vmul.f32 %v2412, %v2295
  %v2418 = vmul.f32 %v2414, %v2296
  %2421 = vrot.lane.b32.xlu0 %v2415, 64
  %v2422 = vpop.permute.xlu0 %2421
  %2423 = vrot.lane.b32.xlu0 %v2416, 64
  %v2424 = vpop.permute.xlu0 %2423
  %v2427 = vmul.f32 %v2412, %v2422
  %v2428 = vmul.f32 %v2414, %v2424
  %2431 = vrot.lane.b32.xlu0 %v2427, 32
  %v2432 = vpop.permute.xlu0 %2431
  %2433 = vrot.lane.b32.xlu0 %v2428, 32
  %v2434 = vpop.permute.xlu0 %2433
  %v2437 = vadd.f32 %v2417, %v2432
  %v2438 = vadd.f32 %v2418, %v2434
  %v2439 = vtanh.pop %v2437
  %v2440 = vtanh.pop %v2438
  %2443 = vrot.lane.b32.xlu0 %v2439, 64
  %v2444 = vpop.permute.xlu0 %2443
  %2445 = vrot.lane.b32.xlu0 %v2440, 64
  %v2446 = vpop.permute.xlu0 %2445
  %v2449 = vmul.f32 %v2412, %v2444
  %v2450 = vmul.f32 %v2414, %v2446
  %2452 = vrot.lane.b32.xlu0 %v2449, 32
  %v2453 = vpop.permute.xlu0 %2452
  %2455 = vst.msk [vmem:[#allocation4 + $0x2] sm:$0x1] %vm613, %v2453
  %2457 = vrot.lane.b32.xlu0 %v2450, 32
  %v2458 = vpop.permute.xlu0 %2457
  %2460 = vst.msk [vmem:[#allocation4 + $0xa] sm:$0x1] %vm613, %v2458
  %v2461 = vld [vmem:[#allocation2 + $0x9] ss:$0 sm:$0xff]
  %v2462 = vld [vmem:[#allocation2 + $0x19] ss:$0 sm:$0xff]
  %v2463 = vrot.slane %v2450, 7
  %v2464 = vsel %vm623, %v2463, %v2449
  %2465 = vrot.lane.b32.xlu0 %v2464, 32
  %v2466 = vpop.permute.xlu0 %2465
  %v2467 = vsel %vm367, %v2466, 0
  %2469 = vmatprep.subr.mxu0 0.0
  %2470 = vmatpush1.msra.mxu0 %v476
  %2471 = vmatprep.subr.mxu0 0.0
  %2472 = vmatpush1.msra.mxu0 %v477
  %2473 = vmatprep.subr.mxu0 0.0
  %2474 = vmatpush1.msra.mxu0 %v478
  %2475 = vmatprep.subr.mxu0 0.0
  %2476 = vmatpush1.msra.mxu0 %v479
  %2477 = vmatprep.subr.mxu0 0.0
  %2478 = vmatpush1.msra.mxu0 0.0
  %2479 = vmatprep.subr.mxu0 0.0
  %2480 = vmatpush1.msra.mxu0 0.0
  %2481 = vmatprep.subr.mxu0 0.0
  %2482 = vmatpush1.msra.mxu0 0.0
  %2483 = vmatprep.subr.mxu0 0.0
  %2484 = vmatpush1.msra.mxu0 0.0
  %2485 = vmatprep.subr.mxu0 0.0
  %2486 = vmatpush1.msra.mxu0 0.0
  %2487 = vmatprep.subr.mxu0 0.0
  %2488 = vmatpush1.msra.mxu0 0.0
  %2489 = vmatprep.subr.mxu0 0.0
  %2490 = vmatpush1.msra.mxu0 0.0
  %2491 = vmatprep.subr.mxu0 0.0
  %2492 = vmatpush1.msra.mxu0 0.0
  %2493 = vmatprep.subr.mxu0 0.0
  %2494 = vmatpush1.msra.mxu0 0.0
  %2495 = vmatprep.subr.mxu0 0.0
  %2496 = vmatpush1.msra.mxu0 0.0
  %2497 = vmatprep.subr.mxu0 0.0
  %2498 = vmatpush1.msra.mxu0 0.0
  %2499 = vmatprep.subr.mxu0 0.0
  %2500 = vmatpush1.msra.mxu0 0.0
  %2501 = vmatprep.subr.mxu0 0.0
  %2502 = vmatpush1.msra.mxu0 0.0
  %2503 = vmatprep.subr.mxu0 0.0
  %2504 = vmatpush1.msra.mxu0 0.0
  %2505 = vmatprep.subr.mxu0 0.0
  %2506 = vmatpush1.msra.mxu0 0.0
  %2507 = vmatprep.subr.mxu0 0.0
  %2508 = vmatpush1.msra.mxu0 0.0
  %2509 = vmatprep.subr.mxu0 0.0
  %2510 = vmatpush1.msra.mxu0 0.0
  %2511 = vmatprep.subr.mxu0 0.0
  %2512 = vmatpush1.msra.mxu0 0.0
  %2513 = vmatprep.subr.mxu0 0.0
  %2514 = vmatpush1.msra.mxu0 0.0
  %2515 = vmatprep.subr.mxu0 0.0
  %2516 = vmatpush1.msra.mxu0 0.0
  %2517 = vmatprep.subr.mxu0 0.0
  %2518 = vmatpush1.msra.mxu0 0.0
  %2519 = vmatprep.subr.mxu0 0.0
  %2520 = vmatpush1.msra.mxu0 0.0
  %2521 = vmatprep.subr.mxu0 0.0
  %2522 = vmatpush1.msra.mxu0 0.0
  %2523 = vmatprep.subr.mxu0 0.0
  %2524 = vmatpush1.msra.mxu0 0.0
  %2525 = vmatprep.subr.mxu0 0.0
  %2526 = vmatpush1.msra.mxu0 0.0
  %2527 = vmatprep.subr.mxu0 0.0
  %2528 = vmatpush1.msra.mxu0 0.0
  %2529 = vmatprep.subr.mxu0 0.0
  %2530 = vmatpush1.msra.mxu0 0.0
  %2531 = vmatprep.subr.mxu0 0.0
  %2532 = vmatpush1.msra.mxu0 0.0
  %2533 = vmatprep.mubr.f32.mxu0 0.0
  %2534 = vmatmul.mubr.f32.gmra.mrb[0].mxu0 %v2467
  %v2535 = vpop.f32.mrb[0].mxu0
  %v2536 = vadd.f32 0.0, %v2535
  %v2537 = vpop.f32.mrb[0].mxu0
  %2538 = vdwg.mxu0
  %v2540 = vrot.slane %v2536, 1
  %v2543 = vadd.f32 %v2461, %v2536
  %v2544 = vadd.f32 %v2462, %v2540
  %v2545 = vxor.u32 %v2543, 2147483648
  %v2546 = vxor.u32 %v2544, 2147483648
  %v2547 = vmul.f32 %v2545, 1.442695
  %v2548 = vpow.pop %v2547
  %v2549 = vmul.f32 %v2546, 1.442695
  %v2550 = vpow.pop %v2549
  %v2551 = vadd.f32 %v2548, 1.0
  %v2552 = vadd.f32 %v2550, 1.0
  %v2553 = vrcp.pop %v2551
  %v2554 = vmul.f32 1.0, %v2553
  %v2555 = vrcp.pop %v2552
  %v2556 = vmul.f32 1.0, %v2555
  %v2557 = vtanh.pop %v2543
  %v2558 = vtanh.pop %v2544
  %v2559 = vmul.f32 %v2554, %v2437
  %v2560 = vmul.f32 %v2556, %v2438
  %2563 = vrot.lane.b32.xlu0 %v2557, 64
  %v2564 = vpop.permute.xlu0 %2563
  %2565 = vrot.lane.b32.xlu0 %v2558, 64
  %v2566 = vpop.permute.xlu0 %2565
  %v2569 = vmul.f32 %v2554, %v2564
  %v2570 = vmul.f32 %v2556, %v2566
  %2573 = vrot.lane.b32.xlu0 %v2569, 32
  %v2574 = vpop.permute.xlu0 %2573
  %2575 = vrot.lane.b32.xlu0 %v2570, 32
  %v2576 = vpop.permute.xlu0 %2575
  %v2579 = vadd.f32 %v2559, %v2574
  %v2580 = vadd.f32 %v2560, %v2576
  %v2581 = vtanh.pop %v2579
  %v2582 = vtanh.pop %v2580
  %2585 = vrot.lane.b32.xlu0 %v2581, 64
  %v2586 = vpop.permute.xlu0 %2585
  %2587 = vrot.lane.b32.xlu0 %v2582, 64
  %v2588 = vpop.permute.xlu0 %2587
  %v2591 = vmul.f32 %v2554, %v2586
  %v2592 = vmul.f32 %v2556, %v2588
  %2594 = vrot.lane.b32.xlu0 %v2591, 32
  %v2595 = vpop.permute.xlu0 %2594
  %2597 = vst.msk [vmem:[#allocation4 + $0x1] sm:$0x1] %vm613, %v2595
  %2599 = vrot.lane.b32.xlu0 %v2592, 32
  %v2600 = vpop.permute.xlu0 %2599
  %2602 = vst.msk [vmem:[#allocation4 + $0x9] sm:$0x1] %vm613, %v2600
  %v2603 = vld [vmem:[#allocation2 + $0x8] ss:$0 sm:$0xff]
  %v2604 = vld [vmem:[#allocation2 + $0x18] ss:$0 sm:$0xff]
  %v2605 = vrot.slane %v2592, 7
  %v2606 = vsel %vm623, %v2605, %v2591
  %2607 = vrot.lane.b32.xlu0 %v2606, 32
  %v2608 = vpop.permute.xlu0 %2607
  %v2609 = vsel %vm367, %v2608, 0
  %2611 = vmatprep.subr.mxu0 0.0
  %2612 = vmatpush1.msra.mxu0 %v476
  %2613 = vmatprep.subr.mxu0 0.0
  %2614 = vmatpush1.msra.mxu0 %v477
  %2615 = vmatprep.subr.mxu0 0.0
  %2616 = vmatpush1.msra.mxu0 %v478
  %2617 = vmatprep.subr.mxu0 0.0
  %2618 = vmatpush1.msra.mxu0 %v479
  %2619 = vmatprep.subr.mxu0 0.0
  %2620 = vmatpush1.msra.mxu0 0.0
  %2621 = vmatprep.subr.mxu0 0.0
  %2622 = vmatpush1.msra.mxu0 0.0
  %2623 = vmatprep.subr.mxu0 0.0
  %2624 = vmatpush1.msra.mxu0 0.0
  %2625 = vmatprep.subr.mxu0 0.0
  %2626 = vmatpush1.msra.mxu0 0.0
  %2627 = vmatprep.subr.mxu0 0.0
  %2628 = vmatpush1.msra.mxu0 0.0
  %2629 = vmatprep.subr.mxu0 0.0
  %2630 = vmatpush1.msra.mxu0 0.0
  %2631 = vmatprep.subr.mxu0 0.0
  %2632 = vmatpush1.msra.mxu0 0.0
  %2633 = vmatprep.subr.mxu0 0.0
  %2634 = vmatpush1.msra.mxu0 0.0
  %2635 = vmatprep.subr.mxu0 0.0
  %2636 = vmatpush1.msra.mxu0 0.0
  %2637 = vmatprep.subr.mxu0 0.0
  %2638 = vmatpush1.msra.mxu0 0.0
  %2639 = vmatprep.subr.mxu0 0.0
  %2640 = vmatpush1.msra.mxu0 0.0
  %2641 = vmatprep.subr.mxu0 0.0
  %2642 = vmatpush1.msra.mxu0 0.0
  %2643 = vmatprep.subr.mxu0 0.0
  %2644 = vmatpush1.msra.mxu0 0.0
  %2645 = vmatprep.subr.mxu0 0.0
  %2646 = vmatpush1.msra.mxu0 0.0
  %2647 = vmatprep.subr.mxu0 0.0
  %2648 = vmatpush1.msra.mxu0 0.0
  %2649 = vmatprep.subr.mxu0 0.0
  %2650 = vmatpush1.msra.mxu0 0.0
  %2651 = vmatprep.subr.mxu0 0.0
  %2652 = vmatpush1.msra.mxu0 0.0
  %2653 = vmatprep.subr.mxu0 0.0
  %2654 = vmatpush1.msra.mxu0 0.0
  %2655 = vmatprep.subr.mxu0 0.0
  %2656 = vmatpush1.msra.mxu0 0.0
  %2657 = vmatprep.subr.mxu0 0.0
  %2658 = vmatpush1.msra.mxu0 0.0
  %2659 = vmatprep.subr.mxu0 0.0
  %2660 = vmatpush1.msra.mxu0 0.0
  %2661 = vmatprep.subr.mxu0 0.0
  %2662 = vmatpush1.msra.mxu0 0.0
  %2663 = vmatprep.subr.mxu0 0.0
  %2664 = vmatpush1.msra.mxu0 0.0
  %2665 = vmatprep.subr.mxu0 0.0
  %2666 = vmatpush1.msra.mxu0 0.0
  %2667 = vmatprep.subr.mxu0 0.0
  %2668 = vmatpush1.msra.mxu0 0.0
  %2669 = vmatprep.subr.mxu0 0.0
  %2670 = vmatpush1.msra.mxu0 0.0
  %2671 = vmatprep.subr.mxu0 0.0
  %2672 = vmatpush1.msra.mxu0 0.0
  %2673 = vmatprep.subr.mxu0 0.0
  %2674 = vmatpush1.msra.mxu0 0.0
  %2675 = vmatprep.mubr.f32.mxu0 0.0
  %2676 = vmatmul.mubr.f32.gmra.mrb[0].mxu0 %v2609
  %v2677 = vpop.f32.mrb[0].mxu0
  %v2678 = vadd.f32 0.0, %v2677
  %v2679 = vpop.f32.mrb[0].mxu0
  %2680 = vdwg.mxu0
  %v2682 = vrot.slane %v2678, 1
  %v2685 = vadd.f32 %v2603, %v2678
  %v2686 = vadd.f32 %v2604, %v2682
  %v2687 = vxor.u32 %v2685, 2147483648
  %v2688 = vxor.u32 %v2686, 2147483648
  %v2689 = vmul.f32 %v2687, 1.442695
  %v2690 = vpow.pop %v2689
  %v2691 = vmul.f32 %v2688, 1.442695
  %v2692 = vpow.pop %v2691
  %v2693 = vadd.f32 %v2690, 1.0
  %v2694 = vadd.f32 %v2692, 1.0
  %v2695 = vrcp.pop %v2693
  %v2696 = vmul.f32 1.0, %v2695
  %v2697 = vrcp.pop %v2694
  %v2698 = vmul.f32 1.0, %v2697
  %v2699 = vtanh.pop %v2685
  %v2700 = vtanh.pop %v2686
  %v2701 = vmul.f32 %v2696, %v2579
  %v2702 = vmul.f32 %v2698, %v2580
  %2705 = vrot.lane.b32.xlu0 %v2699, 64
  %v2706 = vpop.permute.xlu0 %2705
  %2707 = vrot.lane.b32.xlu0 %v2700, 64
  %v2708 = vpop.permute.xlu0 %2707
  %v2711 = vmul.f32 %v2696, %v2706
  %v2712 = vmul.f32 %v2698, %v2708
  %2715 = vrot.lane.b32.xlu0 %v2711, 32
  %v2716 = vpop.permute.xlu0 %2715
  %2717 = vrot.lane.b32.xlu0 %v2712, 32
  %v2718 = vpop.permute.xlu0 %2717
  %v2721 = vadd.f32 %v2701, %v2716
  %v2722 = vadd.f32 %v2702, %v2718
  %v2723 = vtanh.pop %v2721
  %v2724 = vtanh.pop %v2722
  %2727 = vrot.lane.b32.xlu0 %v2723, 64
  %v2728 = vpop.permute.xlu0 %2727
  %2729 = vrot.lane.b32.xlu0 %v2724, 64
  %v2730 = vpop.permute.xlu0 %2729
  %v2733 = vmul.f32 %v2696, %v2728
  %v2734 = vmul.f32 %v2698, %v2730
  %2736 = vrot.lane.b32.xlu0 %v2733, 32
  %v2737 = vpop.permute.xlu0 %2736
  %2739 = vst.msk [vmem:[#allocation4] sm:$0x1] %vm613, %v2737
  %2741 = vrot.lane.b32.xlu0 %v2734, 32
  %v2742 = vpop.permute.xlu0 %2741
  %2744 = vst.msk [vmem:[#allocation4 + $0x8] sm:$0x1] %vm613, %v2742
  %v2745 = vld [vmem:[#allocation3] sm:$0xff]
  %v2746 = vld [vmem:[#allocation3 + $0x8] sm:$0xff]
  %v2747 = vld [vmem:[%s9] sm:$0xff]
  %v2748 = vld [vmem:[%s9 + $0x8] sm:$0xff]
  %v2749 = vld [vmem:[%s9 + $0x10] sm:$0xff]
  %v2750 = vld [vmem:[%s9 + $0x18] sm:$0xff]
  %v2751 = vld [vmem:[#allocation4] sm:$0xff]
  %v2752 = vld [vmem:[#allocation4 + $0x8] sm:$0xff]
  %v2753 = vld [vmem:[%s10] sm:$0xff]
  %v2754 = vld [vmem:[%s10 + $0x8] sm:$0xff]
  %v2755 = vld [vmem:[%s10 + $0x10] sm:$0xff]
  %v2756 = vld [vmem:[%s10 + $0x18] sm:$0xff]
  %v2758 = vsel %vm367, %v2751, 0
  %v2761 = vsel %vm367, %v2752, 0
  %2763 = vmatprep.subr.mxu0 0.0
  %2764 = vmatpush1.msra.mxu0 %v2753
  %2765 = vmatprep.subr.mxu0 0.0
  %2766 = vmatpush1.msra.mxu0 %v2754
  %2767 = vmatprep.subr.mxu0 0.0
  %2768 = vmatpush1.msra.mxu0 %v2755
  %2769 = vmatprep.subr.mxu0 0.0
  %2770 = vmatpush1.msra.mxu0 %v2756
  %2771 = vmatprep.subr.mxu0 0.0
  %2772 = vmatpush1.msra.mxu0 0.0
  %2773 = vmatprep.subr.mxu0 0.0
  %2774 = vmatpush1.msra.mxu0 0.0
  %2775 = vmatprep.subr.mxu0 0.0
  %2776 = vmatpush1.msra.mxu0 0.0
  %2777 = vmatprep.subr.mxu0 0.0
  %2778 = vmatpush1.msra.mxu0 0.0
  %2779 = vmatprep.subr.mxu0 0.0
  %2780 = vmatpush1.msra.mxu0 0.0
  %2781 = vmatprep.subr.mxu0 0.0
  %2782 = vmatpush1.msra.mxu0 0.0
  %2783 = vmatprep.subr.mxu0 0.0
  %2784 = vmatpush1.msra.mxu0 0.0
  %2785 = vmatprep.subr.mxu0 0.0
  %2786 = vmatpush1.msra.mxu0 0.0
  %2787 = vmatprep.subr.mxu0 0.0
  %2788 = vmatpush1.msra.mxu0 0.0
  %2789 = vmatprep.subr.mxu0 0.0
  %2790 = vmatpush1.msra.mxu0 0.0
  %2791 = vmatprep.subr.mxu0 0.0
  %2792 = vmatpush1.msra.mxu0 0.0
  %2793 = vmatprep.subr.mxu0 0.0
  %2794 = vmatpush1.msra.mxu0 0.0
  %2795 = vmatprep.subr.mxu0 0.0
  %2796 = vmatpush1.msra.mxu0 0.0
  %2797 = vmatprep.subr.mxu0 0.0
  %2798 = vmatpush1.msra.mxu0 0.0
  %2799 = vmatprep.subr.mxu0 0.0
  %2800 = vmatpush1.msra.mxu0 0.0
  %2801 = vmatprep.subr.mxu0 0.0
  %2802 = vmatpush1.msra.mxu0 0.0
  %2803 = vmatprep.subr.mxu0 0.0
  %2804 = vmatpush1.msra.mxu0 0.0
  %2805 = vmatprep.subr.mxu0 0.0
  %2806 = vmatpush1.msra.mxu0 0.0
  %2807 = vmatprep.subr.mxu0 0.0
  %2808 = vmatpush1.msra.mxu0 0.0
  %2809 = vmatprep.subr.mxu0 0.0
  %2810 = vmatpush1.msra.mxu0 0.0
  %2811 = vmatprep.subr.mxu0 0.0
  %2812 = vmatpush1.msra.mxu0 0.0
  %2813 = vmatprep.subr.mxu0 0.0
  %2814 = vmatpush1.msra.mxu0 0.0
  %2815 = vmatprep.subr.mxu0 0.0
  %2816 = vmatpush1.msra.mxu0 0.0
  %2817 = vmatprep.subr.mxu0 0.0
  %2818 = vmatpush1.msra.mxu0 0.0
  %2819 = vmatprep.subr.mxu0 0.0
  %2820 = vmatpush1.msra.mxu0 0.0
  %2821 = vmatprep.subr.mxu0 0.0
  %2822 = vmatpush1.msra.mxu0 0.0
  %2823 = vmatprep.subr.mxu0 0.0
  %2824 = vmatpush1.msra.mxu0 0.0
  %2825 = vmatprep.subr.mxu0 0.0
  %2826 = vmatpush1.msra.mxu0 0.0
  %2827 = vmatprep.mubr.f32.mxu0 0.0
  %2828 = vmatmul.mubr.f32.gmra.mrb[0].mxu0 %v2758
  %v2829 = vpop.f32.mrb[0].mxu0
  %v2830 = vadd.f32 0.0, %v2829
  %v2831 = vpop.f32.mrb[0].mxu0
  %2832 = vmatprep.mubr.f32.mxu0 0.0
  %2833 = vmatmul.mubr.f32.gmra.mrb[0].mxu0 %v2761
  %v2834 = vpop.f32.mrb[0].mxu0
  %v2835 = vadd.f32 0.0, %v2834
  %v2836 = vpop.f32.mrb[0].mxu0
  %2837 = vdwg.mxu0
  %v2839 = vsel %vm367, %v2745, 0
  %v2842 = vsel %vm367, %v2746, 0
  %2844 = vmatprep.subr.mxu0 0.0
  %2845 = vmatpush1.msra.mxu0 %v2747
  %2846 = vmatprep.subr.mxu0 0.0
  %2847 = vmatpush1.msra.mxu0 %v2748
  %2848 = vmatprep.subr.mxu0 0.0
  %2849 = vmatpush1.msra.mxu0 %v2749
  %2850 = vmatprep.subr.mxu0 0.0
  %2851 = vmatpush1.msra.mxu0 %v2750
  %2852 = vmatprep.subr.mxu0 0.0
  %2853 = vmatpush1.msra.mxu0 0.0
  %2854 = vmatprep.subr.mxu0 0.0
  %2855 = vmatpush1.msra.mxu0 0.0
  %2856 = vmatprep.subr.mxu0 0.0
  %2857 = vmatpush1.msra.mxu0 0.0
  %2858 = vmatprep.subr.mxu0 0.0
  %2859 = vmatpush1.msra.mxu0 0.0
  %2860 = vmatprep.subr.mxu0 0.0
  %2861 = vmatpush1.msra.mxu0 0.0
  %2862 = vmatprep.subr.mxu0 0.0
  %2863 = vmatpush1.msra.mxu0 0.0
  %2864 = vmatprep.subr.mxu0 0.0
  %2865 = vmatpush1.msra.mxu0 0.0
  %2866 = vmatprep.subr.mxu0 0.0
  %2867 = vmatpush1.msra.mxu0 0.0
  %2868 = vmatprep.subr.mxu0 0.0
  %2869 = vmatpush1.msra.mxu0 0.0
  %2870 = vmatprep.subr.mxu0 0.0
  %2871 = vmatpush1.msra.mxu0 0.0
  %2872 = vmatprep.subr.mxu0 0.0
  %2873 = vmatpush1.msra.mxu0 0.0
  %2874 = vmatprep.subr.mxu0 0.0
  %2875 = vmatpush1.msra.mxu0 0.0
  %2876 = vmatprep.subr.mxu0 0.0
  %2877 = vmatpush1.msra.mxu0 0.0
  %2878 = vmatprep.subr.mxu0 0.0
  %2879 = vmatpush1.msra.mxu0 0.0
  %2880 = vmatprep.subr.mxu0 0.0
  %2881 = vmatpush1.msra.mxu0 0.0
  %2882 = vmatprep.subr.mxu0 0.0
  %2883 = vmatpush1.msra.mxu0 0.0
  %2884 = vmatprep.subr.mxu0 0.0
  %2885 = vmatpush1.msra.mxu0 0.0
  %2886 = vmatprep.subr.mxu0 0.0
  %2887 = vmatpush1.msra.mxu0 0.0
  %2888 = vmatprep.subr.mxu0 0.0
  %2889 = vmatpush1.msra.mxu0 0.0
  %2890 = vmatprep.subr.mxu0 0.0
  %2891 = vmatpush1.msra.mxu0 0.0
  %2892 = vmatprep.subr.mxu0 0.0
  %2893 = vmatpush1.msra.mxu0 0.0
  %2894 = vmatprep.subr.mxu0 0.0
  %2895 = vmatpush1.msra.mxu0 0.0
  %2896 = vmatprep.subr.mxu0 0.0
  %2897 = vmatpush1.msra.mxu0 0.0
  %2898 = vmatprep.subr.mxu0 0.0
  %2899 = vmatpush1.msra.mxu0 0.0
  %2900 = vmatprep.subr.mxu0 0.0
  %2901 = vmatpush1.msra.mxu0 0.0
  %2902 = vmatprep.subr.mxu0 0.0
  %2903 = vmatpush1.msra.mxu0 0.0
  %2904 = vmatprep.subr.mxu0 0.0
  %2905 = vmatpush1.msra.mxu0 0.0
  %2906 = vmatprep.subr.mxu0 0.0
  %2907 = vmatpush1.msra.mxu0 0.0
  %2908 = vmatprep.mubr.f32.mxu0 0.0
  %2909 = vmatmul.mubr.f32.gmra.mrb[0].mxu0 %v2839
  %v2910 = vpop.f32.mrb[0].mxu0
  %v2911 = vadd.f32 %v2830, %v2910
  %v2912 = vpop.f32.mrb[0].mxu0
  %2913 = vmatprep.mubr.f32.mxu0 0.0
  %2914 = vmatmul.mubr.f32.gmra.mrb[0].mxu0 %v2842
  %v2915 = vpop.f32.mrb[0].mxu0
  %v2916 = vadd.f32 %v2835, %v2915
  %v2917 = vpop.f32.mrb[0].mxu0
  %2918 = vdwg.mxu0
  %v2919 = vld [vmem:[%s11] sm:$0x1]
  %v2921 = vlaneseq
  %v2922 = vshrl.u32 %v2921, 7
  %v2923 = vsub.s32 0, %v2922
  %v2924 = vrot.slane %v2919, %v2923
  %v2926 = vadd.f32 %v2911, %v2924
  %v2927 = vadd.f32 %v2916, %v2924
  %v2928 = vmax.f32 %v2926, 0.0
  %v2929 = vmax.f32 %v2927, 0.0
  %v2930 = vld [vmem:[%s12] sm:$0xff]
  %v2931 = vld [vmem:[%s12 + $0x8] sm:$0xff]
  %v2932 = vld [vmem:[%s12 + $0x10] sm:$0xff]
  %v2933 = vld [vmem:[%s12 + $0x18] sm:$0xff]
  %v2934 = vld [vmem:[%s13] sm:$0x1]
  %v2936 = vlaneseq
  %v2937 = vshrl.u32 %v2936, 7
  %v2938 = vsub.s32 0, %v2937
  %v2939 = vrot.slane %v2934, %v2938
  %v2942 = vsel %vm367, %v2928, 0
  %v2945 = vsel %vm367, %v2929, 0
  %2947 = vmatprep.subr.mxu0 0.0
  %2948 = vmatpush1.msra.mxu0 %v2930
  %2949 = vmatprep.subr.mxu0 0.0
  %2950 = vmatpush1.msra.mxu0 %v2931
  %2951 = vmatprep.subr.mxu0 0.0
  %2952 = vmatpush1.msra.mxu0 %v2932
  %2953 = vmatprep.subr.mxu0 0.0
  %2954 = vmatpush1.msra.mxu0 %v2933
  %2955 = vmatprep.subr.mxu0 0.0
  %2956 = vmatpush1.msra.mxu0 0.0
  %2957 = vmatprep.subr.mxu0 0.0
  %2958 = vmatpush1.msra.mxu0 0.0
  %2959 = vmatprep.subr.mxu0 0.0
  %2960 = vmatpush1.msra.mxu0 0.0
  %2961 = vmatprep.subr.mxu0 0.0
  %2962 = vmatpush1.msra.mxu0 0.0
  %2963 = vmatprep.subr.mxu0 0.0
  %2964 = vmatpush1.msra.mxu0 0.0
  %2965 = vmatprep.subr.mxu0 0.0
  %2966 = vmatpush1.msra.mxu0 0.0
  %2967 = vmatprep.subr.mxu0 0.0
  %2968 = vmatpush1.msra.mxu0 0.0
  %2969 = vmatprep.subr.mxu0 0.0
  %2970 = vmatpush1.msra.mxu0 0.0
  %2971 = vmatprep.subr.mxu0 0.0
  %2972 = vmatpush1.msra.mxu0 0.0
  %2973 = vmatprep.subr.mxu0 0.0
  %2974 = vmatpush1.msra.mxu0 0.0
  %2975 = vmatprep.subr.mxu0 0.0
  %2976 = vmatpush1.msra.mxu0 0.0
  %2977 = vmatprep.subr.mxu0 0.0
  %2978 = vmatpush1.msra.mxu0 0.0
  %2979 = vmatprep.subr.mxu0 0.0
  %2980 = vmatpush1.msra.mxu0 0.0
  %2981 = vmatprep.subr.mxu0 0.0
  %2982 = vmatpush1.msra.mxu0 0.0
  %2983 = vmatprep.subr.mxu0 0.0
  %2984 = vmatpush1.msra.mxu0 0.0
  %2985 = vmatprep.subr.mxu0 0.0
  %2986 = vmatpush1.msra.mxu0 0.0
  %2987 = vmatprep.subr.mxu0 0.0
  %2988 = vmatpush1.msra.mxu0 0.0
  %2989 = vmatprep.subr.mxu0 0.0
  %2990 = vmatpush1.msra.mxu0 0.0
  %2991 = vmatprep.subr.mxu0 0.0
  %2992 = vmatpush1.msra.mxu0 0.0
  %2993 = vmatprep.subr.mxu0 0.0
  %2994 = vmatpush1.msra.mxu0 0.0
  %2995 = vmatprep.subr.mxu0 0.0
  %2996 = vmatpush1.msra.mxu0 0.0
  %2997 = vmatprep.subr.mxu0 0.0
  %2998 = vmatpush1.msra.mxu0 0.0
  %2999 = vmatprep.subr.mxu0 0.0
  %3000 = vmatpush1.msra.mxu0 0.0
  %3001 = vmatprep.subr.mxu0 0.0
  %3002 = vmatpush1.msra.mxu0 0.0
  %3003 = vmatprep.subr.mxu0 0.0
  %3004 = vmatpush1.msra.mxu0 0.0
  %3005 = vmatprep.subr.mxu0 0.0
  %3006 = vmatpush1.msra.mxu0 0.0
  %3007 = vmatprep.subr.mxu0 0.0
  %3008 = vmatpush1.msra.mxu0 0.0
  %3009 = vmatprep.subr.mxu0 0.0
  %3010 = vmatpush1.msra.mxu0 0.0
  %3011 = vmatprep.mubr.f32.mxu0 0.0
  %3012 = vmatmul.mubr.f32.gmra.mrb[0].mxu0 %v2942
  %v3013 = vpop.f32.mrb[0].mxu0
  %v3014 = vadd.f32 %v2939, %v3013
  %v3015 = vpop.f32.mrb[0].mxu0
  %3016 = vmatprep.mubr.f32.mxu0 0.0
  %3017 = vmatmul.mubr.f32.gmra.mrb[0].mxu0 %v2945
  %v3018 = vpop.f32.mrb[0].mxu0
  %v3019 = vadd.f32 %v2939, %v3018
  %v3020 = vpop.f32.mrb[0].mxu0
  %3021 = vdwg.mxu0
  %3022 = vst [vmem:[%s14] sm:$0xff] %v3014
  %3023 = vst [vmem:[%s14 + $0x8] sm:$0xff] %v3019
  // Predicated region
  $region58: #{forward.1} parent=0 // pred_check
    _
  $region59: #{forward.1} parent=0 // pred_check_branch
    %3025 = sbr.rel (0) target = $region61
  $region60: #{forward.1} parent=0 // pred_region
    _
  $region61: #{forward.1} parent=0 // pred_fallthru
    _
  // Predicated region
  $region62: #{forward.1} parent=0 // pred_check
    _
  $region63: #{forward.1} parent=0 // pred_check_branch
    %3027 = sbr.rel (0) target = $region65
  $region64: #{forward.1} parent=0 // pred_region
    _
  $region65: #{forward.1} parent=0 // pred_fallthru
    _

</llo_original>
